<compile_context>
chip_gen: v6e
topology: v6e:2x2x1
jax: 0.10.0
libtpu: 0.0.40
codegen_flags: <defaults>
</compile_context>

<pallas_src>
import numpy as np
import jax
import jax.numpy as jnp
from jax import lax
from jax.experimental import pallas as pl
from jax.experimental.pallas import tpu as pltpu

KSIZE = 7   # spatial-attention conv kernel size
PAD = 3     # padding = 3 ("same" conv)


def _make_cbam_kernel(Bt):
    def kernel(x_ref, w1t_ref, w2t_ref, k_avg_ref, k_max_ref, bias_ref, o_ref):
        x = x_ref[...]                                        # (Bt, C, HW) f32, lane-dense

        # ---------------- Channel attention ----------------
        avg2 = jnp.mean(x, axis=2)                            # (Bt, C)  lane reduce
        mx2 = jnp.max(x, axis=2)                              # (Bt, C)
        pooled = jnp.concatenate([avg2, mx2], axis=0)         # (2*Bt, C) -- one concat
        h = jnp.maximum(
            jnp.dot(pooled, w1t_ref[...], preferred_element_type=jnp.float32,
                    precision=lax.Precision.HIGHEST), 0.0)    # (2*Bt, Cr)
        mlp = jnp.dot(h, w2t_ref[...], preferred_element_type=jnp.float32,
                      precision=lax.Precision.HIGHEST)        # (2*Bt, C)
        ca = jax.nn.sigmoid(mlp[:Bt] + mlp[Bt:])              # (Bt, C)
        out1 = x * ca[:, :, None]                             # (Bt, C, HW)

        # ---------------- Spatial attention ----------------
        avg_c = jnp.mean(out1, axis=1)                        # (Bt, HW) sublane reduce
        max_c = jnp.max(out1, axis=1)                         # (Bt, HW)
        # 7x7 "same" conv over the 2-channel (avg,max) map as banded matmuls.
        conv = (jnp.dot(avg_c, k_avg_ref[...], preferred_element_type=jnp.float32,
                        precision=lax.Precision.HIGHEST)
                + jnp.dot(max_c, k_max_ref[...], preferred_element_type=jnp.float32,
                          precision=lax.Precision.HIGHEST)
                + bias_ref[0])                                # (Bt, HW)
        sa = jax.nn.sigmoid(conv)

        o_ref[...] = out1 * sa[:, None, :]                    # lane-dense store
    return kernel


def _banded_conv_matrices(ws, H, W):
    """Fold the 7x7 'same' 2-in/1-out conv into two (HW, HW) banded matrices so
    the kernel computes it as conv = avg_map @ K_avg + max_map @ K_max."""
    HW = H * W
    k_avg = np.zeros((HW, HW), np.float32)
    k_max = np.zeros((HW, HW), np.float32)
    w = np.asarray(ws, np.float32).reshape(2, KSIZE, KSIZE)
    for kh in range(KSIZE):
        dh = kh - PAD
        for kw in range(KSIZE):
            dw = kw - PAD
            for ho in range(H):
                hi = ho + dh
                if not (0 <= hi < H):
                    continue
                w_lo = max(0, -dw)
                w_hi = min(W, W - dw)
                if w_lo >= w_hi:
                    continue
                wo = np.arange(w_lo, w_hi)
                out_idx = ho * W + wo
                in_idx = hi * W + wo + dw
                k_avg[in_idx, out_idx] += w[0, kh, kw]
                k_max[in_idx, out_idx] += w[1, kh, kw]
    return jnp.asarray(k_avg), jnp.asarray(k_max)


def _pick_block_batch(B, bytes_per_image, budget_bytes=3 * 1024 * 1024):
    """Largest divisor of B that (a) leaves >=2 grid steps (v7x: shards across
    both TCs), (b) keeps ~6x the block (2x in + 2x out + out1 temp) under
    budget, (c) prefers 2*Bt being a multiple of 8 (full sublane occupancy of
    the pooled rows / spatial maps)."""
    cap = max(1, B // 2)
    fits = [d for d in range(1, cap + 1)
            if B % d == 0 and 6 * d * bytes_per_image <= budget_bytes]
    if not fits:
        return 1
    aligned = [d for d in fits if (2 * d) % 8 == 0]
    return max(aligned) if aligned else max(fits)


def cbam_forward(x_nchw, w1, w2, ws, bs):
    """x_nchw: (B,C,H,W); w1: (C//r, C); w2: (C, C//r); ws: (1,2,7,7); bs: (1,)."""
    B, C, H, W = x_nchw.shape
    HW = H * W
    Cr = w1.shape[0]

    # Layout sanity for the in-kernel reductions (padded-tile max/mean hazard).
    assert C % 8 == 0 and HW % 128 == 0, "expect C % 8 == 0 and H*W % 128 == 0"

    x_flat = jnp.asarray(x_nchw, jnp.float32).reshape(B, C, HW)   # free reshape (contiguous)
    w1t = jnp.asarray(w1, jnp.float32).reshape(Cr, C).T           # (C, Cr)  pre-transposed
    w2t = jnp.asarray(w2, jnp.float32).reshape(C, Cr).T           # (Cr, C)  pre-transposed
    k_avg, k_max = _banded_conv_matrices(ws, H, W)                # (HW, HW) each
    bs1 = jnp.asarray(bs, jnp.float32).reshape(1)                 # (1,) -> SMEM

    Bt = _pick_block_batch(B, C * HW * 4)
    kernel = _make_cbam_kernel(Bt)

    block_bytes = Bt * C * HW * 4
    k_bytes = 2 * HW * HW * 4
    vmem_limit = int(min(48 * 1024 * 1024,                        # v7x: 64 MiB/TC cap
                         max(16 * 1024 * 1024,
                             8 * block_bytes + 4 * k_bytes + (4 << 20))))

    out_flat = pl.pallas_call(
        kernel,
        out_shape=jax.ShapeDtypeStruct((B, C, HW), jnp.float32),
        grid=(B // Bt,),
        in_specs=[
            pl.BlockSpec((Bt, C, HW), lambda b: (b, 0, 0)),       # activations
            pl.BlockSpec((C, Cr), lambda b: (0, 0)),              # MLP W1^T
            pl.BlockSpec((Cr, C), lambda b: (0, 0)),              # MLP W2^T
            pl.BlockSpec((HW, HW), lambda b: (0, 0)),             # banded conv (avg channel)
            pl.BlockSpec((HW, HW), lambda b: (0, 0)),             # banded conv (max channel)
            pl.BlockSpec(memory_space=pltpu.MemorySpace.SMEM),    # conv bias scalar
        ],
        out_specs=pl.BlockSpec((Bt, C, HW), lambda b: (b, 0, 0)),
        compiler_params=pltpu.CompilerParams(
            dimension_semantics=("parallel",),                    # batch axis -> 2 TCs on v7x
            vmem_limit_bytes=vmem_limit),
    )(x_flat, w1t, w2t, k_avg, k_max, bs1)

    return out_flat.reshape(B, C, H, W)


def cbam_ref(x, w1, w2, ws, bs):
    """Pure-JAX reference (NCHW, mirrors the PyTorch module)."""
    B, C, H, W = x.shape
    avg = jnp.mean(x, axis=(2, 3))
    mx = jnp.max(x, axis=(2, 3))

    def mlp(p):
        h = jnp.maximum(jnp.dot(p, w1.T, precision=lax.Precision.HIGHEST), 0.0)
        return jnp.dot(h, w2.T, precision=lax.Precision.HIGHEST)

    ca = jax.nn.sigmoid(mlp(avg) + mlp(mx))
    out1 = x * ca[:, :, None, None]

    avg_c = jnp.mean(out1, axis=1, keepdims=True)
    max_c = jnp.max(out1, axis=1, keepdims=True)
    s = jnp.concatenate([avg_c, max_c], axis=1)
    s_pad = jnp.pad(s, ((0, 0), (0, 0), (PAD, PAD), (PAD, PAD)))
    conv = jnp.full((B, 1, H, W), bs[0], dtype=jnp.float32)
    for ci in range(2):
        for kh in range(KSIZE):
            for kw in range(KSIZE):
                conv = conv + ws[0, ci, kh, kw] * s_pad[:, ci:ci + 1, kh:kh + H, kw:kw + W]
    sa = jax.nn.sigmoid(conv)
    return out1 * sa


if __name__ == "__main__":
    key = jax.random.PRNGKey(0)
    k1, k2, k3, k4, k5 = jax.random.split(key, 5)

    B, C, H, W = 2, 32, 16, 16
    ratio = 16
    Cr = C // ratio

    x = jax.random.normal(k1, (B, C, H, W), jnp.float32)
    # Deterministic synthetic parameters (shapes from the module's __init__).
    w1 = jax.random.normal(k2, (Cr, C), jnp.float32) * 0.2     # Conv2d(C, C//r, 1, bias=False)
    w2 = jax.random.normal(k3, (C, Cr), jnp.float32) * 0.2     # Conv2d(C//r, C, 1, bias=False)
    ws = jax.random.normal(k4, (1, 2, KSIZE, KSIZE), jnp.float32) * 0.1  # Conv2d(2,1,7,pad=3)
    bs = jax.random.normal(k5, (1,), jnp.float32) * 0.1

    out = jax.block_until_ready(cbam_forward(x, w1, w2, ws, bs))
    ref = jax.block_until_ready(cbam_ref(x, w1, w2, ws, bs))
    np.testing.assert_allclose(np.asarray(out), np.asarray(ref), atol=1e-4, rtol=1e-4)
    print("KERNEL_OK")
</pallas_src>

<mosaic_0001>
module attributes {stable_mosaic.version = 11 : i64} {
  func.func @kernel(%arg0: i32, %arg1: memref<1x32x256xf32, #tpu.memory_space<vmem>>, %arg2: memref<32x2xf32, #tpu.memory_space<vmem>>, %arg3: memref<2x32xf32, #tpu.memory_space<vmem>>, %arg4: memref<256x256xf32, #tpu.memory_space<vmem>>, %arg5: memref<256x256xf32, #tpu.memory_space<vmem>>, %arg6: memref<1xf32, #tpu.memory_space<smem>>, %arg7: memref<1x32x256xf32, #tpu.memory_space<vmem>>) attributes {dimension_semantics = [#tpu.dimension_semantics<parallel>], iteration_bounds = array<i64: 2>, scalar_prefetch = 0 : i64, scratch_operands = 0 : i64, tpu.core_type = #tpu.core_type<tc>, window_params = [{transform_indices = @transform_0, window_bounds = array<i64: 1, 32, 256>}, {pipeline_mode = #tpu.pipeline_mode<synchronous>, transform_indices = @transform_1, window_bounds = array<i64: 32, 2>}, {pipeline_mode = #tpu.pipeline_mode<synchronous>, transform_indices = @transform_2, window_bounds = array<i64: 2, 32>}, {pipeline_mode = #tpu.pipeline_mode<synchronous>, transform_indices = @transform_3, window_bounds = array<i64: 256, 256>}, {pipeline_mode = #tpu.pipeline_mode<synchronous>, transform_indices = @transform_4, window_bounds = array<i64: 256, 256>}, {transform_indices = @transform_5, window_bounds = array<i64: 1>}, {transform_indices = @transform_6, window_bounds = array<i64: 1, 32, 256>}]} {
    %c0 = arith.constant 0 : index
    %c0_0 = arith.constant 0 : index
    %c0_1 = arith.constant 0 : index
    %0 = vector.load %arg1[%c0, %c0_0, %c0_1] : memref<1x32x256xf32, #tpu.memory_space<vmem>>, vector<1x32x256xf32>
    %cst = arith.constant dense<0.000000e+00> : vector<1x32xf32>
    %1 = vector.multi_reduction <add>, %0, %cst [2] : vector<1x32x256xf32> to vector<1x32xf32>
    %cst_2 = arith.constant 2.560000e+02 : f32
    %2 = vector.broadcast %cst_2 : f32 to vector<1x32xf32>
    %3 = arith.divf %1, %2 : vector<1x32xf32>
    %cst_3 = arith.constant dense<0xFF800000> : vector<1x32xf32>
    %4 = vector.multi_reduction <maximumf>, %0, %cst_3 [2] : vector<1x32x256xf32> to vector<1x32xf32>
    %5 = tpu.concatenate %3, %4 in 0 : vector<1x32xf32>, vector<1x32xf32> -> vector<2x32xf32>
    %c0_4 = arith.constant 0 : index
    %c0_5 = arith.constant 0 : index
    %6 = vector.load %arg2[%c0_4, %c0_5] : memref<32x2xf32, #tpu.memory_space<vmem>>, vector<32x2xf32>
    %cst_6 = arith.constant dense<0.000000e+00> : vector<2x2xf32>
    %7 = tpu.matmul %5, %6, %cst_6 {dimension_numbers = #tpu.dot_dimension_numbers<[1], [0], [0], [1], [0, 0, 1, 1], [], []>, precision = #tpu.contract_precision<fp32>} : vector<2x32xf32>, vector<32x2xf32>, vector<2x2xf32> -> vector<2x2xf32>
    %cst_7 = arith.constant 0.000000e+00 : f32
    %8 = vector.broadcast %cst_7 : f32 to vector<2x2xf32>
    %9 = arith.maximumf %7, %8 : vector<2x2xf32>
    %c0_8 = arith.constant 0 : index
    %c0_9 = arith.constant 0 : index
    %10 = vector.load %arg3[%c0_8, %c0_9] : memref<2x32xf32, #tpu.memory_space<vmem>>, vector<2x32xf32>
    %cst_10 = arith.constant dense<0.000000e+00> : vector<2x32xf32>
    %11 = tpu.matmul %9, %10, %cst_10 {dimension_numbers = #tpu.dot_dimension_numbers<[1], [0], [0], [1], [0, 0, 1, 1], [], []>, precision = #tpu.contract_precision<fp32>} : vector<2x2xf32>, vector<2x32xf32>, vector<2x32xf32> -> vector<2x32xf32>
    %12 = vector.extract_strided_slice %11 {offsets = [0, 0], sizes = [1, 32], strides = [1, 1]} : vector<2x32xf32> to vector<1x32xf32>
    %13 = vector.extract_strided_slice %11 {offsets = [1, 0], sizes = [1, 32], strides = [1, 1]} : vector<2x32xf32> to vector<1x32xf32>
    %14 = arith.addf %12, %13 : vector<1x32xf32>
    %15 = arith.negf %14 : vector<1x32xf32>
    %16 = math.exp %15 : vector<1x32xf32>
    %cst_11 = arith.constant 1.000000e+00 : f32
    %17 = vector.broadcast %cst_11 : f32 to vector<1x32xf32>
    %18 = arith.addf %17, %16 : vector<1x32xf32>
    %19 = arith.divf %17, %18 : vector<1x32xf32>
    %20 = vector.shape_cast %19 : vector<1x32xf32> to vector<1x32x1xf32>
    %21 = vector.broadcast %20 : vector<1x32x1xf32> to vector<1x32x256xf32>
    %22 = arith.mulf %0, %21 : vector<1x32x256xf32>
    %cst_12 = arith.constant dense<0.000000e+00> : vector<1x256xf32>
    %23 = vector.multi_reduction <add>, %22, %cst_12 [1] : vector<1x32x256xf32> to vector<1x256xf32>
    %cst_13 = arith.constant 3.200000e+01 : f32
    %24 = vector.broadcast %cst_13 : f32 to vector<1x256xf32>
    %25 = arith.divf %23, %24 : vector<1x256xf32>
    %cst_14 = arith.constant dense<0xFF800000> : vector<1x256xf32>
    %26 = vector.multi_reduction <maximumf>, %22, %cst_14 [1] : vector<1x32x256xf32> to vector<1x256xf32>
    %c0_15 = arith.constant 0 : index
    %c0_16 = arith.constant 0 : index
    %27 = vector.load %arg4[%c0_15, %c0_16] : memref<256x256xf32, #tpu.memory_space<vmem>>, vector<256x256xf32>
    %cst_17 = arith.constant dense<0.000000e+00> : vector<1x256xf32>
    %28 = tpu.matmul %25, %27, %cst_17 {dimension_numbers = #tpu.dot_dimension_numbers<[1], [0], [0], [1], [0, 0, 1, 1], [], []>, precision = #tpu.contract_precision<fp32>} : vector<1x256xf32>, vector<256x256xf32>, vector<1x256xf32> -> vector<1x256xf32>
    %c0_18 = arith.constant 0 : index
    %c0_19 = arith.constant 0 : index
    %29 = vector.load %arg5[%c0_18, %c0_19] : memref<256x256xf32, #tpu.memory_space<vmem>>, vector<256x256xf32>
    %cst_20 = arith.constant dense<0.000000e+00> : vector<1x256xf32>
    %30 = tpu.matmul %26, %29, %cst_20 {dimension_numbers = #tpu.dot_dimension_numbers<[1], [0], [0], [1], [0, 0, 1, 1], [], []>, precision = #tpu.contract_precision<fp32>} : vector<1x256xf32>, vector<256x256xf32>, vector<1x256xf32> -> vector<1x256xf32>
    %31 = arith.addf %28, %30 : vector<1x256xf32>
    %c0_21 = arith.constant 0 : index
    %32 = memref.load %arg6[%c0_21] : memref<1xf32, #tpu.memory_space<smem>>
    %33 = vector.broadcast %32 : f32 to vector<1x256xf32>
    %34 = arith.addf %31, %33 : vector<1x256xf32>
    %35 = arith.negf %34 : vector<1x256xf32>
    %36 = math.exp %35 : vector<1x256xf32>
    %cst_22 = arith.constant 1.000000e+00 : f32
    %37 = vector.broadcast %cst_22 : f32 to vector<1x256xf32>
    %38 = arith.addf %37, %36 : vector<1x256xf32>
    %39 = arith.divf %37, %38 : vector<1x256xf32>
    %40 = vector.shape_cast %39 : vector<1x256xf32> to vector<1x1x256xf32>
    %41 = vector.broadcast %40 : vector<1x1x256xf32> to vector<1x32x256xf32>
    %42 = arith.mulf %22, %41 : vector<1x32x256xf32>
    %c0_23 = arith.constant 0 : index
    %c0_24 = arith.constant 0 : index
    %c0_25 = arith.constant 0 : index
    %43 = vector.load %arg7[%c0_23, %c0_24, %c0_25] : memref<1x32x256xf32, #tpu.memory_space<vmem>>, vector<1x32x256xf32>
    tpu.vector_store %arg7[%c0_23, %c0_24, %c0_25], %42 {strides = array<i32>} : memref<1x32x256xf32, #tpu.memory_space<vmem>>, vector<1x32x256xf32>,
    return
  }
  func.func @transform_0(%arg0: i32) -> (i32, i32, i32) {
    %c0_i32 = arith.constant 0 : i32
    %c0_i32_0 = arith.constant 0 : i32
    %c0_i32_1 = arith.constant 0 : i32
    return %arg0, %c0_i32, %c0_i32_0 : i32, i32, i32
  }
  func.func @transform_1(%arg0: i32) -> (i32, i32) {
    %c0_i32 = arith.constant 0 : i32
    %c0_i32_0 = arith.constant 0 : i32
    %c0_i32_1 = arith.constant 0 : i32
    return %c0_i32, %c0_i32_0 : i32, i32
  }
  func.func @transform_2(%arg0: i32) -> (i32, i32) {
    %c0_i32 = arith.constant 0 : i32
    %c0_i32_0 = arith.constant 0 : i32
    %c0_i32_1 = arith.constant 0 : i32
    return %c0_i32, %c0_i32_0 : i32, i32
  }
  func.func @transform_3(%arg0: i32) -> (i32, i32) {
    %c0_i32 = arith.constant 0 : i32
    %c0_i32_0 = arith.constant 0 : i32
    %c0_i32_1 = arith.constant 0 : i32
    return %c0_i32, %c0_i32_0 : i32, i32
  }
  func.func @transform_4(%arg0: i32) -> (i32, i32) {
    %c0_i32 = arith.constant 0 : i32
    %c0_i32_0 = arith.constant 0 : i32
    %c0_i32_1 = arith.constant 0 : i32
    return %c0_i32, %c0_i32_0 : i32, i32
  }
  func.func @transform_5(%arg0: i32) -> i32 {
    %c0_i32 = arith.constant 0 : i32
    %c0_i32_0 = arith.constant 0 : i32
    return %c0_i32 : i32
  }
  func.func @transform_6(%arg0: i32) -> (i32, i32, i32) {
    %c0_i32 = arith.constant 0 : i32
    %c0_i32_0 = arith.constant 0 : i32
    %c0_i32_1 = arith.constant 0 : i32
    return %arg0, %c0_i32, %c0_i32_0 : i32, i32, i32
  }
}

</mosaic_0001>

<llo_original>
// kernel: tpu_custom_call.1
$region0: #{tpu_custom_call.1}
  #allocation0 [shape = 'u32[]', space=smem, size = 0x4, offset = 0x4, fixed_abs, tag = 'smem constant byte address 0x4 - core index']
  #allocation1 [shape = 'u32[144,128]{1,0:T(1,128)}', space=vmem, size = 0x12000, scoped, tag = 'internal scratch']
  #allocation2 [shape = 'f32[1]{0:T(128)S(6)}', space=smem, size = 0x200, scoped, tag = 'scoped memory for tpu_custom_call.1']
  %s0 = inlined_call_operand.hbm [shape: f32[2,32,256], index: 0, kind: input, shape index: {}]
  %s1 = inlined_call_operand.vmem [shape: f32[32,2], index: 1, kind: input, shape index: {}]
  %s2 = inlined_call_operand.vmem [shape: f32[2,32], index: 2, kind: input, shape index: {}]
  %s3 = inlined_call_operand.hbm [shape: f32[256,256], index: 3, kind: input, shape index: {}]
  %s4 = inlined_call_operand.hbm [shape: f32[256,256], index: 4, kind: input, shape index: {}]
  %s5 = inlined_call_operand.<no memory space> [shape: f32[1], index: 5, kind: input, shape index: {}]
  %s6 = inlined_call_operand.hbm [shape: f32[2,32,256], index: 6, kind: output, shape index: {}]
  %s7 = sld [smem:[#allocation0]]
  $region69: #{tpu_custom_call.1} parent=0
    _
  %s9 = ssub.s32 1, %s7
  %s10 = scalar_select 0, %s9, %s7
  %11 = sst [smem:[#allocation2]] %s5
  $region1: #{tpu_custom_call.1} parent=0
    #allocation3 [shape = 'u8[65536]{0}', space=vmem, size = 0x10000, scoped, tag = 'input window, operand 0']
    #allocation4 [shape = 's32[2]{0}', space=sflag, size = 0x8, scoped, tag = 'scoped memory for tpu_custom_call.1']
    #allocation5 [shape = 's32[2]{0}', space=sflag, size = 0x8, scoped, tag = 'scoped memory for tpu_custom_call.1']
    #allocation6 [shape = 'u8[262144]{0}', space=vmem, size = 0x40000, scoped, tag = 'input window, operand 3, single buffered']
    #allocation7 [shape = 's32[1]{0}', space=sflag, size = 0x4, scoped, tag = 'scoped memory for tpu_custom_call.1']
    #allocation8 [shape = 'u8[262144]{0}', space=vmem, size = 0x40000, scoped, tag = 'input window, operand 4, single buffered']
    #allocation9 [shape = 'u8[65536]{0}', space=vmem, size = 0x10000, scoped, tag = 'output window, operand 0']
    %12 = vsyncpa [#allocation4], 0
    %s13 = scalar_lea.sflag [#allocation4], 1
    %14 = vsyncpa %s13, 0
    %15 = vsyncpa [#allocation7], 0
    %16 = vsyncpa [#allocation5], 0
    %s17 = scalar_lea.sflag [#allocation5], 1
    %18 = vsyncpa %s17, 0
    loop: start=0, step=1, limit=4
    $region2: #{tpu_custom_call.1} parent=1 // loop_pre_header
      _
    $region3: #{tpu_custom_call.1} parent=1 // loop_header
      %s20 = sphi 0, %s24
      %p21 = scmp.ge.s32.totalorder %s20, 4
      %s30 = sphi 0, %s32
      %s33 = sphi 0, %s30
      %s34 = sphi 0, %s33
      %s50 = sphi 0, %s34
      %s54 = sphi 0, %s54
      %s56 = sphi 0, %s54
      %s57 = sphi 0, %s56
      %s71 = sphi 0, %s57
      %s75 = sphi 0, %s75
      %s77 = sphi 0, %s75
      %s78 = sphi 0, %s77
      %s92 = sphi 0, %s78
      %s96 = sphi 0, %s96
      %s98 = sphi 0, %s96
      %s99 = sphi 0, %s98
      %s113 = sphi 0, %s99
      %s117 = sphi 0, %s117
      %s119 = sphi 0, %s117
      %s120 = sphi 0, %s119
      %s134 = sphi 0, %s120
      %s138 = sphi 0, %s138
      %s140 = sphi 0, %s138
      %s141 = sphi 0, %s140
      %s155 = sphi 0, %s141
      %s161 = sphi 0, %s163
      %s164 = sphi 0, %s161
      %s165 = sphi 0, %s164
      %s181 = sphi 0, %s165
    $region4: #{tpu_custom_call.1} parent=1 // loop_header_branch
      %23 = sbr.rel (%p21) target = $region8
    $region5: #{tpu_custom_call.1} parent=1 // loop_body
      %s25 = ssub.s32 %s20, 1
      %s26 = ssub.s32 %s20, 2
      %s27 = sadd.s32 %s20, 1
      %s28 = ssub.s32 %s20, %s27
      %p29 = scmp.eq.s32.totalorder %s28, 0
      %s31 = sadd.s32 %s30, 1
      %s32 = scalar_select %p29, %s30, %s31
      %p35 = pneg %p29
      %p36 = scmp.eq.s32.totalorder %s20, 1
      %p37 = por %p35, %p36
      %p38 = scmp.ne.s32.totalorder %s30, %s33
      %p39 = scmp.eq.s32.totalorder %s20, 0
      %p40 = por %p38, %p39
      %p41 = scmp.ne.s32.totalorder %s30, %s33
      %p42 = scmp.eq.s32.totalorder %s25, 1
      %p43 = por %p41, %p42
      %p44 = scmp.ne.s32.totalorder %s33, %s34
      %p45 = scmp.eq.s32.totalorder %s25, 0
      %p46 = por %p44, %p45
      %p47 = scmp.ne.s32.totalorder %s33, %s34
      %p48 = scmp.eq.s32.totalorder %s26, 1
      %p49 = por %p47, %p48
      %p51 = scmp.ne.s32.totalorder %s34, %s50
      %p52 = scmp.eq.s32.totalorder %s26, 0
      %p53 = por %p51, %p52
      %s55 = sadd.s32 %s54, 1
      %p58 = scmp.eq.s32.totalorder %s20, 1
      %p59 = scmp.ne.s32.totalorder %s54, %s56
      %p60 = scmp.eq.s32.totalorder %s20, 0
      %p61 = por %p59, %p60
      %p62 = scmp.ne.s32.totalorder %s54, %s56
      %p63 = scmp.eq.s32.totalorder %s25, 1
      %p64 = por %p62, %p63
      %p65 = scmp.ne.s32.totalorder %s56, %s57
      %p66 = scmp.eq.s32.totalorder %s25, 0
      %p67 = por %p65, %p66
      %p68 = scmp.ne.s32.totalorder %s56, %s57
      %p69 = scmp.eq.s32.totalorder %s26, 1
      %p70 = por %p68, %p69
      %p72 = scmp.ne.s32.totalorder %s57, %s71
      %p73 = scmp.eq.s32.totalorder %s26, 0
      %p74 = por %p72, %p73
      %s76 = sadd.s32 %s75, 1
      %p79 = scmp.eq.s32.totalorder %s20, 1
      %p80 = scmp.ne.s32.totalorder %s75, %s77
      %p81 = scmp.eq.s32.totalorder %s20, 0
      %p82 = por %p80, %p81
      %p83 = scmp.ne.s32.totalorder %s75, %s77
      %p84 = scmp.eq.s32.totalorder %s25, 1
      %p85 = por %p83, %p84
      %p86 = scmp.ne.s32.totalorder %s77, %s78
      %p87 = scmp.eq.s32.totalorder %s25, 0
      %p88 = por %p86, %p87
      %p89 = scmp.ne.s32.totalorder %s77, %s78
      %p90 = scmp.eq.s32.totalorder %s26, 1
      %p91 = por %p89, %p90
      %p93 = scmp.ne.s32.totalorder %s78, %s92
      %p94 = scmp.eq.s32.totalorder %s26, 0
      %p95 = por %p93, %p94
      %s97 = sadd.s32 %s96, 1
      %p100 = scmp.eq.s32.totalorder %s20, 1
      %p101 = scmp.ne.s32.totalorder %s96, %s98
      %p102 = scmp.eq.s32.totalorder %s20, 0
      %p103 = por %p101, %p102
      %p104 = scmp.ne.s32.totalorder %s96, %s98
      %p105 = scmp.eq.s32.totalorder %s25, 1
      %p106 = por %p104, %p105
      %p107 = scmp.ne.s32.totalorder %s98, %s99
      %p108 = scmp.eq.s32.totalorder %s25, 0
      %p109 = por %p107, %p108
      %p110 = scmp.ne.s32.totalorder %s98, %s99
      %p111 = scmp.eq.s32.totalorder %s26, 1
      %p112 = por %p110, %p111
      %p114 = scmp.ne.s32.totalorder %s99, %s113
      %p115 = scmp.eq.s32.totalorder %s26, 0
      %p116 = por %p114, %p115
      %s118 = sadd.s32 %s117, 1
      %p121 = scmp.eq.s32.totalorder %s20, 1
      %p122 = scmp.ne.s32.totalorder %s117, %s119
      %p123 = scmp.eq.s32.totalorder %s20, 0
      %p124 = por %p122, %p123
      %p125 = scmp.ne.s32.totalorder %s117, %s119
      %p126 = scmp.eq.s32.totalorder %s25, 1
      %p127 = por %p125, %p126
      %p128 = scmp.ne.s32.totalorder %s119, %s120
      %p129 = scmp.eq.s32.totalorder %s25, 0
      %p130 = por %p128, %p129
      %p131 = scmp.ne.s32.totalorder %s119, %s120
      %p132 = scmp.eq.s32.totalorder %s26, 1
      %p133 = por %p131, %p132
      %p135 = scmp.ne.s32.totalorder %s120, %s134
      %p136 = scmp.eq.s32.totalorder %s26, 0
      %p137 = por %p135, %p136
      %s139 = sadd.s32 %s138, 1
      %p142 = scmp.eq.s32.totalorder %s20, 1
      %p143 = scmp.ne.s32.totalorder %s138, %s140
      %p144 = scmp.eq.s32.totalorder %s20, 0
      %p145 = por %p143, %p144
      %p146 = scmp.ne.s32.totalorder %s138, %s140
      %p147 = scmp.eq.s32.totalorder %s25, 1
      %p148 = por %p146, %p147
      %p149 = scmp.ne.s32.totalorder %s140, %s141
      %p150 = scmp.eq.s32.totalorder %s25, 0
      %p151 = por %p149, %p150
      %p152 = scmp.ne.s32.totalorder %s140, %s141
      %p153 = scmp.eq.s32.totalorder %s26, 1
      %p154 = por %p152, %p153
      %p156 = scmp.ne.s32.totalorder %s141, %s155
      %p157 = scmp.eq.s32.totalorder %s26, 0
      %p158 = por %p156, %p157
      %s159 = ssub.s32 %s20, %s27
      %p160 = scmp.eq.s32.totalorder %s159, 0
      %s162 = sadd.s32 %s161, 1
      %s163 = scalar_select %p160, %s161, %s162
      %p166 = pneg %p160
      %p167 = scmp.eq.s32.totalorder %s20, 1
      %p168 = por %p166, %p167
      %p169 = scmp.ne.s32.totalorder %s161, %s164
      %p170 = scmp.eq.s32.totalorder %s20, 0
      %p171 = por %p169, %p170
      %p172 = scmp.ne.s32.totalorder %s161, %s164
      %p173 = scmp.eq.s32.totalorder %s25, 1
      %p174 = por %p172, %p173
      %p175 = scmp.ne.s32.totalorder %s164, %s165
      %p176 = scmp.eq.s32.totalorder %s25, 0
      %p177 = por %p175, %p176
      %p178 = scmp.ne.s32.totalorder %s164, %s165
      %p179 = scmp.eq.s32.totalorder %s26, 1
      %p180 = por %p178, %p179
      %p182 = scmp.ne.s32.totalorder %s165, %s181
      %p183 = scmp.eq.s32.totalorder %s26, 0
      %p184 = por %p182, %p183
      %p185 = scmp.le.s32.totalorder 1, %s20
      %p186 = scmp.lt.s32.totalorder %s20, 3
      %p187 = pnand %p185, %p186
      %p188 = pneg %p187
      // Predicated region
      $region9: #{tpu_custom_call.1} parent=5 // pred_check
        _
      $region10: #{tpu_custom_call.1} parent=5 // pred_check_branch
        %190 = sbr.rel (%p187) target = $region12
      $region11: #{tpu_custom_call.1} parent=5 // pred_region
        %s191 = ssub.s32 %s20, 1
        // Predicated region
        $region13: #{tpu_custom_call.1} parent=11 // pred_check
          %p192 = pneg %p67
        $region14: #{tpu_custom_call.1} parent=11 // pred_check_branch
          %194 = sbr.rel (%p192) target = $region16
        $region15: #{tpu_custom_call.1} parent=11 // pred_region
          _
        $region16: #{tpu_custom_call.1} parent=11 // pred_fallthru
          _
        // Predicated region
        $region17: #{tpu_custom_call.1} parent=11 // pred_check
          %p195 = pneg %p88
        $region18: #{tpu_custom_call.1} parent=11 // pred_check_branch
          %197 = sbr.rel (%p195) target = $region20
        $region19: #{tpu_custom_call.1} parent=11 // pred_region
          _
        $region20: #{tpu_custom_call.1} parent=11 // pred_fallthru
          _
        // Predicated region
        $region21: #{tpu_custom_call.1} parent=11 // pred_check
          %p198 = pneg %p109
        $region22: #{tpu_custom_call.1} parent=11 // pred_check_branch
          %200 = sbr.rel (%p198) target = $region24
        $region23: #{tpu_custom_call.1} parent=11 // pred_region
          %s202 = ssub.s32 8192, 8192
          %203 = vsyncadd [#allocation7], %s202
          %s204 = sshll.u32 [#allocation6], 4
          %s205 = int_to_ptr.vmem [resolvable:$true] %s204
          %210 = dma.hbm_to_vmem [thread:$0]  %s3, 8192, %s205, [#allocation7], 256, 256, 16
        $region24: #{tpu_custom_call.1} parent=11 // pred_fallthru
          _
        // Predicated region
        $region25: #{tpu_custom_call.1} parent=11 // pred_check
          %p211 = pneg %p130
        $region26: #{tpu_custom_call.1} parent=11 // pred_check_branch
          %213 = sbr.rel (%p211) target = $region28
        $region27: #{tpu_custom_call.1} parent=11 // pred_region
          %s215 = ssub.s32 8192, 8192
          %216 = vsyncadd [#allocation7], %s215
          %s217 = sshll.u32 [#allocation8], 4
          %s218 = int_to_ptr.vmem [resolvable:$true] %s217
          %223 = dma.hbm_to_vmem [thread:$0]  %s4, 8192, %s218, [#allocation7], 256, 256, 16
        $region28: #{tpu_custom_call.1} parent=11 // pred_fallthru
          _
        // Predicated region
        $region29: #{tpu_custom_call.1} parent=11 // pred_check
          %p224 = pneg %p151
        $region30: #{tpu_custom_call.1} parent=11 // pred_check_branch
          %226 = sbr.rel (%p224) target = $region32
        $region31: #{tpu_custom_call.1} parent=11 // pred_region
          _
        $region32: #{tpu_custom_call.1} parent=11 // pred_fallthru
          _
      $region12: #{tpu_custom_call.1} parent=5 // pred_fallthru
        _
      %p227 = scmp.lt.s32.totalorder %s20, 2
      // Predicated region
      $region33: #{tpu_custom_call.1} parent=5 // pred_check
        %p228 = pneg %p227
      $region34: #{tpu_custom_call.1} parent=5 // pred_check_branch
        %230 = sbr.rel (%p228) target = $region36
      $region35: #{tpu_custom_call.1} parent=5 // pred_region
        // Predicated region
        $region37: #{tpu_custom_call.1} parent=35 // pred_check
          %p231 = pneg %p40
        $region38: #{tpu_custom_call.1} parent=35 // pred_check_branch
          %233 = sbr.rel (%p231) target = $region40
        $region39: #{tpu_custom_call.1} parent=35 // pred_region
          %s234 = sand.u32 %s30, 1
          %s235 = scalar_lea.sflag [#allocation4], %s234
          %s236 = sand.u32 %s30, 1
          %s237 = smul.addr %s236, 64
          %s238 = scalar_lea.vmem [#allocation3], %s237
          %s240 = ssub.s32 1024, 1024
          %241 = vsyncadd %s235, %s240
          %s242 = smul.addr %s20, 8
          %s243 = smul.addr %s242, 128
          %s244 = scalar_lea.hbm %s0, %s243
          %s245 = sshll.u32 %s238, 4
          %s246 = int_to_ptr.vmem [resolvable:$true] %s245
          %251 = dma.hbm_to_vmem [thread:$0]  %s244, 1024, %s246, %s235, 256, 256, 16
        $region40: #{tpu_custom_call.1} parent=35 // pred_fallthru
          _
      $region36: #{tpu_custom_call.1} parent=5 // pred_fallthru
        _
      %p252 = scmp.le.s32.totalorder 1, %s20
      %p253 = scmp.lt.s32.totalorder %s20, 3
      %p254 = pnand %p252, %p253
      %p255 = pneg %p254
      // Predicated region
      $region41: #{tpu_custom_call.1} parent=5 // pred_check
        _
      $region42: #{tpu_custom_call.1} parent=5 // pred_check_branch
        %257 = sbr.rel (%p254) target = $region44
      $region43: #{tpu_custom_call.1} parent=5 // pred_region
        %s258 = ssub.s32 %s20, 1
        %s259 = sand.u32 %s33, 1
        %s260 = scalar_lea.sflag [#allocation4], %s259
        %s261 = sand.u32 %s33, 1
        %s262 = smul.addr %s261, 64
        %s263 = scalar_lea.vmem [#allocation3], %s262
        // Predicated region
        $region45: #{tpu_custom_call.1} parent=43 // pred_check
          %p264 = pneg %p46
        $region46: #{tpu_custom_call.1} parent=43 // pred_check_branch
          %266 = sbr.rel (%p264) target = $region48
        $region47: #{tpu_custom_call.1} parent=43 // pred_region
          %267 = dma.done %s260, 1024
        $region48: #{tpu_custom_call.1} parent=43 // pred_fallthru
          _
        // Predicated region
        $region49: #{tpu_custom_call.1} parent=43 // pred_check
          %p268 = pneg %p109
        $region50: #{tpu_custom_call.1} parent=43 // pred_check_branch
          %270 = sbr.rel (%p268) target = $region52
        $region51: #{tpu_custom_call.1} parent=43 // pred_region
          %271 = dma.done [#allocation7], 8192
        $region52: #{tpu_custom_call.1} parent=43 // pred_fallthru
          _
        // Predicated region
        $region53: #{tpu_custom_call.1} parent=43 // pred_check
          %p272 = pneg %p130
        $region54: #{tpu_custom_call.1} parent=43 // pred_check_branch
          %274 = sbr.rel (%p272) target = $region56
        $region55: #{tpu_custom_call.1} parent=43 // pred_region
          %275 = dma.done [#allocation7], 8192
        $region56: #{tpu_custom_call.1} parent=43 // pred_fallthru
          _
        %s276 = sand.u32 %s33, 1
        %s277 = scalar_lea.sflag [#allocation4], %s276
        %s278 = sand.u32 %s33, 1
        %s279 = smul.addr %s278, 64
        %s280 = scalar_lea.vmem [#allocation3], %s279
        %p281 = pneg %p46
        %p282 = pneg %p43
        %p283 = pneg %p67
        %p284 = pneg %p64
        %p285 = pneg %p88
        %p286 = pneg %p85
        %p287 = pneg %p109
        %p288 = pneg %p106
        %p289 = pneg %p130
        %p290 = pneg %p127
        %p291 = pneg %p151
        %p292 = pneg %p148
        %p293 = pneg %p177
        %p294 = pneg %p174
        %s295 = sand.u32 %s164, 1
        %s296 = scalar_lea.sflag [#allocation5], %s295
        %s297 = sand.u32 %s164, 1
        %s298 = smul.addr %s297, 64
        %s299 = scalar_lea.vmem [#allocation9], %s298
        %v300 = vld [vmem:[%s263] sm:$0xff]
        %v301 = vld [vmem:[%s263 + $0x8] sm:$0xff]
        %v302 = vld [vmem:[%s263 + $0x10] sm:$0xff]
        %v303 = vld [vmem:[%s263 + $0x18] sm:$0xff]
        %v304 = vld [vmem:[%s263 + $0x20] sm:$0xff]
        %v305 = vld [vmem:[%s263 + $0x28] sm:$0xff]
        %v306 = vld [vmem:[%s263 + $0x30] sm:$0xff]
        %v307 = vld [vmem:[%s263 + $0x38] sm:$0xff]
        %v308 = vadd.f32 %v300, %v301
        %309 = vadd.xlane.f32.xlu0 %v308
        %v310 = vpop.xlane.xlu0 %309
        %v311 = vadd.f32 %v302, %v303
        %312 = vadd.xlane.f32.xlu0 %v311
        %v313 = vpop.xlane.xlu0 %312
        %v314 = vadd.f32 %v304, %v305
        %315 = vadd.xlane.f32.xlu0 %v314
        %v316 = vpop.xlane.xlu0 %315
        %v317 = vadd.f32 %v306, %v307
        %318 = vadd.xlane.f32.xlu0 %v317
        %v319 = vpop.xlane.xlu0 %318
        %v320 = vrcp.pop 256.0
        %v321 = vmul.f32 %v310, %v320
        %v322 = vmul.f32 %v313, %v320
        %v323 = vmul.f32 %v316, %v320
        %v324 = vmul.f32 %v319, %v320
        %v325 = vmax.f32 %v300, %v301
        %326 = vmax.xlane.f32.xlu0 %v325
        %v327 = vpop.xlane.xlu0 %326
        %v328 = vmax.f32 %v302, %v303
        %329 = vmax.xlane.f32.xlu0 %v328
        %v330 = vpop.xlane.xlu0 %329
        %v331 = vmax.f32 %v304, %v305
        %332 = vmax.xlane.f32.xlu0 %v331
        %v333 = vpop.xlane.xlu0 %332
        %v334 = vmax.f32 %v306, %v307
        %335 = vmax.xlane.f32.xlu0 %v334
        %v336 = vpop.xlane.xlu0 %335
        %v341 = vlaneseq
        %v342 = vand.u32 %v341, 127
        %v343 = vlaneseq
        %v344 = vshrl.u32 %v343, 7
        %v345 = vsub.s32 %v342, %v344
        %v346 = vrot.slane %v321, %v345
        %v347 = vadd.s32 %v342, 4294967288
        %v348 = vlaneseq
        %v349 = vshrl.u32 %v348, 7
        %v350 = vsub.s32 %v347, %v349
        %v351 = vrot.slane %v322, %v350
        %vm352 = vcmask 130112
        %v353 = vsel %vm352, %v351, %v346
        %v354 = vadd.s32 %v342, 4294967280
        %v355 = vlaneseq
        %v356 = vshrl.u32 %v355, 7
        %v357 = vsub.s32 %v354, %v356
        %v358 = vrot.slane %v323, %v357
        %vm359 = vcmask 195712
        %v360 = vsel %vm359, %v358, %v353
        %v361 = vadd.s32 %v342, 4294967272
        %v362 = vlaneseq
        %v363 = vshrl.u32 %v362, 7
        %v364 = vsub.s32 %v361, %v363
        %v365 = vrot.slane %v324, %v364
        %vm366 = vcmask 261312
        %v367 = vsel %vm366, %v365, %v360
        %v373 = vlaneseq
        %v374 = vshrl.u32 %v373, 7
        %v375 = vsub.s32 %v342, %v374
        %v376 = vrot.slane %v327, %v375
        %v377 = vlaneseq
        %v378 = vshrl.u32 %v377, 7
        %v379 = vsub.s32 %v347, %v378
        %v380 = vrot.slane %v330, %v379
        %v381 = vsel %vm352, %v380, %v376
        %v382 = vlaneseq
        %v383 = vshrl.u32 %v382, 7
        %v384 = vsub.s32 %v354, %v383
        %v385 = vrot.slane %v333, %v384
        %v386 = vsel %vm359, %v385, %v381
        %v387 = vlaneseq
        %v388 = vshrl.u32 %v387, 7
        %v389 = vsub.s32 %v361, %v388
        %v390 = vrot.slane %v336, %v389
        %v391 = vsel %vm366, %v390, %v386
        %vm393 = vcmask 1040384
        %v394 = vsel %vm393, %v367, %v391
        %v395 = vld [vmem:[%s1] sm:$0xff]
        %v396 = vld [vmem:[%s1 + $0x8] sm:$0xff]
        %v397 = vld [vmem:[%s1 + $0x10] sm:$0xff]
        %v398 = vld [vmem:[%s1 + $0x18] sm:$0xff]
        %vm399 = vcmask 261120
        %v401 = vsel %vm399, %v394, 0
        %403 = vmatprep.subr.mxu0 0.0
        %404 = vmatpush1.msra.mxu0 0.0
        %405 = vmatprep.subr.mxu0 0.0
        %406 = vmatpush1.msra.mxu0 0.0
        %407 = vmatprep.subr.mxu0 0.0
        %408 = vmatpush1.msra.mxu0 0.0
        %409 = vmatprep.subr.mxu0 0.0
        %410 = vmatpush1.msra.mxu0 0.0
        %411 = vmatprep.subr.mxu0 0.0
        %412 = vmatpush1.msra.mxu0 0.0
        %413 = vmatprep.subr.mxu0 0.0
        %414 = vmatpush1.msra.mxu0 0.0
        %415 = vmatprep.subr.mxu0 0.0
        %416 = vmatpush1.msra.mxu0 0.0
        %417 = vmatprep.subr.mxu0 0.0
        %418 = vmatpush1.msra.mxu0 0.0
        %419 = vmatprep.subr.mxu0 0.0
        %420 = vmatpush1.msra.mxu0 0.0
        %421 = vmatprep.subr.mxu0 0.0
        %422 = vmatpush1.msra.mxu0 0.0
        %423 = vmatprep.subr.mxu0 0.0
        %424 = vmatpush1.msra.mxu0 0.0
        %425 = vmatprep.subr.mxu0 0.0
        %426 = vmatpush1.msra.mxu0 0.0
        %427 = vmatprep.subr.mxu0 0.0
        %v428 = vand.u32 %v398, 4294901760
        %429 = vmatpush1.msra.mxu0 %v428
        %430 = vmatprep.subr.mxu0 0.0
        %v431 = vand.u32 %v397, 4294901760
        %432 = vmatpush1.msra.mxu0 %v431
        %433 = vmatprep.subr.mxu0 0.0
        %v434 = vand.u32 %v396, 4294901760
        %435 = vmatpush1.msra.mxu0 %v434
        %436 = vmatprep.subr.mxu0 0.0
        %v437 = vand.u32 %v395, 4294901760
        %438 = vmatpush1.msra.mxu0 %v437
        %439 = vmatprep.subr.mxu0 0.0
        %440 = vmatpush2.msra.mxu0 0.0
        %441 = vmatprep.subr.mxu0 0.0
        %442 = vmatpush2.msra.mxu0 0.0
        %443 = vmatprep.subr.mxu0 0.0
        %444 = vmatpush2.msra.mxu0 0.0
        %445 = vmatprep.subr.mxu0 0.0
        %446 = vmatpush2.msra.mxu0 0.0
        %447 = vmatprep.subr.mxu0 0.0
        %448 = vmatpush2.msra.mxu0 0.0
        %449 = vmatprep.subr.mxu0 0.0
        %450 = vmatpush2.msra.mxu0 0.0
        %451 = vmatprep.subr.mxu0 0.0
        %452 = vmatpush2.msra.mxu0 0.0
        %453 = vmatprep.subr.mxu0 0.0
        %454 = vmatpush2.msra.mxu0 0.0
        %455 = vmatprep.subr.mxu0 0.0
        %456 = vmatpush2.msra.mxu0 0.0
        %457 = vmatprep.subr.mxu0 0.0
        %458 = vmatpush2.msra.mxu0 0.0
        %459 = vmatprep.subr.mxu0 0.0
        %460 = vmatpush2.msra.mxu0 0.0
        %461 = vmatprep.subr.mxu0 0.0
        %462 = vmatpush2.msra.mxu0 0.0
        %463 = vmatprep.subr.mxu0 0.0
        %464 = vmatpush2.msra.mxu0 0.0
        %465 = vmatprep.subr.mxu0 0.0
        %466 = vmatpush2.msra.mxu0 0.0
        %467 = vmatprep.subr.mxu0 0.0
        %468 = vmatpush2.msra.mxu0 0.0
        %469 = vmatprep.subr.mxu0 0.0
        %470 = vmatpush2.msra.mxu0 0.0
        %471 = vmatprep.mubr.f32.mxu0 0.0
        %v472 = vand.u32 %v401, 4294901760
        %v473 = vsub.f32 %v401, %v472
        %v474 = vand.u32 %v473, 4294901760
        %v475 = vsub.f32 %v473, %v474
        %v476 = vand.u32 %v475, 4294901760
        %477 = vmatmul.mubr.f32.gmra.mxu0 %v476
        %v478 = vpop.f32.mrf.mxu0
        %v479 = vadd.f32 0.0, %v478
        %v480 = vpop.f32.mrf.mxu0
        %481 = vdwg.mxu0
        %482 = vmatprep.subr.mxu0 0.0
        %483 = vmatpush1.msra.mxu0 0.0
        %484 = vmatprep.subr.mxu0 0.0
        %485 = vmatpush1.msra.mxu0 0.0
        %486 = vmatprep.subr.mxu0 0.0
        %487 = vmatpush1.msra.mxu0 0.0
        %488 = vmatprep.subr.mxu0 0.0
        %489 = vmatpush1.msra.mxu0 0.0
        %490 = vmatprep.subr.mxu0 0.0
        %491 = vmatpush1.msra.mxu0 0.0
        %492 = vmatprep.subr.mxu0 0.0
        %493 = vmatpush1.msra.mxu0 0.0
        %494 = vmatprep.subr.mxu0 0.0
        %495 = vmatpush1.msra.mxu0 0.0
        %496 = vmatprep.subr.mxu0 0.0
        %497 = vmatpush1.msra.mxu0 0.0
        %498 = vmatprep.subr.mxu0 0.0
        %499 = vmatpush1.msra.mxu0 0.0
        %500 = vmatprep.subr.mxu0 0.0
        %501 = vmatpush1.msra.mxu0 0.0
        %502 = vmatprep.subr.mxu0 0.0
        %503 = vmatpush1.msra.mxu0 0.0
        %504 = vmatprep.subr.mxu0 0.0
        %505 = vmatpush1.msra.mxu0 0.0
        %506 = vmatprep.subr.mxu0 0.0
        %v507 = vand.u32 %v398, 4294901760
        %v508 = vsub.f32 %v398, %v507
        %v509 = vand.u32 %v508, 4294901760
        %v510 = vsub.f32 %v508, %v509
        %v511 = vand.u32 %v510, 4294901760
        %512 = vmatpush1.msra.mxu0 %v511
        %513 = vmatprep.subr.mxu0 0.0
        %v514 = vand.u32 %v397, 4294901760
        %v515 = vsub.f32 %v397, %v514
        %v516 = vand.u32 %v515, 4294901760
        %v517 = vsub.f32 %v515, %v516
        %v518 = vand.u32 %v517, 4294901760
        %519 = vmatpush1.msra.mxu0 %v518
        %520 = vmatprep.subr.mxu0 0.0
        %v521 = vand.u32 %v396, 4294901760
        %v522 = vsub.f32 %v396, %v521
        %v523 = vand.u32 %v522, 4294901760
        %v524 = vsub.f32 %v522, %v523
        %v525 = vand.u32 %v524, 4294901760
        %526 = vmatpush1.msra.mxu0 %v525
        %527 = vmatprep.subr.mxu0 0.0
        %v528 = vand.u32 %v395, 4294901760
        %v529 = vsub.f32 %v395, %v528
        %v530 = vand.u32 %v529, 4294901760
        %v531 = vsub.f32 %v529, %v530
        %v532 = vand.u32 %v531, 4294901760
        %533 = vmatpush1.msra.mxu0 %v532
        %534 = vmatprep.subr.mxu0 0.0
        %535 = vmatpush2.msra.mxu0 0.0
        %536 = vmatprep.subr.mxu0 0.0
        %537 = vmatpush2.msra.mxu0 0.0
        %538 = vmatprep.subr.mxu0 0.0
        %539 = vmatpush2.msra.mxu0 0.0
        %540 = vmatprep.subr.mxu0 0.0
        %541 = vmatpush2.msra.mxu0 0.0
        %542 = vmatprep.subr.mxu0 0.0
        %543 = vmatpush2.msra.mxu0 0.0
        %544 = vmatprep.subr.mxu0 0.0
        %545 = vmatpush2.msra.mxu0 0.0
        %546 = vmatprep.subr.mxu0 0.0
        %547 = vmatpush2.msra.mxu0 0.0
        %548 = vmatprep.subr.mxu0 0.0
        %549 = vmatpush2.msra.mxu0 0.0
        %550 = vmatprep.subr.mxu0 0.0
        %551 = vmatpush2.msra.mxu0 0.0
        %552 = vmatprep.subr.mxu0 0.0
        %553 = vmatpush2.msra.mxu0 0.0
        %554 = vmatprep.subr.mxu0 0.0
        %555 = vmatpush2.msra.mxu0 0.0
        %556 = vmatprep.subr.mxu0 0.0
        %557 = vmatpush2.msra.mxu0 0.0
        %558 = vmatprep.subr.mxu0 0.0
        %559 = vmatpush2.msra.mxu0 0.0
        %560 = vmatprep.subr.mxu0 0.0
        %561 = vmatpush2.msra.mxu0 0.0
        %562 = vmatprep.subr.mxu0 0.0
        %563 = vmatpush2.msra.mxu0 0.0
        %564 = vmatprep.subr.mxu0 0.0
        %565 = vmatpush2.msra.mxu0 0.0
        %566 = vmatprep.mubr.f32.mxu0 0.0
        %v567 = vand.u32 %v401, 4294901760
        %568 = vmatmul.mubr.f32.gmra.mxu0 %v567
        %v569 = vpop.f32.mrf.mxu0
        %v570 = vadd.f32 %v479, %v569
        %v571 = vpop.f32.mrf.mxu0
        %572 = vdwg.mxu0
        %573 = vmatprep.subr.mxu0 0.0
        %574 = vmatpush1.msra.mxu0 0.0
        %575 = vmatprep.subr.mxu0 0.0
        %576 = vmatpush1.msra.mxu0 0.0
        %577 = vmatprep.subr.mxu0 0.0
        %578 = vmatpush1.msra.mxu0 0.0
        %579 = vmatprep.subr.mxu0 0.0
        %580 = vmatpush1.msra.mxu0 0.0
        %581 = vmatprep.subr.mxu0 0.0
        %582 = vmatpush1.msra.mxu0 0.0
        %583 = vmatprep.subr.mxu0 0.0
        %584 = vmatpush1.msra.mxu0 0.0
        %585 = vmatprep.subr.mxu0 0.0
        %586 = vmatpush1.msra.mxu0 0.0
        %587 = vmatprep.subr.mxu0 0.0
        %588 = vmatpush1.msra.mxu0 0.0
        %589 = vmatprep.subr.mxu0 0.0
        %590 = vmatpush1.msra.mxu0 0.0
        %591 = vmatprep.subr.mxu0 0.0
        %592 = vmatpush1.msra.mxu0 0.0
        %593 = vmatprep.subr.mxu0 0.0
        %594 = vmatpush1.msra.mxu0 0.0
        %595 = vmatprep.subr.mxu0 0.0
        %596 = vmatpush1.msra.mxu0 0.0
        %597 = vmatprep.subr.mxu0 0.0
        %v598 = vand.u32 %v398, 4294901760
        %v599 = vsub.f32 %v398, %v598
        %600 = vmatpush1.msra.mxu0 %v599
        %601 = vmatprep.subr.mxu0 0.0
        %v602 = vand.u32 %v397, 4294901760
        %v603 = vsub.f32 %v397, %v602
        %604 = vmatpush1.msra.mxu0 %v603
        %605 = vmatprep.subr.mxu0 0.0
        %v606 = vand.u32 %v396, 4294901760
        %v607 = vsub.f32 %v396, %v606
        %608 = vmatpush1.msra.mxu0 %v607
        %609 = vmatprep.subr.mxu0 0.0
        %v610 = vand.u32 %v395, 4294901760
        %v611 = vsub.f32 %v395, %v610
        %612 = vmatpush1.msra.mxu0 %v611
        %613 = vmatprep.subr.mxu0 0.0
        %614 = vmatpush2.msra.mxu0 0.0
        %615 = vmatprep.subr.mxu0 0.0
        %616 = vmatpush2.msra.mxu0 0.0
        %617 = vmatprep.subr.mxu0 0.0
        %618 = vmatpush2.msra.mxu0 0.0
        %619 = vmatprep.subr.mxu0 0.0
        %620 = vmatpush2.msra.mxu0 0.0
        %621 = vmatprep.subr.mxu0 0.0
        %622 = vmatpush2.msra.mxu0 0.0
        %623 = vmatprep.subr.mxu0 0.0
        %624 = vmatpush2.msra.mxu0 0.0
        %625 = vmatprep.subr.mxu0 0.0
        %626 = vmatpush2.msra.mxu0 0.0
        %627 = vmatprep.subr.mxu0 0.0
        %628 = vmatpush2.msra.mxu0 0.0
        %629 = vmatprep.subr.mxu0 0.0
        %630 = vmatpush2.msra.mxu0 0.0
        %631 = vmatprep.subr.mxu0 0.0
        %632 = vmatpush2.msra.mxu0 0.0
        %633 = vmatprep.subr.mxu0 0.0
        %634 = vmatpush2.msra.mxu0 0.0
        %635 = vmatprep.subr.mxu0 0.0
        %636 = vmatpush2.msra.mxu0 0.0
        %637 = vmatprep.subr.mxu0 0.0
        %638 = vmatpush2.msra.mxu0 0.0
        %639 = vmatprep.subr.mxu0 0.0
        %640 = vmatpush2.msra.mxu0 0.0
        %641 = vmatprep.subr.mxu0 0.0
        %642 = vmatpush2.msra.mxu0 0.0
        %643 = vmatprep.subr.mxu0 0.0
        %644 = vmatpush2.msra.mxu0 0.0
        %645 = vmatprep.mubr.f32.mxu0 0.0
        %v646 = vand.u32 %v401, 4294901760
        %v647 = vsub.f32 %v401, %v646
        %648 = vmatmul.mubr.f32.gmra.mxu0 %v647
        %v649 = vpop.f32.mrf.mxu0
        %v650 = vadd.f32 %v570, %v649
        %v651 = vpop.f32.mrf.mxu0
        %652 = vdwg.mxu0
        %653 = vmatprep.subr.mxu0 0.0
        %654 = vmatpush1.msra.mxu0 0.0
        %655 = vmatprep.subr.mxu0 0.0
        %656 = vmatpush1.msra.mxu0 0.0
        %657 = vmatprep.subr.mxu0 0.0
        %658 = vmatpush1.msra.mxu0 0.0
        %659 = vmatprep.subr.mxu0 0.0
        %660 = vmatpush1.msra.mxu0 0.0
        %661 = vmatprep.subr.mxu0 0.0
        %662 = vmatpush1.msra.mxu0 0.0
        %663 = vmatprep.subr.mxu0 0.0
        %664 = vmatpush1.msra.mxu0 0.0
        %665 = vmatprep.subr.mxu0 0.0
        %666 = vmatpush1.msra.mxu0 0.0
        %667 = vmatprep.subr.mxu0 0.0
        %668 = vmatpush1.msra.mxu0 0.0
        %669 = vmatprep.subr.mxu0 0.0
        %670 = vmatpush1.msra.mxu0 0.0
        %671 = vmatprep.subr.mxu0 0.0
        %672 = vmatpush1.msra.mxu0 0.0
        %673 = vmatprep.subr.mxu0 0.0
        %674 = vmatpush1.msra.mxu0 0.0
        %675 = vmatprep.subr.mxu0 0.0
        %676 = vmatpush1.msra.mxu0 0.0
        %677 = vmatprep.subr.mxu0 0.0
        %v678 = vand.u32 %v398, 4294901760
        %679 = vmatpush1.msra.mxu0 %v678
        %680 = vmatprep.subr.mxu0 0.0
        %v681 = vand.u32 %v397, 4294901760
        %682 = vmatpush1.msra.mxu0 %v681
        %683 = vmatprep.subr.mxu0 0.0
        %v684 = vand.u32 %v396, 4294901760
        %685 = vmatpush1.msra.mxu0 %v684
        %686 = vmatprep.subr.mxu0 0.0
        %v687 = vand.u32 %v395, 4294901760
        %688 = vmatpush1.msra.mxu0 %v687
        %689 = vmatprep.subr.mxu0 0.0
        %690 = vmatpush2.msra.mxu0 0.0
        %691 = vmatprep.subr.mxu0 0.0
        %692 = vmatpush2.msra.mxu0 0.0
        %693 = vmatprep.subr.mxu0 0.0
        %694 = vmatpush2.msra.mxu0 0.0
        %695 = vmatprep.subr.mxu0 0.0
        %696 = vmatpush2.msra.mxu0 0.0
        %697 = vmatprep.subr.mxu0 0.0
        %698 = vmatpush2.msra.mxu0 0.0
        %699 = vmatprep.subr.mxu0 0.0
        %700 = vmatpush2.msra.mxu0 0.0
        %701 = vmatprep.subr.mxu0 0.0
        %702 = vmatpush2.msra.mxu0 0.0
        %703 = vmatprep.subr.mxu0 0.0
        %704 = vmatpush2.msra.mxu0 0.0
        %705 = vmatprep.subr.mxu0 0.0
        %706 = vmatpush2.msra.mxu0 0.0
        %707 = vmatprep.subr.mxu0 0.0
        %708 = vmatpush2.msra.mxu0 0.0
        %709 = vmatprep.subr.mxu0 0.0
        %710 = vmatpush2.msra.mxu0 0.0
        %711 = vmatprep.subr.mxu0 0.0
        %712 = vmatpush2.msra.mxu0 0.0
        %713 = vmatprep.subr.mxu0 0.0
        %714 = vmatpush2.msra.mxu0 0.0
        %715 = vmatprep.subr.mxu0 0.0
        %716 = vmatpush2.msra.mxu0 0.0
        %717 = vmatprep.subr.mxu0 0.0
        %718 = vmatpush2.msra.mxu0 0.0
        %719 = vmatprep.subr.mxu0 0.0
        %720 = vmatpush2.msra.mxu0 0.0
        %721 = vmatprep.mubr.f32.mxu0 0.0
        %v722 = vand.u32 %v401, 4294901760
        %v723 = vsub.f32 %v401, %v722
        %v724 = vand.u32 %v723, 4294901760
        %725 = vmatmul.mubr.f32.gmra.mxu0 %v724
        %v726 = vpop.f32.mrf.mxu0
        %v727 = vadd.f32 %v650, %v726
        %v728 = vpop.f32.mrf.mxu0
        %729 = vdwg.mxu0
        %730 = vmatprep.subr.mxu0 0.0
        %731 = vmatpush1.msra.mxu0 0.0
        %732 = vmatprep.subr.mxu0 0.0
        %733 = vmatpush1.msra.mxu0 0.0
        %734 = vmatprep.subr.mxu0 0.0
        %735 = vmatpush1.msra.mxu0 0.0
        %736 = vmatprep.subr.mxu0 0.0
        %737 = vmatpush1.msra.mxu0 0.0
        %738 = vmatprep.subr.mxu0 0.0
        %739 = vmatpush1.msra.mxu0 0.0
        %740 = vmatprep.subr.mxu0 0.0
        %741 = vmatpush1.msra.mxu0 0.0
        %742 = vmatprep.subr.mxu0 0.0
        %743 = vmatpush1.msra.mxu0 0.0
        %744 = vmatprep.subr.mxu0 0.0
        %745 = vmatpush1.msra.mxu0 0.0
        %746 = vmatprep.subr.mxu0 0.0
        %747 = vmatpush1.msra.mxu0 0.0
        %748 = vmatprep.subr.mxu0 0.0
        %749 = vmatpush1.msra.mxu0 0.0
        %750 = vmatprep.subr.mxu0 0.0
        %751 = vmatpush1.msra.mxu0 0.0
        %752 = vmatprep.subr.mxu0 0.0
        %753 = vmatpush1.msra.mxu0 0.0
        %754 = vmatprep.subr.mxu0 0.0
        %v755 = vand.u32 %v398, 4294901760
        %v756 = vsub.f32 %v398, %v755
        %v757 = vand.u32 %v756, 4294901760
        %758 = vmatpush1.msra.mxu0 %v757
        %759 = vmatprep.subr.mxu0 0.0
        %v760 = vand.u32 %v397, 4294901760
        %v761 = vsub.f32 %v397, %v760
        %v762 = vand.u32 %v761, 4294901760
        %763 = vmatpush1.msra.mxu0 %v762
        %764 = vmatprep.subr.mxu0 0.0
        %v765 = vand.u32 %v396, 4294901760
        %v766 = vsub.f32 %v396, %v765
        %v767 = vand.u32 %v766, 4294901760
        %768 = vmatpush1.msra.mxu0 %v767
        %769 = vmatprep.subr.mxu0 0.0
        %v770 = vand.u32 %v395, 4294901760
        %v771 = vsub.f32 %v395, %v770
        %v772 = vand.u32 %v771, 4294901760
        %773 = vmatpush1.msra.mxu0 %v772
        %774 = vmatprep.subr.mxu0 0.0
        %775 = vmatpush2.msra.mxu0 0.0
        %776 = vmatprep.subr.mxu0 0.0
        %777 = vmatpush2.msra.mxu0 0.0
        %778 = vmatprep.subr.mxu0 0.0
        %779 = vmatpush2.msra.mxu0 0.0
        %780 = vmatprep.subr.mxu0 0.0
        %781 = vmatpush2.msra.mxu0 0.0
        %782 = vmatprep.subr.mxu0 0.0
        %783 = vmatpush2.msra.mxu0 0.0
        %784 = vmatprep.subr.mxu0 0.0
        %785 = vmatpush2.msra.mxu0 0.0
        %786 = vmatprep.subr.mxu0 0.0
        %787 = vmatpush2.msra.mxu0 0.0
        %788 = vmatprep.subr.mxu0 0.0
        %789 = vmatpush2.msra.mxu0 0.0
        %790 = vmatprep.subr.mxu0 0.0
        %791 = vmatpush2.msra.mxu0 0.0
        %792 = vmatprep.subr.mxu0 0.0
        %793 = vmatpush2.msra.mxu0 0.0
        %794 = vmatprep.subr.mxu0 0.0
        %795 = vmatpush2.msra.mxu0 0.0
        %796 = vmatprep.subr.mxu0 0.0
        %797 = vmatpush2.msra.mxu0 0.0
        %798 = vmatprep.subr.mxu0 0.0
        %799 = vmatpush2.msra.mxu0 0.0
        %800 = vmatprep.subr.mxu0 0.0
        %801 = vmatpush2.msra.mxu0 0.0
        %802 = vmatprep.subr.mxu0 0.0
        %803 = vmatpush2.msra.mxu0 0.0
        %804 = vmatprep.subr.mxu0 0.0
        %805 = vmatpush2.msra.mxu0 0.0
        %806 = vmatprep.mubr.f32.mxu0 0.0
        %v807 = vand.u32 %v401, 4294901760
        %808 = vmatmul.mubr.f32.gmra.mxu0 %v807
        %v809 = vpop.f32.mrf.mxu0
        %v810 = vadd.f32 %v727, %v809
        %v811 = vpop.f32.mrf.mxu0
        %812 = vdwg.mxu0
        %813 = vmatprep.subr.mxu0 0.0
        %814 = vmatpush1.msra.mxu0 0.0
        %815 = vmatprep.subr.mxu0 0.0
        %816 = vmatpush1.msra.mxu0 0.0
        %817 = vmatprep.subr.mxu0 0.0
        %818 = vmatpush1.msra.mxu0 0.0
        %819 = vmatprep.subr.mxu0 0.0
        %820 = vmatpush1.msra.mxu0 0.0
        %821 = vmatprep.subr.mxu0 0.0
        %822 = vmatpush1.msra.mxu0 0.0
        %823 = vmatprep.subr.mxu0 0.0
        %824 = vmatpush1.msra.mxu0 0.0
        %825 = vmatprep.subr.mxu0 0.0
        %826 = vmatpush1.msra.mxu0 0.0
        %827 = vmatprep.subr.mxu0 0.0
        %828 = vmatpush1.msra.mxu0 0.0
        %829 = vmatprep.subr.mxu0 0.0
        %830 = vmatpush1.msra.mxu0 0.0
        %831 = vmatprep.subr.mxu0 0.0
        %832 = vmatpush1.msra.mxu0 0.0
        %833 = vmatprep.subr.mxu0 0.0
        %834 = vmatpush1.msra.mxu0 0.0
        %835 = vmatprep.subr.mxu0 0.0
        %836 = vmatpush1.msra.mxu0 0.0
        %837 = vmatprep.subr.mxu0 0.0
        %v838 = vand.u32 %v398, 4294901760
        %839 = vmatpush1.msra.mxu0 %v838
        %840 = vmatprep.subr.mxu0 0.0
        %v841 = vand.u32 %v397, 4294901760
        %842 = vmatpush1.msra.mxu0 %v841
        %843 = vmatprep.subr.mxu0 0.0
        %v844 = vand.u32 %v396, 4294901760
        %845 = vmatpush1.msra.mxu0 %v844
        %846 = vmatprep.subr.mxu0 0.0
        %v847 = vand.u32 %v395, 4294901760
        %848 = vmatpush1.msra.mxu0 %v847
        %849 = vmatprep.subr.mxu0 0.0
        %850 = vmatpush2.msra.mxu0 0.0
        %851 = vmatprep.subr.mxu0 0.0
        %852 = vmatpush2.msra.mxu0 0.0
        %853 = vmatprep.subr.mxu0 0.0
        %854 = vmatpush2.msra.mxu0 0.0
        %855 = vmatprep.subr.mxu0 0.0
        %856 = vmatpush2.msra.mxu0 0.0
        %857 = vmatprep.subr.mxu0 0.0
        %858 = vmatpush2.msra.mxu0 0.0
        %859 = vmatprep.subr.mxu0 0.0
        %860 = vmatpush2.msra.mxu0 0.0
        %861 = vmatprep.subr.mxu0 0.0
        %862 = vmatpush2.msra.mxu0 0.0
        %863 = vmatprep.subr.mxu0 0.0
        %864 = vmatpush2.msra.mxu0 0.0
        %865 = vmatprep.subr.mxu0 0.0
        %866 = vmatpush2.msra.mxu0 0.0
        %867 = vmatprep.subr.mxu0 0.0
        %868 = vmatpush2.msra.mxu0 0.0
        %869 = vmatprep.subr.mxu0 0.0
        %870 = vmatpush2.msra.mxu0 0.0
        %871 = vmatprep.subr.mxu0 0.0
        %872 = vmatpush2.msra.mxu0 0.0
        %873 = vmatprep.subr.mxu0 0.0
        %874 = vmatpush2.msra.mxu0 0.0
        %875 = vmatprep.subr.mxu0 0.0
        %876 = vmatpush2.msra.mxu0 0.0
        %877 = vmatprep.subr.mxu0 0.0
        %878 = vmatpush2.msra.mxu0 0.0
        %879 = vmatprep.subr.mxu0 0.0
        %880 = vmatpush2.msra.mxu0 0.0
        %881 = vmatprep.mubr.f32.mxu0 0.0
        %v882 = vand.u32 %v401, 4294901760
        %883 = vmatmul.mubr.f32.gmra.mxu0 %v882
        %v884 = vpop.f32.mrf.mxu0
        %v885 = vadd.f32 %v810, %v884
        %v886 = vpop.f32.mrf.mxu0
        %887 = vdwg.mxu0
        %v888 = vmax.f32 %v885, 0.0
        %v889 = vld [vmem:[%s2] sm:$0x3]
        %vm890 = vcmask 15360
        %v892 = vsel %vm890, %v888, 0
        %vm894 = vcmask 1041408
        %v896 = vsel %vm894, %v889, 0
        %898 = vmatprep.subr.mxu0 0.0
        %899 = vmatpush1.msra.mxu0 0.0
        %900 = vmatprep.subr.mxu0 0.0
        %901 = vmatpush1.msra.mxu0 0.0
        %902 = vmatprep.subr.mxu0 0.0
        %903 = vmatpush1.msra.mxu0 0.0
        %904 = vmatprep.subr.mxu0 0.0
        %905 = vmatpush1.msra.mxu0 0.0
        %906 = vmatprep.subr.mxu0 0.0
        %907 = vmatpush1.msra.mxu0 0.0
        %908 = vmatprep.subr.mxu0 0.0
        %909 = vmatpush1.msra.mxu0 0.0
        %910 = vmatprep.subr.mxu0 0.0
        %911 = vmatpush1.msra.mxu0 0.0
        %912 = vmatprep.subr.mxu0 0.0
        %913 = vmatpush1.msra.mxu0 0.0
        %914 = vmatprep.subr.mxu0 0.0
        %915 = vmatpush1.msra.mxu0 0.0
        %916 = vmatprep.subr.mxu0 0.0
        %917 = vmatpush1.msra.mxu0 0.0
        %918 = vmatprep.subr.mxu0 0.0
        %919 = vmatpush1.msra.mxu0 0.0
        %920 = vmatprep.subr.mxu0 0.0
        %921 = vmatpush1.msra.mxu0 0.0
        %922 = vmatprep.subr.mxu0 0.0
        %923 = vmatpush1.msra.mxu0 0.0
        %924 = vmatprep.subr.mxu0 0.0
        %925 = vmatpush1.msra.mxu0 0.0
        %926 = vmatprep.subr.mxu0 0.0
        %927 = vmatpush1.msra.mxu0 0.0
        %928 = vmatprep.subr.mxu0 0.0
        %v929 = vand.u32 %v896, 4294901760
        %930 = vmatpush1.msra.mxu0 %v929
        %931 = vmatprep.subr.mxu0 0.0
        %932 = vmatpush2.msra.mxu0 0.0
        %933 = vmatprep.subr.mxu0 0.0
        %934 = vmatpush2.msra.mxu0 0.0
        %935 = vmatprep.subr.mxu0 0.0
        %936 = vmatpush2.msra.mxu0 0.0
        %937 = vmatprep.subr.mxu0 0.0
        %938 = vmatpush2.msra.mxu0 0.0
        %939 = vmatprep.subr.mxu0 0.0
        %940 = vmatpush2.msra.mxu0 0.0
        %941 = vmatprep.subr.mxu0 0.0
        %942 = vmatpush2.msra.mxu0 0.0
        %943 = vmatprep.subr.mxu0 0.0
        %944 = vmatpush2.msra.mxu0 0.0
        %945 = vmatprep.subr.mxu0 0.0
        %946 = vmatpush2.msra.mxu0 0.0
        %947 = vmatprep.subr.mxu0 0.0
        %948 = vmatpush2.msra.mxu0 0.0
        %949 = vmatprep.subr.mxu0 0.0
        %950 = vmatpush2.msra.mxu0 0.0
        %951 = vmatprep.subr.mxu0 0.0
        %952 = vmatpush2.msra.mxu0 0.0
        %953 = vmatprep.subr.mxu0 0.0
        %954 = vmatpush2.msra.mxu0 0.0
        %955 = vmatprep.subr.mxu0 0.0
        %956 = vmatpush2.msra.mxu0 0.0
        %957 = vmatprep.subr.mxu0 0.0
        %958 = vmatpush2.msra.mxu0 0.0
        %959 = vmatprep.subr.mxu0 0.0
        %960 = vmatpush2.msra.mxu0 0.0
        %961 = vmatprep.subr.mxu0 0.0
        %962 = vmatpush2.msra.mxu0 0.0
        %963 = vmatprep.mubr.f32.mxu0 0.0
        %v964 = vand.u32 %v892, 4294901760
        %v965 = vsub.f32 %v892, %v964
        %v966 = vand.u32 %v965, 4294901760
        %v967 = vsub.f32 %v965, %v966
        %v968 = vand.u32 %v967, 4294901760
        %969 = vmatmul.mubr.f32.gmra.mxu0 %v968
        %v970 = vpop.f32.mrf.mxu0
        %v971 = vadd.f32 0.0, %v970
        %v972 = vpop.f32.mrf.mxu0
        %973 = vdwg.mxu0
        %974 = vmatprep.subr.mxu0 0.0
        %975 = vmatpush1.msra.mxu0 0.0
        %976 = vmatprep.subr.mxu0 0.0
        %977 = vmatpush1.msra.mxu0 0.0
        %978 = vmatprep.subr.mxu0 0.0
        %979 = vmatpush1.msra.mxu0 0.0
        %980 = vmatprep.subr.mxu0 0.0
        %981 = vmatpush1.msra.mxu0 0.0
        %982 = vmatprep.subr.mxu0 0.0
        %983 = vmatpush1.msra.mxu0 0.0
        %984 = vmatprep.subr.mxu0 0.0
        %985 = vmatpush1.msra.mxu0 0.0
        %986 = vmatprep.subr.mxu0 0.0
        %987 = vmatpush1.msra.mxu0 0.0
        %988 = vmatprep.subr.mxu0 0.0
        %989 = vmatpush1.msra.mxu0 0.0
        %990 = vmatprep.subr.mxu0 0.0
        %991 = vmatpush1.msra.mxu0 0.0
        %992 = vmatprep.subr.mxu0 0.0
        %993 = vmatpush1.msra.mxu0 0.0
        %994 = vmatprep.subr.mxu0 0.0
        %995 = vmatpush1.msra.mxu0 0.0
        %996 = vmatprep.subr.mxu0 0.0
        %997 = vmatpush1.msra.mxu0 0.0
        %998 = vmatprep.subr.mxu0 0.0
        %999 = vmatpush1.msra.mxu0 0.0
        %1000 = vmatprep.subr.mxu0 0.0
        %1001 = vmatpush1.msra.mxu0 0.0
        %1002 = vmatprep.subr.mxu0 0.0
        %1003 = vmatpush1.msra.mxu0 0.0
        %1004 = vmatprep.subr.mxu0 0.0
        %v1005 = vand.u32 %v896, 4294901760
        %v1006 = vsub.f32 %v896, %v1005
        %v1007 = vand.u32 %v1006, 4294901760
        %v1008 = vsub.f32 %v1006, %v1007
        %v1009 = vand.u32 %v1008, 4294901760
        %1010 = vmatpush1.msra.mxu0 %v1009
        %1011 = vmatprep.subr.mxu0 0.0
        %1012 = vmatpush2.msra.mxu0 0.0
        %1013 = vmatprep.subr.mxu0 0.0
        %1014 = vmatpush2.msra.mxu0 0.0
        %1015 = vmatprep.subr.mxu0 0.0
        %1016 = vmatpush2.msra.mxu0 0.0
        %1017 = vmatprep.subr.mxu0 0.0
        %1018 = vmatpush2.msra.mxu0 0.0
        %1019 = vmatprep.subr.mxu0 0.0
        %1020 = vmatpush2.msra.mxu0 0.0
        %1021 = vmatprep.subr.mxu0 0.0
        %1022 = vmatpush2.msra.mxu0 0.0
        %1023 = vmatprep.subr.mxu0 0.0
        %1024 = vmatpush2.msra.mxu0 0.0
        %1025 = vmatprep.subr.mxu0 0.0
        %1026 = vmatpush2.msra.mxu0 0.0
        %1027 = vmatprep.subr.mxu0 0.0
        %1028 = vmatpush2.msra.mxu0 0.0
        %1029 = vmatprep.subr.mxu0 0.0
        %1030 = vmatpush2.msra.mxu0 0.0
        %1031 = vmatprep.subr.mxu0 0.0
        %1032 = vmatpush2.msra.mxu0 0.0
        %1033 = vmatprep.subr.mxu0 0.0
        %1034 = vmatpush2.msra.mxu0 0.0
        %1035 = vmatprep.subr.mxu0 0.0
        %1036 = vmatpush2.msra.mxu0 0.0
        %1037 = vmatprep.subr.mxu0 0.0
        %1038 = vmatpush2.msra.mxu0 0.0
        %1039 = vmatprep.subr.mxu0 0.0
        %1040 = vmatpush2.msra.mxu0 0.0
        %1041 = vmatprep.subr.mxu0 0.0
        %1042 = vmatpush2.msra.mxu0 0.0
        %1043 = vmatprep.mubr.f32.mxu0 0.0
        %v1044 = vand.u32 %v892, 4294901760
        %1045 = vmatmul.mubr.f32.gmra.mxu0 %v1044
        %v1046 = vpop.f32.mrf.mxu0
        %v1047 = vadd.f32 %v971, %v1046
        %v1048 = vpop.f32.mrf.mxu0
        %1049 = vdwg.mxu0
        %1050 = vmatprep.subr.mxu0 0.0
        %1051 = vmatpush1.msra.mxu0 0.0
        %1052 = vmatprep.subr.mxu0 0.0
        %1053 = vmatpush1.msra.mxu0 0.0
        %1054 = vmatprep.subr.mxu0 0.0
        %1055 = vmatpush1.msra.mxu0 0.0
        %1056 = vmatprep.subr.mxu0 0.0
        %1057 = vmatpush1.msra.mxu0 0.0
        %1058 = vmatprep.subr.mxu0 0.0
        %1059 = vmatpush1.msra.mxu0 0.0
        %1060 = vmatprep.subr.mxu0 0.0
        %1061 = vmatpush1.msra.mxu0 0.0
        %1062 = vmatprep.subr.mxu0 0.0
        %1063 = vmatpush1.msra.mxu0 0.0
        %1064 = vmatprep.subr.mxu0 0.0
        %1065 = vmatpush1.msra.mxu0 0.0
        %1066 = vmatprep.subr.mxu0 0.0
        %1067 = vmatpush1.msra.mxu0 0.0
        %1068 = vmatprep.subr.mxu0 0.0
        %1069 = vmatpush1.msra.mxu0 0.0
        %1070 = vmatprep.subr.mxu0 0.0
        %1071 = vmatpush1.msra.mxu0 0.0
        %1072 = vmatprep.subr.mxu0 0.0
        %1073 = vmatpush1.msra.mxu0 0.0
        %1074 = vmatprep.subr.mxu0 0.0
        %1075 = vmatpush1.msra.mxu0 0.0
        %1076 = vmatprep.subr.mxu0 0.0
        %1077 = vmatpush1.msra.mxu0 0.0
        %1078 = vmatprep.subr.mxu0 0.0
        %1079 = vmatpush1.msra.mxu0 0.0
        %1080 = vmatprep.subr.mxu0 0.0
        %v1081 = vand.u32 %v896, 4294901760
        %v1082 = vsub.f32 %v896, %v1081
        %1083 = vmatpush1.msra.mxu0 %v1082
        %1084 = vmatprep.subr.mxu0 0.0
        %1085 = vmatpush2.msra.mxu0 0.0
        %1086 = vmatprep.subr.mxu0 0.0
        %1087 = vmatpush2.msra.mxu0 0.0
        %1088 = vmatprep.subr.mxu0 0.0
        %1089 = vmatpush2.msra.mxu0 0.0
        %1090 = vmatprep.subr.mxu0 0.0
        %1091 = vmatpush2.msra.mxu0 0.0
        %1092 = vmatprep.subr.mxu0 0.0
        %1093 = vmatpush2.msra.mxu0 0.0
        %1094 = vmatprep.subr.mxu0 0.0
        %1095 = vmatpush2.msra.mxu0 0.0
        %1096 = vmatprep.subr.mxu0 0.0
        %1097 = vmatpush2.msra.mxu0 0.0
        %1098 = vmatprep.subr.mxu0 0.0
        %1099 = vmatpush2.msra.mxu0 0.0
        %1100 = vmatprep.subr.mxu0 0.0
        %1101 = vmatpush2.msra.mxu0 0.0
        %1102 = vmatprep.subr.mxu0 0.0
        %1103 = vmatpush2.msra.mxu0 0.0
        %1104 = vmatprep.subr.mxu0 0.0
        %1105 = vmatpush2.msra.mxu0 0.0
        %1106 = vmatprep.subr.mxu0 0.0
        %1107 = vmatpush2.msra.mxu0 0.0
        %1108 = vmatprep.subr.mxu0 0.0
        %1109 = vmatpush2.msra.mxu0 0.0
        %1110 = vmatprep.subr.mxu0 0.0
        %1111 = vmatpush2.msra.mxu0 0.0
        %1112 = vmatprep.subr.mxu0 0.0
        %1113 = vmatpush2.msra.mxu0 0.0
        %1114 = vmatprep.subr.mxu0 0.0
        %1115 = vmatpush2.msra.mxu0 0.0
        %1116 = vmatprep.mubr.f32.mxu0 0.0
        %v1117 = vand.u32 %v892, 4294901760
        %v1118 = vsub.f32 %v892, %v1117
        %1119 = vmatmul.mubr.f32.gmra.mxu0 %v1118
        %v1120 = vpop.f32.mrf.mxu0
        %v1121 = vadd.f32 %v1047, %v1120
        %v1122 = vpop.f32.mrf.mxu0
        %1123 = vdwg.mxu0
        %1124 = vmatprep.subr.mxu0 0.0
        %1125 = vmatpush1.msra.mxu0 0.0
        %1126 = vmatprep.subr.mxu0 0.0
        %1127 = vmatpush1.msra.mxu0 0.0
        %1128 = vmatprep.subr.mxu0 0.0
        %1129 = vmatpush1.msra.mxu0 0.0
        %1130 = vmatprep.subr.mxu0 0.0
        %1131 = vmatpush1.msra.mxu0 0.0
        %1132 = vmatprep.subr.mxu0 0.0
        %1133 = vmatpush1.msra.mxu0 0.0
        %1134 = vmatprep.subr.mxu0 0.0
        %1135 = vmatpush1.msra.mxu0 0.0
        %1136 = vmatprep.subr.mxu0 0.0
        %1137 = vmatpush1.msra.mxu0 0.0
        %1138 = vmatprep.subr.mxu0 0.0
        %1139 = vmatpush1.msra.mxu0 0.0
        %1140 = vmatprep.subr.mxu0 0.0
        %1141 = vmatpush1.msra.mxu0 0.0
        %1142 = vmatprep.subr.mxu0 0.0
        %1143 = vmatpush1.msra.mxu0 0.0
        %1144 = vmatprep.subr.mxu0 0.0
        %1145 = vmatpush1.msra.mxu0 0.0
        %1146 = vmatprep.subr.mxu0 0.0
        %1147 = vmatpush1.msra.mxu0 0.0
        %1148 = vmatprep.subr.mxu0 0.0
        %1149 = vmatpush1.msra.mxu0 0.0
        %1150 = vmatprep.subr.mxu0 0.0
        %1151 = vmatpush1.msra.mxu0 0.0
        %1152 = vmatprep.subr.mxu0 0.0
        %1153 = vmatpush1.msra.mxu0 0.0
        %1154 = vmatprep.subr.mxu0 0.0
        %v1155 = vand.u32 %v896, 4294901760
        %1156 = vmatpush1.msra.mxu0 %v1155
        %1157 = vmatprep.subr.mxu0 0.0
        %1158 = vmatpush2.msra.mxu0 0.0
        %1159 = vmatprep.subr.mxu0 0.0
        %1160 = vmatpush2.msra.mxu0 0.0
        %1161 = vmatprep.subr.mxu0 0.0
        %1162 = vmatpush2.msra.mxu0 0.0
        %1163 = vmatprep.subr.mxu0 0.0
        %1164 = vmatpush2.msra.mxu0 0.0
        %1165 = vmatprep.subr.mxu0 0.0
        %1166 = vmatpush2.msra.mxu0 0.0
        %1167 = vmatprep.subr.mxu0 0.0
        %1168 = vmatpush2.msra.mxu0 0.0
        %1169 = vmatprep.subr.mxu0 0.0
        %1170 = vmatpush2.msra.mxu0 0.0
        %1171 = vmatprep.subr.mxu0 0.0
        %1172 = vmatpush2.msra.mxu0 0.0
        %1173 = vmatprep.subr.mxu0 0.0
        %1174 = vmatpush2.msra.mxu0 0.0
        %1175 = vmatprep.subr.mxu0 0.0
        %1176 = vmatpush2.msra.mxu0 0.0
        %1177 = vmatprep.subr.mxu0 0.0
        %1178 = vmatpush2.msra.mxu0 0.0
        %1179 = vmatprep.subr.mxu0 0.0
        %1180 = vmatpush2.msra.mxu0 0.0
        %1181 = vmatprep.subr.mxu0 0.0
        %1182 = vmatpush2.msra.mxu0 0.0
        %1183 = vmatprep.subr.mxu0 0.0
        %1184 = vmatpush2.msra.mxu0 0.0
        %1185 = vmatprep.subr.mxu0 0.0
        %1186 = vmatpush2.msra.mxu0 0.0
        %1187 = vmatprep.subr.mxu0 0.0
        %1188 = vmatpush2.msra.mxu0 0.0
        %1189 = vmatprep.mubr.f32.mxu0 0.0
        %v1190 = vand.u32 %v892, 4294901760
        %v1191 = vsub.f32 %v892, %v1190
        %v1192 = vand.u32 %v1191, 4294901760
        %1193 = vmatmul.mubr.f32.gmra.mxu0 %v1192
        %v1194 = vpop.f32.mrf.mxu0
        %v1195 = vadd.f32 %v1121, %v1194
        %v1196 = vpop.f32.mrf.mxu0
        %1197 = vdwg.mxu0
        %1198 = vmatprep.subr.mxu0 0.0
        %1199 = vmatpush1.msra.mxu0 0.0
        %1200 = vmatprep.subr.mxu0 0.0
        %1201 = vmatpush1.msra.mxu0 0.0
        %1202 = vmatprep.subr.mxu0 0.0
        %1203 = vmatpush1.msra.mxu0 0.0
        %1204 = vmatprep.subr.mxu0 0.0
        %1205 = vmatpush1.msra.mxu0 0.0
        %1206 = vmatprep.subr.mxu0 0.0
        %1207 = vmatpush1.msra.mxu0 0.0
        %1208 = vmatprep.subr.mxu0 0.0
        %1209 = vmatpush1.msra.mxu0 0.0
        %1210 = vmatprep.subr.mxu0 0.0
        %1211 = vmatpush1.msra.mxu0 0.0
        %1212 = vmatprep.subr.mxu0 0.0
        %1213 = vmatpush1.msra.mxu0 0.0
        %1214 = vmatprep.subr.mxu0 0.0
        %1215 = vmatpush1.msra.mxu0 0.0
        %1216 = vmatprep.subr.mxu0 0.0
        %1217 = vmatpush1.msra.mxu0 0.0
        %1218 = vmatprep.subr.mxu0 0.0
        %1219 = vmatpush1.msra.mxu0 0.0
        %1220 = vmatprep.subr.mxu0 0.0
        %1221 = vmatpush1.msra.mxu0 0.0
        %1222 = vmatprep.subr.mxu0 0.0
        %1223 = vmatpush1.msra.mxu0 0.0
        %1224 = vmatprep.subr.mxu0 0.0
        %1225 = vmatpush1.msra.mxu0 0.0
        %1226 = vmatprep.subr.mxu0 0.0
        %1227 = vmatpush1.msra.mxu0 0.0
        %1228 = vmatprep.subr.mxu0 0.0
        %v1229 = vand.u32 %v896, 4294901760
        %v1230 = vsub.f32 %v896, %v1229
        %v1231 = vand.u32 %v1230, 4294901760
        %1232 = vmatpush1.msra.mxu0 %v1231
        %1233 = vmatprep.subr.mxu0 0.0
        %1234 = vmatpush2.msra.mxu0 0.0
        %1235 = vmatprep.subr.mxu0 0.0
        %1236 = vmatpush2.msra.mxu0 0.0
        %1237 = vmatprep.subr.mxu0 0.0
        %1238 = vmatpush2.msra.mxu0 0.0
        %1239 = vmatprep.subr.mxu0 0.0
        %1240 = vmatpush2.msra.mxu0 0.0
        %1241 = vmatprep.subr.mxu0 0.0
        %1242 = vmatpush2.msra.mxu0 0.0
        %1243 = vmatprep.subr.mxu0 0.0
        %1244 = vmatpush2.msra.mxu0 0.0
        %1245 = vmatprep.subr.mxu0 0.0
        %1246 = vmatpush2.msra.mxu0 0.0
        %1247 = vmatprep.subr.mxu0 0.0
        %1248 = vmatpush2.msra.mxu0 0.0
        %1249 = vmatprep.subr.mxu0 0.0
        %1250 = vmatpush2.msra.mxu0 0.0
        %1251 = vmatprep.subr.mxu0 0.0
        %1252 = vmatpush2.msra.mxu0 0.0
        %1253 = vmatprep.subr.mxu0 0.0
        %1254 = vmatpush2.msra.mxu0 0.0
        %1255 = vmatprep.subr.mxu0 0.0
        %1256 = vmatpush2.msra.mxu0 0.0
        %1257 = vmatprep.subr.mxu0 0.0
        %1258 = vmatpush2.msra.mxu0 0.0
        %1259 = vmatprep.subr.mxu0 0.0
        %1260 = vmatpush2.msra.mxu0 0.0
        %1261 = vmatprep.subr.mxu0 0.0
        %1262 = vmatpush2.msra.mxu0 0.0
        %1263 = vmatprep.subr.mxu0 0.0
        %1264 = vmatpush2.msra.mxu0 0.0
        %1265 = vmatprep.mubr.f32.mxu0 0.0
        %v1266 = vand.u32 %v892, 4294901760
        %1267 = vmatmul.mubr.f32.gmra.mxu0 %v1266
        %v1268 = vpop.f32.mrf.mxu0
        %v1269 = vadd.f32 %v1195, %v1268
        %v1270 = vpop.f32.mrf.mxu0
        %1271 = vdwg.mxu0
        %1272 = vmatprep.subr.mxu0 0.0
        %1273 = vmatpush1.msra.mxu0 0.0
        %1274 = vmatprep.subr.mxu0 0.0
        %1275 = vmatpush1.msra.mxu0 0.0
        %1276 = vmatprep.subr.mxu0 0.0
        %1277 = vmatpush1.msra.mxu0 0.0
        %1278 = vmatprep.subr.mxu0 0.0
        %1279 = vmatpush1.msra.mxu0 0.0
        %1280 = vmatprep.subr.mxu0 0.0
        %1281 = vmatpush1.msra.mxu0 0.0
        %1282 = vmatprep.subr.mxu0 0.0
        %1283 = vmatpush1.msra.mxu0 0.0
        %1284 = vmatprep.subr.mxu0 0.0
        %1285 = vmatpush1.msra.mxu0 0.0
        %1286 = vmatprep.subr.mxu0 0.0
        %1287 = vmatpush1.msra.mxu0 0.0
        %1288 = vmatprep.subr.mxu0 0.0
        %1289 = vmatpush1.msra.mxu0 0.0
        %1290 = vmatprep.subr.mxu0 0.0
        %1291 = vmatpush1.msra.mxu0 0.0
        %1292 = vmatprep.subr.mxu0 0.0
        %1293 = vmatpush1.msra.mxu0 0.0
        %1294 = vmatprep.subr.mxu0 0.0
        %1295 = vmatpush1.msra.mxu0 0.0
        %1296 = vmatprep.subr.mxu0 0.0
        %1297 = vmatpush1.msra.mxu0 0.0
        %1298 = vmatprep.subr.mxu0 0.0
        %1299 = vmatpush1.msra.mxu0 0.0
        %1300 = vmatprep.subr.mxu0 0.0
        %1301 = vmatpush1.msra.mxu0 0.0
        %1302 = vmatprep.subr.mxu0 0.0
        %v1303 = vand.u32 %v896, 4294901760
        %1304 = vmatpush1.msra.mxu0 %v1303
        %1305 = vmatprep.subr.mxu0 0.0
        %1306 = vmatpush2.msra.mxu0 0.0
        %1307 = vmatprep.subr.mxu0 0.0
        %1308 = vmatpush2.msra.mxu0 0.0
        %1309 = vmatprep.subr.mxu0 0.0
        %1310 = vmatpush2.msra.mxu0 0.0
        %1311 = vmatprep.subr.mxu0 0.0
        %1312 = vmatpush2.msra.mxu0 0.0
        %1313 = vmatprep.subr.mxu0 0.0
        %1314 = vmatpush2.msra.mxu0 0.0
        %1315 = vmatprep.subr.mxu0 0.0
        %1316 = vmatpush2.msra.mxu0 0.0
        %1317 = vmatprep.subr.mxu0 0.0
        %1318 = vmatpush2.msra.mxu0 0.0
        %1319 = vmatprep.subr.mxu0 0.0
        %1320 = vmatpush2.msra.mxu0 0.0
        %1321 = vmatprep.subr.mxu0 0.0
        %1322 = vmatpush2.msra.mxu0 0.0
        %1323 = vmatprep.subr.mxu0 0.0
        %1324 = vmatpush2.msra.mxu0 0.0
        %1325 = vmatprep.subr.mxu0 0.0
        %1326 = vmatpush2.msra.mxu0 0.0
        %1327 = vmatprep.subr.mxu0 0.0
        %1328 = vmatpush2.msra.mxu0 0.0
        %1329 = vmatprep.subr.mxu0 0.0
        %1330 = vmatpush2.msra.mxu0 0.0
        %1331 = vmatprep.subr.mxu0 0.0
        %1332 = vmatpush2.msra.mxu0 0.0
        %1333 = vmatprep.subr.mxu0 0.0
        %1334 = vmatpush2.msra.mxu0 0.0
        %1335 = vmatprep.subr.mxu0 0.0
        %1336 = vmatpush2.msra.mxu0 0.0
        %1337 = vmatprep.mubr.f32.mxu0 0.0
        %v1338 = vand.u32 %v892, 4294901760
        %1339 = vmatmul.mubr.f32.gmra.mxu0 %v1338
        %v1340 = vpop.f32.mrf.mxu0
        %v1341 = vadd.f32 %v1269, %v1340
        %v1342 = vpop.f32.mrf.mxu0
        %1343 = vdwg.mxu0
        %v1345 = vrot.slane %v1341, 1
        %v1347 = vadd.f32 %v1341, %v1345
        %v1348 = vxor.u32 %v1347, 2147483648
        %v1349 = vmul.f32 %v1348, 1.442695
        %v1350 = vpow.pop %v1349
        %v1351 = vadd.f32 %v1350, 1.0
        %v1352 = vrcp.pop %v1351
        %v1353 = vmul.f32 1.0, %v1352
        %v1354 = vlaneseq
        %v1355 = vshrl.u32 %v1354, 7
        %v1356 = vsub.s32 0, %v1355
        %v1357 = vrot.slane %v1353, %v1356
        %1359 = vbcast.lane.b32.xlu0 %v1357, 256
        %v1360 = vpop.permute.xlu0 %1359
        %s1362 = sor.u32 256, 8
        %1363 = vbcast.lane.b32.xlu0 %v1357, %s1362
        %v1364 = vpop.permute.xlu0 %1363
        %s1366 = sor.u32 256, 16
        %1367 = vbcast.lane.b32.xlu0 %v1357, %s1366
        %v1368 = vpop.permute.xlu0 %1367
        %s1370 = sor.u32 256, 24
        %1371 = vbcast.lane.b32.xlu0 %v1357, %s1370
        %v1372 = vpop.permute.xlu0 %1371
        %v1373 = vmul.f32 %v300, %v1360
        %v1374 = vmul.f32 %v301, %v1360
        %v1375 = vmul.f32 %v302, %v1364
        %v1376 = vmul.f32 %v303, %v1364
        %v1377 = vmul.f32 %v304, %v1368
        %v1378 = vmul.f32 %v305, %v1368
        %v1379 = vmul.f32 %v306, %v1372
        %v1380 = vmul.f32 %v307, %v1372
        %v1381 = vadd.f32 %v1373, %v1375
        %v1382 = vadd.f32 %v1381, %v1377
        %v1383 = vadd.f32 %v1382, %v1379
        %v1384 = vrot.slane %v1383, 4
        %v1385 = vadd.f32 %v1383, %v1384
        %v1386 = vrot.slane %v1385, 2
        %v1387 = vadd.f32 %v1385, %v1386
        %v1388 = vrot.slane %v1387, 1
        %v1389 = vadd.f32 %v1387, %v1388
        %v1390 = vadd.f32 %v1374, %v1376
        %v1391 = vadd.f32 %v1390, %v1378
        %v1392 = vadd.f32 %v1391, %v1380
        %v1393 = vrot.slane %v1392, 4
        %v1394 = vadd.f32 %v1392, %v1393
        %v1395 = vrot.slane %v1394, 2
        %v1396 = vadd.f32 %v1394, %v1395
        %v1397 = vrot.slane %v1396, 1
        %v1398 = vadd.f32 %v1396, %v1397
        %v1399 = vrcp.pop 32.0
        %v1400 = vmul.f32 %v1389, %v1399
        %v1401 = vmul.f32 %v1398, %v1399
        %v1402 = vmax.f32 %v1373, %v1377
        %v1403 = vmax.f32 %v1375, %v1379
        %v1404 = vmax.f32 %v1402, %v1403
        %v1405 = vrot.slane %v1404, 4
        %v1406 = vmax.f32 %v1404, %v1405
        %v1407 = vrot.slane %v1406, 2
        %v1408 = vmax.f32 %v1406, %v1407
        %v1409 = vrot.slane %v1408, 1
        %v1410 = vmax.f32 %v1408, %v1409
        %v1411 = vmax.f32 %v1374, %v1378
        %v1412 = vmax.f32 %v1376, %v1380
        %v1413 = vmax.f32 %v1411, %v1412
        %v1414 = vrot.slane %v1413, 4
        %v1415 = vmax.f32 %v1413, %v1414
        %v1416 = vrot.slane %v1415, 2
        %v1417 = vmax.f32 %v1415, %v1416
        %v1418 = vrot.slane %v1417, 1
        %v1419 = vmax.f32 %v1417, %v1418
        %v1420 = vld [vmem:[#allocation6] sm:$0xff]
        %v1421 = vld [vmem:[#allocation6 + $0x8] sm:$0xff]
        %v1422 = vld [vmem:[#allocation6 + $0x10] sm:$0xff]
        %v1423 = vld [vmem:[#allocation6 + $0x18] sm:$0xff]
        %v1424 = vld [vmem:[#allocation6 + $0x20] sm:$0xff]
        %v1425 = vld [vmem:[#allocation6 + $0x28] sm:$0xff]
        %v1426 = vld [vmem:[#allocation6 + $0x30] sm:$0xff]
        %v1427 = vld [vmem:[#allocation6 + $0x38] sm:$0xff]
        %v1428 = vld [vmem:[#allocation6 + $0x40] sm:$0xff]
        %v1429 = vld [vmem:[#allocation6 + $0x48] sm:$0xff]
        %v1430 = vld [vmem:[#allocation6 + $0x50] sm:$0xff]
        %v1431 = vld [vmem:[#allocation6 + $0x58] sm:$0xff]
        %v1432 = vld [vmem:[#allocation6 + $0x60] sm:$0xff]
        %v1433 = vld [vmem:[#allocation6 + $0x68] sm:$0xff]
        %v1434 = vld [vmem:[#allocation6 + $0x70] sm:$0xff]
        %v1435 = vld [vmem:[#allocation6 + $0x78] sm:$0xff]
        %v1436 = vld [vmem:[#allocation6 + $0x80] sm:$0xff]
        %v1437 = vld [vmem:[#allocation6 + $0x88] sm:$0xff]
        %v1438 = vld [vmem:[#allocation6 + $0x90] sm:$0xff]
        %v1439 = vld [vmem:[#allocation6 + $0x98] sm:$0xff]
        %v1440 = vld [vmem:[#allocation6 + $0xa0] sm:$0xff]
        %v1441 = vld [vmem:[#allocation6 + $0xa8] sm:$0xff]
        %v1442 = vld [vmem:[#allocation6 + $0xb0] sm:$0xff]
        %v1443 = vld [vmem:[#allocation6 + $0xb8] sm:$0xff]
        %v1444 = vld [vmem:[#allocation6 + $0xc0] sm:$0xff]
        %v1445 = vld [vmem:[#allocation6 + $0xc8] sm:$0xff]
        %v1446 = vld [vmem:[#allocation6 + $0xd0] sm:$0xff]
        %v1447 = vld [vmem:[#allocation6 + $0xd8] sm:$0xff]
        %v1448 = vld [vmem:[#allocation6 + $0xe0] sm:$0xff]
        %v1449 = vld [vmem:[#allocation6 + $0xe8] sm:$0xff]
        %v1450 = vld [vmem:[#allocation6 + $0xf0] sm:$0xff]
        %v1451 = vld [vmem:[#allocation6 + $0xf8] sm:$0xff]
        %v1452 = vld [vmem:[#allocation6 + $0x100] sm:$0xff]
        %v1453 = vld [vmem:[#allocation6 + $0x108] sm:$0xff]
        %v1454 = vld [vmem:[#allocation6 + $0x110] sm:$0xff]
        %v1455 = vld [vmem:[#allocation6 + $0x118] sm:$0xff]
        %v1456 = vld [vmem:[#allocation6 + $0x120] sm:$0xff]
        %v1457 = vld [vmem:[#allocation6 + $0x128] sm:$0xff]
        %v1458 = vld [vmem:[#allocation6 + $0x130] sm:$0xff]
        %v1459 = vld [vmem:[#allocation6 + $0x138] sm:$0xff]
        %v1460 = vld [vmem:[#allocation6 + $0x140] sm:$0xff]
        %v1461 = vld [vmem:[#allocation6 + $0x148] sm:$0xff]
        %v1462 = vld [vmem:[#allocation6 + $0x150] sm:$0xff]
        %v1463 = vld [vmem:[#allocation6 + $0x158] sm:$0xff]
        %v1464 = vld [vmem:[#allocation6 + $0x160] sm:$0xff]
        %v1465 = vld [vmem:[#allocation6 + $0x168] sm:$0xff]
        %v1466 = vld [vmem:[#allocation6 + $0x170] sm:$0xff]
        %v1467 = vld [vmem:[#allocation6 + $0x178] sm:$0xff]
        %v1468 = vld [vmem:[#allocation6 + $0x180] sm:$0xff]
        %v1469 = vld [vmem:[#allocation6 + $0x188] sm:$0xff]
        %v1470 = vld [vmem:[#allocation6 + $0x190] sm:$0xff]
        %v1471 = vld [vmem:[#allocation6 + $0x198] sm:$0xff]
        %v1472 = vld [vmem:[#allocation6 + $0x1a0] sm:$0xff]
        %v1473 = vld [vmem:[#allocation6 + $0x1a8] sm:$0xff]
        %v1474 = vld [vmem:[#allocation6 + $0x1b0] sm:$0xff]
        %v1475 = vld [vmem:[#allocation6 + $0x1b8] sm:$0xff]
        %v1476 = vld [vmem:[#allocation6 + $0x1c0] sm:$0xff]
        %v1477 = vld [vmem:[#allocation6 + $0x1c8] sm:$0xff]
        %v1478 = vld [vmem:[#allocation6 + $0x1d0] sm:$0xff]
        %v1479 = vld [vmem:[#allocation6 + $0x1d8] sm:$0xff]
        %v1480 = vld [vmem:[#allocation6 + $0x1e0] sm:$0xff]
        %v1481 = vld [vmem:[#allocation6 + $0x1e8] sm:$0xff]
        %v1482 = vld [vmem:[#allocation6 + $0x1f0] sm:$0xff]
        %v1483 = vld [vmem:[#allocation6 + $0x1f8] sm:$0xff]
        %v1484 = vld [vmem:[#allocation8] sm:$0xff]
        %v1485 = vld [vmem:[#allocation8 + $0x8] sm:$0xff]
        %v1486 = vld [vmem:[#allocation8 + $0x10] sm:$0xff]
        %v1487 = vld [vmem:[#allocation8 + $0x18] sm:$0xff]
        %v1488 = vld [vmem:[#allocation8 + $0x20] sm:$0xff]
        %v1489 = vld [vmem:[#allocation8 + $0x28] sm:$0xff]
        %v1490 = vld [vmem:[#allocation8 + $0x30] sm:$0xff]
        %v1491 = vld [vmem:[#allocation8 + $0x38] sm:$0xff]
        %v1492 = vld [vmem:[#allocation8 + $0x40] sm:$0xff]
        %v1493 = vld [vmem:[#allocation8 + $0x48] sm:$0xff]
        %v1494 = vld [vmem:[#allocation8 + $0x50] sm:$0xff]
        %v1495 = vld [vmem:[#allocation8 + $0x58] sm:$0xff]
        %v1496 = vld [vmem:[#allocation8 + $0x60] sm:$0xff]
        %v1497 = vld [vmem:[#allocation8 + $0x68] sm:$0xff]
        %v1498 = vld [vmem:[#allocation8 + $0x70] sm:$0xff]
        %v1499 = vld [vmem:[#allocation8 + $0x78] sm:$0xff]
        %v1500 = vld [vmem:[#allocation8 + $0x80] sm:$0xff]
        %v1501 = vld [vmem:[#allocation8 + $0x88] sm:$0xff]
        %v1502 = vld [vmem:[#allocation8 + $0x90] sm:$0xff]
        %v1503 = vld [vmem:[#allocation8 + $0x98] sm:$0xff]
        %v1504 = vld [vmem:[#allocation8 + $0xa0] sm:$0xff]
        %v1505 = vld [vmem:[#allocation8 + $0xa8] sm:$0xff]
        %v1506 = vld [vmem:[#allocation8 + $0xb0] sm:$0xff]
        %v1507 = vld [vmem:[#allocation8 + $0xb8] sm:$0xff]
        %v1508 = vld [vmem:[#allocation8 + $0xc0] sm:$0xff]
        %v1509 = vld [vmem:[#allocation8 + $0xc8] sm:$0xff]
        %v1510 = vld [vmem:[#allocation8 + $0xd0] sm:$0xff]
        %v1511 = vld [vmem:[#allocation8 + $0xd8] sm:$0xff]
        %v1512 = vld [vmem:[#allocation8 + $0xe0] sm:$0xff]
        %v1513 = vld [vmem:[#allocation8 + $0xe8] sm:$0xff]
        %v1514 = vld [vmem:[#allocation8 + $0xf0] sm:$0xff]
        %v1515 = vld [vmem:[#allocation8 + $0xf8] sm:$0xff]
        %v1516 = vld [vmem:[#allocation8 + $0x100] sm:$0xff]
        %v1517 = vld [vmem:[#allocation8 + $0x108] sm:$0xff]
        %v1518 = vld [vmem:[#allocation8 + $0x110] sm:$0xff]
        %v1519 = vld [vmem:[#allocation8 + $0x118] sm:$0xff]
        %v1520 = vld [vmem:[#allocation8 + $0x120] sm:$0xff]
        %v1521 = vld [vmem:[#allocation8 + $0x128] sm:$0xff]
        %v1522 = vld [vmem:[#allocation8 + $0x130] sm:$0xff]
        %v1523 = vld [vmem:[#allocation8 + $0x138] sm:$0xff]
        %v1524 = vld [vmem:[#allocation8 + $0x140] sm:$0xff]
        %v1525 = vld [vmem:[#allocation8 + $0x148] sm:$0xff]
        %v1526 = vld [vmem:[#allocation8 + $0x150] sm:$0xff]
        %v1527 = vld [vmem:[#allocation8 + $0x158] sm:$0xff]
        %v1528 = vld [vmem:[#allocation8 + $0x160] sm:$0xff]
        %v1529 = vld [vmem:[#allocation8 + $0x168] sm:$0xff]
        %v1530 = vld [vmem:[#allocation8 + $0x170] sm:$0xff]
        %v1531 = vld [vmem:[#allocation8 + $0x178] sm:$0xff]
        %v1532 = vld [vmem:[#allocation8 + $0x180] sm:$0xff]
        %v1533 = vld [vmem:[#allocation8 + $0x188] sm:$0xff]
        %v1534 = vld [vmem:[#allocation8 + $0x190] sm:$0xff]
        %v1535 = vld [vmem:[#allocation8 + $0x198] sm:$0xff]
        %v1536 = vld [vmem:[#allocation8 + $0x1a0] sm:$0xff]
        %v1537 = vld [vmem:[#allocation8 + $0x1a8] sm:$0xff]
        %v1538 = vld [vmem:[#allocation8 + $0x1b0] sm:$0xff]
        %v1539 = vld [vmem:[#allocation8 + $0x1b8] sm:$0xff]
        %v1540 = vld [vmem:[#allocation8 + $0x1c0] sm:$0xff]
        %v1541 = vld [vmem:[#allocation8 + $0x1c8] sm:$0xff]
        %v1542 = vld [vmem:[#allocation8 + $0x1d0] sm:$0xff]
        %v1543 = vld [vmem:[#allocation8 + $0x1d8] sm:$0xff]
        %v1544 = vld [vmem:[#allocation8 + $0x1e0] sm:$0xff]
        %v1545 = vld [vmem:[#allocation8 + $0x1e8] sm:$0xff]
        %v1546 = vld [vmem:[#allocation8 + $0x1f0] sm:$0xff]
        %v1547 = vld [vmem:[#allocation8 + $0x1f8] sm:$0xff]
        %v1548 = vand.u32 %v1515, 4294901760
        %1549 = vmatprep.subr.mxu0 %v1548
        %v1550 = vand.u32 %v1514, 4294901760
        %1551 = vmatpush1.msra.mxu0 %v1550
        %v1552 = vand.u32 %v1513, 4294901760
        %1553 = vmatprep.subr.mxu0 %v1552
        %v1554 = vand.u32 %v1512, 4294901760
        %1555 = vmatpush1.msra.mxu0 %v1554
        %v1556 = vand.u32 %v1511, 4294901760
        %1557 = vmatprep.subr.mxu0 %v1556
        %v1558 = vand.u32 %v1510, 4294901760
        %1559 = vmatpush1.msra.mxu0 %v1558
        %v1560 = vand.u32 %v1509, 4294901760
        %1561 = vmatprep.subr.mxu0 %v1560
        %v1562 = vand.u32 %v1508, 4294901760
        %1563 = vmatpush1.msra.mxu0 %v1562
        %v1564 = vand.u32 %v1507, 4294901760
        %1565 = vmatprep.subr.mxu0 %v1564
        %v1566 = vand.u32 %v1506, 4294901760
        %1567 = vmatpush1.msra.mxu0 %v1566
        %v1568 = vand.u32 %v1505, 4294901760
        %1569 = vmatprep.subr.mxu0 %v1568
        %v1570 = vand.u32 %v1504, 4294901760
        %1571 = vmatpush1.msra.mxu0 %v1570
        %v1572 = vand.u32 %v1503, 4294901760
        %1573 = vmatprep.subr.mxu0 %v1572
        %v1574 = vand.u32 %v1502, 4294901760
        %1575 = vmatpush1.msra.mxu0 %v1574
        %v1576 = vand.u32 %v1501, 4294901760
        %1577 = vmatprep.subr.mxu0 %v1576
        %v1578 = vand.u32 %v1500, 4294901760
        %1579 = vmatpush1.msra.mxu0 %v1578
        %v1580 = vand.u32 %v1499, 4294901760
        %1581 = vmatprep.subr.mxu0 %v1580
        %v1582 = vand.u32 %v1498, 4294901760
        %1583 = vmatpush1.msra.mxu0 %v1582
        %v1584 = vand.u32 %v1497, 4294901760
        %1585 = vmatprep.subr.mxu0 %v1584
        %v1586 = vand.u32 %v1496, 4294901760
        %1587 = vmatpush1.msra.mxu0 %v1586
        %v1588 = vand.u32 %v1495, 4294901760
        %1589 = vmatprep.subr.mxu0 %v1588
        %v1590 = vand.u32 %v1494, 4294901760
        %1591 = vmatpush1.msra.mxu0 %v1590
        %v1592 = vand.u32 %v1493, 4294901760
        %1593 = vmatprep.subr.mxu0 %v1592
        %v1594 = vand.u32 %v1492, 4294901760
        %1595 = vmatpush1.msra.mxu0 %v1594
        %v1596 = vand.u32 %v1491, 4294901760
        %1597 = vmatprep.subr.mxu0 %v1596
        %v1598 = vand.u32 %v1490, 4294901760
        %1599 = vmatpush1.msra.mxu0 %v1598
        %v1600 = vand.u32 %v1489, 4294901760
        %1601 = vmatprep.subr.mxu0 %v1600
        %v1602 = vand.u32 %v1488, 4294901760
        %1603 = vmatpush1.msra.mxu0 %v1602
        %v1604 = vand.u32 %v1487, 4294901760
        %1605 = vmatprep.subr.mxu0 %v1604
        %v1606 = vand.u32 %v1486, 4294901760
        %1607 = vmatpush1.msra.mxu0 %v1606
        %v1608 = vand.u32 %v1485, 4294901760
        %1609 = vmatprep.subr.mxu0 %v1608
        %v1610 = vand.u32 %v1484, 4294901760
        %1611 = vmatpush1.msra.mxu0 %v1610
        %v1612 = vand.u32 %v1547, 4294901760
        %1613 = vmatprep.subr.mxu0 %v1612
        %v1614 = vand.u32 %v1546, 4294901760
        %1615 = vmatpush2.msra.mxu0 %v1614
        %v1616 = vand.u32 %v1545, 4294901760
        %1617 = vmatprep.subr.mxu0 %v1616
        %v1618 = vand.u32 %v1544, 4294901760
        %1619 = vmatpush2.msra.mxu0 %v1618
        %v1620 = vand.u32 %v1543, 4294901760
        %1621 = vmatprep.subr.mxu0 %v1620
        %v1622 = vand.u32 %v1542, 4294901760
        %1623 = vmatpush2.msra.mxu0 %v1622
        %v1624 = vand.u32 %v1541, 4294901760
        %1625 = vmatprep.subr.mxu0 %v1624
        %v1626 = vand.u32 %v1540, 4294901760
        %1627 = vmatpush2.msra.mxu0 %v1626
        %v1628 = vand.u32 %v1539, 4294901760
        %1629 = vmatprep.subr.mxu0 %v1628
        %v1630 = vand.u32 %v1538, 4294901760
        %1631 = vmatpush2.msra.mxu0 %v1630
        %v1632 = vand.u32 %v1537, 4294901760
        %1633 = vmatprep.subr.mxu0 %v1632
        %v1634 = vand.u32 %v1536, 4294901760
        %1635 = vmatpush2.msra.mxu0 %v1634
        %v1636 = vand.u32 %v1535, 4294901760
        %1637 = vmatprep.subr.mxu0 %v1636
        %v1638 = vand.u32 %v1534, 4294901760
        %1639 = vmatpush2.msra.mxu0 %v1638
        %v1640 = vand.u32 %v1533, 4294901760
        %1641 = vmatprep.subr.mxu0 %v1640
        %v1642 = vand.u32 %v1532, 4294901760
        %1643 = vmatpush2.msra.mxu0 %v1642
        %v1644 = vand.u32 %v1531, 4294901760
        %1645 = vmatprep.subr.mxu0 %v1644
        %v1646 = vand.u32 %v1530, 4294901760
        %1647 = vmatpush2.msra.mxu0 %v1646
        %v1648 = vand.u32 %v1529, 4294901760
        %1649 = vmatprep.subr.mxu0 %v1648
        %v1650 = vand.u32 %v1528, 4294901760
        %1651 = vmatpush2.msra.mxu0 %v1650
        %v1652 = vand.u32 %v1527, 4294901760
        %1653 = vmatprep.subr.mxu0 %v1652
        %v1654 = vand.u32 %v1526, 4294901760
        %1655 = vmatpush2.msra.mxu0 %v1654
        %v1656 = vand.u32 %v1525, 4294901760
        %1657 = vmatprep.subr.mxu0 %v1656
        %v1658 = vand.u32 %v1524, 4294901760
        %1659 = vmatpush2.msra.mxu0 %v1658
        %v1660 = vand.u32 %v1523, 4294901760
        %1661 = vmatprep.subr.mxu0 %v1660
        %v1662 = vand.u32 %v1522, 4294901760
        %1663 = vmatpush2.msra.mxu0 %v1662
        %v1664 = vand.u32 %v1521, 4294901760
        %1665 = vmatprep.subr.mxu0 %v1664
        %v1666 = vand.u32 %v1520, 4294901760
        %1667 = vmatpush2.msra.mxu0 %v1666
        %v1668 = vand.u32 %v1519, 4294901760
        %1669 = vmatprep.subr.mxu0 %v1668
        %v1670 = vand.u32 %v1518, 4294901760
        %1671 = vmatpush2.msra.mxu0 %v1670
        %v1672 = vand.u32 %v1517, 4294901760
        %1673 = vmatprep.subr.mxu0 %v1672
        %v1674 = vand.u32 %v1516, 4294901760
        %1675 = vmatpush2.msra.mxu0 %v1674
        %v1676 = vand.u32 %v1419, 4294901760
        %v1677 = vsub.f32 %v1419, %v1676
        %v1678 = vand.u32 %v1677, 4294901760
        %v1679 = vsub.f32 %v1677, %v1678
        %v1680 = vand.u32 %v1679, 4294901760
        %1681 = vmatprep.mubr.f32.mxu0 %v1680
        %v1682 = vand.u32 %v1410, 4294901760
        %v1683 = vsub.f32 %v1410, %v1682
        %v1684 = vand.u32 %v1683, 4294901760
        %v1685 = vsub.f32 %v1683, %v1684
        %v1686 = vand.u32 %v1685, 4294901760
        %1687 = vmatmul.mubr.f32.gmra.mxu0 %v1686
        %v1688 = vpop.f32.mrf.mxu0
        %v1689 = vadd.f32 0.0, %v1688
        %v1690 = vpop.f32.mrf.mxu0
        %v1691 = vadd.f32 0.0, %v1690
        %1692 = vdwg.mxu0
        %v1693 = vand.u32 %v1515, 4294901760
        %v1694 = vsub.f32 %v1515, %v1693
        %v1695 = vand.u32 %v1694, 4294901760
        %v1696 = vsub.f32 %v1694, %v1695
        %v1697 = vand.u32 %v1696, 4294901760
        %1698 = vmatprep.subr.mxu0 %v1697
        %v1699 = vand.u32 %v1514, 4294901760
        %v1700 = vsub.f32 %v1514, %v1699
        %v1701 = vand.u32 %v1700, 4294901760
        %v1702 = vsub.f32 %v1700, %v1701
        %v1703 = vand.u32 %v1702, 4294901760
        %1704 = vmatpush1.msra.mxu0 %v1703
        %v1705 = vand.u32 %v1513, 4294901760
        %v1706 = vsub.f32 %v1513, %v1705
        %v1707 = vand.u32 %v1706, 4294901760
        %v1708 = vsub.f32 %v1706, %v1707
        %v1709 = vand.u32 %v1708, 4294901760
        %1710 = vmatprep.subr.mxu0 %v1709
        %v1711 = vand.u32 %v1512, 4294901760
        %v1712 = vsub.f32 %v1512, %v1711
        %v1713 = vand.u32 %v1712, 4294901760
        %v1714 = vsub.f32 %v1712, %v1713
        %v1715 = vand.u32 %v1714, 4294901760
        %1716 = vmatpush1.msra.mxu0 %v1715
        %v1717 = vand.u32 %v1511, 4294901760
        %v1718 = vsub.f32 %v1511, %v1717
        %v1719 = vand.u32 %v1718, 4294901760
        %v1720 = vsub.f32 %v1718, %v1719
        %v1721 = vand.u32 %v1720, 4294901760
        %1722 = vmatprep.subr.mxu0 %v1721
        %v1723 = vand.u32 %v1510, 4294901760
        %v1724 = vsub.f32 %v1510, %v1723
        %v1725 = vand.u32 %v1724, 4294901760
        %v1726 = vsub.f32 %v1724, %v1725
        %v1727 = vand.u32 %v1726, 4294901760
        %1728 = vmatpush1.msra.mxu0 %v1727
        %v1729 = vand.u32 %v1509, 4294901760
        %v1730 = vsub.f32 %v1509, %v1729
        %v1731 = vand.u32 %v1730, 4294901760
        %v1732 = vsub.f32 %v1730, %v1731
        %v1733 = vand.u32 %v1732, 4294901760
        %1734 = vmatprep.subr.mxu0 %v1733
        %v1735 = vand.u32 %v1508, 4294901760
        %v1736 = vsub.f32 %v1508, %v1735
        %v1737 = vand.u32 %v1736, 4294901760
        %v1738 = vsub.f32 %v1736, %v1737
        %v1739 = vand.u32 %v1738, 4294901760
        %1740 = vmatpush1.msra.mxu0 %v1739
        %v1741 = vand.u32 %v1507, 4294901760
        %v1742 = vsub.f32 %v1507, %v1741
        %v1743 = vand.u32 %v1742, 4294901760
        %v1744 = vsub.f32 %v1742, %v1743
        %v1745 = vand.u32 %v1744, 4294901760
        %1746 = vmatprep.subr.mxu0 %v1745
        %v1747 = vand.u32 %v1506, 4294901760
        %v1748 = vsub.f32 %v1506, %v1747
        %v1749 = vand.u32 %v1748, 4294901760
        %v1750 = vsub.f32 %v1748, %v1749
        %v1751 = vand.u32 %v1750, 4294901760
        %1752 = vmatpush1.msra.mxu0 %v1751
        %v1753 = vand.u32 %v1505, 4294901760
        %v1754 = vsub.f32 %v1505, %v1753
        %v1755 = vand.u32 %v1754, 4294901760
        %v1756 = vsub.f32 %v1754, %v1755
        %v1757 = vand.u32 %v1756, 4294901760
        %1758 = vmatprep.subr.mxu0 %v1757
        %v1759 = vand.u32 %v1504, 4294901760
        %v1760 = vsub.f32 %v1504, %v1759
        %v1761 = vand.u32 %v1760, 4294901760
        %v1762 = vsub.f32 %v1760, %v1761
        %v1763 = vand.u32 %v1762, 4294901760
        %1764 = vmatpush1.msra.mxu0 %v1763
        %v1765 = vand.u32 %v1503, 4294901760
        %v1766 = vsub.f32 %v1503, %v1765
        %v1767 = vand.u32 %v1766, 4294901760
        %v1768 = vsub.f32 %v1766, %v1767
        %v1769 = vand.u32 %v1768, 4294901760
        %1770 = vmatprep.subr.mxu0 %v1769
        %v1771 = vand.u32 %v1502, 4294901760
        %v1772 = vsub.f32 %v1502, %v1771
        %v1773 = vand.u32 %v1772, 4294901760
        %v1774 = vsub.f32 %v1772, %v1773
        %v1775 = vand.u32 %v1774, 4294901760
        %1776 = vmatpush1.msra.mxu0 %v1775
        %v1777 = vand.u32 %v1501, 4294901760
        %v1778 = vsub.f32 %v1501, %v1777
        %v1779 = vand.u32 %v1778, 4294901760
        %v1780 = vsub.f32 %v1778, %v1779
        %v1781 = vand.u32 %v1780, 4294901760
        %1782 = vmatprep.subr.mxu0 %v1781
        %v1783 = vand.u32 %v1500, 4294901760
        %v1784 = vsub.f32 %v1500, %v1783
        %v1785 = vand.u32 %v1784, 4294901760
        %v1786 = vsub.f32 %v1784, %v1785
        %v1787 = vand.u32 %v1786, 4294901760
        %1788 = vmatpush1.msra.mxu0 %v1787
        %v1789 = vand.u32 %v1499, 4294901760
        %v1790 = vsub.f32 %v1499, %v1789
        %v1791 = vand.u32 %v1790, 4294901760
        %v1792 = vsub.f32 %v1790, %v1791
        %v1793 = vand.u32 %v1792, 4294901760
        %1794 = vmatprep.subr.mxu0 %v1793
        %v1795 = vand.u32 %v1498, 4294901760
        %v1796 = vsub.f32 %v1498, %v1795
        %v1797 = vand.u32 %v1796, 4294901760
        %v1798 = vsub.f32 %v1796, %v1797
        %v1799 = vand.u32 %v1798, 4294901760
        %1800 = vmatpush1.msra.mxu0 %v1799
        %v1801 = vand.u32 %v1497, 4294901760
        %v1802 = vsub.f32 %v1497, %v1801
        %v1803 = vand.u32 %v1802, 4294901760
        %v1804 = vsub.f32 %v1802, %v1803
        %v1805 = vand.u32 %v1804, 4294901760
        %1806 = vmatprep.subr.mxu0 %v1805
        %v1807 = vand.u32 %v1496, 4294901760
        %v1808 = vsub.f32 %v1496, %v1807
        %v1809 = vand.u32 %v1808, 4294901760
        %v1810 = vsub.f32 %v1808, %v1809
        %v1811 = vand.u32 %v1810, 4294901760
        %1812 = vmatpush1.msra.mxu0 %v1811
        %v1813 = vand.u32 %v1495, 4294901760
        %v1814 = vsub.f32 %v1495, %v1813
        %v1815 = vand.u32 %v1814, 4294901760
        %v1816 = vsub.f32 %v1814, %v1815
        %v1817 = vand.u32 %v1816, 4294901760
        %1818 = vmatprep.subr.mxu0 %v1817
        %v1819 = vand.u32 %v1494, 4294901760
        %v1820 = vsub.f32 %v1494, %v1819
        %v1821 = vand.u32 %v1820, 4294901760
        %v1822 = vsub.f32 %v1820, %v1821
        %v1823 = vand.u32 %v1822, 4294901760
        %1824 = vmatpush1.msra.mxu0 %v1823
        %v1825 = vand.u32 %v1493, 4294901760
        %v1826 = vsub.f32 %v1493, %v1825
        %v1827 = vand.u32 %v1826, 4294901760
        %v1828 = vsub.f32 %v1826, %v1827
        %v1829 = vand.u32 %v1828, 4294901760
        %1830 = vmatprep.subr.mxu0 %v1829
        %v1831 = vand.u32 %v1492, 4294901760
        %v1832 = vsub.f32 %v1492, %v1831
        %v1833 = vand.u32 %v1832, 4294901760
        %v1834 = vsub.f32 %v1832, %v1833
        %v1835 = vand.u32 %v1834, 4294901760
        %1836 = vmatpush1.msra.mxu0 %v1835
        %v1837 = vand.u32 %v1491, 4294901760
        %v1838 = vsub.f32 %v1491, %v1837
        %v1839 = vand.u32 %v1838, 4294901760
        %v1840 = vsub.f32 %v1838, %v1839
        %v1841 = vand.u32 %v1840, 4294901760
        %1842 = vmatprep.subr.mxu0 %v1841
        %v1843 = vand.u32 %v1490, 4294901760
        %v1844 = vsub.f32 %v1490, %v1843
        %v1845 = vand.u32 %v1844, 4294901760
        %v1846 = vsub.f32 %v1844, %v1845
        %v1847 = vand.u32 %v1846, 4294901760
        %1848 = vmatpush1.msra.mxu0 %v1847
        %v1849 = vand.u32 %v1489, 4294901760
        %v1850 = vsub.f32 %v1489, %v1849
        %v1851 = vand.u32 %v1850, 4294901760
        %v1852 = vsub.f32 %v1850, %v1851
        %v1853 = vand.u32 %v1852, 4294901760
        %1854 = vmatprep.subr.mxu0 %v1853
        %v1855 = vand.u32 %v1488, 4294901760
        %v1856 = vsub.f32 %v1488, %v1855
        %v1857 = vand.u32 %v1856, 4294901760
        %v1858 = vsub.f32 %v1856, %v1857
        %v1859 = vand.u32 %v1858, 4294901760
        %1860 = vmatpush1.msra.mxu0 %v1859
        %v1861 = vand.u32 %v1487, 4294901760
        %v1862 = vsub.f32 %v1487, %v1861
        %v1863 = vand.u32 %v1862, 4294901760
        %v1864 = vsub.f32 %v1862, %v1863
        %v1865 = vand.u32 %v1864, 4294901760
        %1866 = vmatprep.subr.mxu0 %v1865
        %v1867 = vand.u32 %v1486, 4294901760
        %v1868 = vsub.f32 %v1486, %v1867
        %v1869 = vand.u32 %v1868, 4294901760
        %v1870 = vsub.f32 %v1868, %v1869
        %v1871 = vand.u32 %v1870, 4294901760
        %1872 = vmatpush1.msra.mxu0 %v1871
        %v1873 = vand.u32 %v1485, 4294901760
        %v1874 = vsub.f32 %v1485, %v1873
        %v1875 = vand.u32 %v1874, 4294901760
        %v1876 = vsub.f32 %v1874, %v1875
        %v1877 = vand.u32 %v1876, 4294901760
        %1878 = vmatprep.subr.mxu0 %v1877
        %v1879 = vand.u32 %v1484, 4294901760
        %v1880 = vsub.f32 %v1484, %v1879
        %v1881 = vand.u32 %v1880, 4294901760
        %v1882 = vsub.f32 %v1880, %v1881
        %v1883 = vand.u32 %v1882, 4294901760
        %1884 = vmatpush1.msra.mxu0 %v1883
        %v1885 = vand.u32 %v1547, 4294901760
        %v1886 = vsub.f32 %v1547, %v1885
        %v1887 = vand.u32 %v1886, 4294901760
        %v1888 = vsub.f32 %v1886, %v1887
        %v1889 = vand.u32 %v1888, 4294901760
        %1890 = vmatprep.subr.mxu0 %v1889
        %v1891 = vand.u32 %v1546, 4294901760
        %v1892 = vsub.f32 %v1546, %v1891
        %v1893 = vand.u32 %v1892, 4294901760
        %v1894 = vsub.f32 %v1892, %v1893
        %v1895 = vand.u32 %v1894, 4294901760
        %1896 = vmatpush2.msra.mxu0 %v1895
        %v1897 = vand.u32 %v1545, 4294901760
        %v1898 = vsub.f32 %v1545, %v1897
        %v1899 = vand.u32 %v1898, 4294901760
        %v1900 = vsub.f32 %v1898, %v1899
        %v1901 = vand.u32 %v1900, 4294901760
        %1902 = vmatprep.subr.mxu0 %v1901
        %v1903 = vand.u32 %v1544, 4294901760
        %v1904 = vsub.f32 %v1544, %v1903
        %v1905 = vand.u32 %v1904, 4294901760
        %v1906 = vsub.f32 %v1904, %v1905
        %v1907 = vand.u32 %v1906, 4294901760
        %1908 = vmatpush2.msra.mxu0 %v1907
        %v1909 = vand.u32 %v1543, 4294901760
        %v1910 = vsub.f32 %v1543, %v1909
        %v1911 = vand.u32 %v1910, 4294901760
        %v1912 = vsub.f32 %v1910, %v1911
        %v1913 = vand.u32 %v1912, 4294901760
        %1914 = vmatprep.subr.mxu0 %v1913
        %v1915 = vand.u32 %v1542, 4294901760
        %v1916 = vsub.f32 %v1542, %v1915
        %v1917 = vand.u32 %v1916, 4294901760
        %v1918 = vsub.f32 %v1916, %v1917
        %v1919 = vand.u32 %v1918, 4294901760
        %1920 = vmatpush2.msra.mxu0 %v1919
        %v1921 = vand.u32 %v1541, 4294901760
        %v1922 = vsub.f32 %v1541, %v1921
        %v1923 = vand.u32 %v1922, 4294901760
        %v1924 = vsub.f32 %v1922, %v1923
        %v1925 = vand.u32 %v1924, 4294901760
        %1926 = vmatprep.subr.mxu0 %v1925
        %v1927 = vand.u32 %v1540, 4294901760
        %v1928 = vsub.f32 %v1540, %v1927
        %v1929 = vand.u32 %v1928, 4294901760
        %v1930 = vsub.f32 %v1928, %v1929
        %v1931 = vand.u32 %v1930, 4294901760
        %1932 = vmatpush2.msra.mxu0 %v1931
        %v1933 = vand.u32 %v1539, 4294901760
        %v1934 = vsub.f32 %v1539, %v1933
        %v1935 = vand.u32 %v1934, 4294901760
        %v1936 = vsub.f32 %v1934, %v1935
        %v1937 = vand.u32 %v1936, 4294901760
        %1938 = vmatprep.subr.mxu0 %v1937
        %v1939 = vand.u32 %v1538, 4294901760
        %v1940 = vsub.f32 %v1538, %v1939
        %v1941 = vand.u32 %v1940, 4294901760
        %v1942 = vsub.f32 %v1940, %v1941
        %v1943 = vand.u32 %v1942, 4294901760
        %1944 = vmatpush2.msra.mxu0 %v1943
        %v1945 = vand.u32 %v1537, 4294901760
        %v1946 = vsub.f32 %v1537, %v1945
        %v1947 = vand.u32 %v1946, 4294901760
        %v1948 = vsub.f32 %v1946, %v1947
        %v1949 = vand.u32 %v1948, 4294901760
        %1950 = vmatprep.subr.mxu0 %v1949
        %v1951 = vand.u32 %v1536, 4294901760
        %v1952 = vsub.f32 %v1536, %v1951
        %v1953 = vand.u32 %v1952, 4294901760
        %v1954 = vsub.f32 %v1952, %v1953
        %v1955 = vand.u32 %v1954, 4294901760
        %1956 = vmatpush2.msra.mxu0 %v1955
        %v1957 = vand.u32 %v1535, 4294901760
        %v1958 = vsub.f32 %v1535, %v1957
        %v1959 = vand.u32 %v1958, 4294901760
        %v1960 = vsub.f32 %v1958, %v1959
        %v1961 = vand.u32 %v1960, 4294901760
        %1962 = vmatprep.subr.mxu0 %v1961
        %v1963 = vand.u32 %v1534, 4294901760
        %v1964 = vsub.f32 %v1534, %v1963
        %v1965 = vand.u32 %v1964, 4294901760
        %v1966 = vsub.f32 %v1964, %v1965
        %v1967 = vand.u32 %v1966, 4294901760
        %1968 = vmatpush2.msra.mxu0 %v1967
        %v1969 = vand.u32 %v1533, 4294901760
        %v1970 = vsub.f32 %v1533, %v1969
        %v1971 = vand.u32 %v1970, 4294901760
        %v1972 = vsub.f32 %v1970, %v1971
        %v1973 = vand.u32 %v1972, 4294901760
        %1974 = vmatprep.subr.mxu0 %v1973
        %v1975 = vand.u32 %v1532, 4294901760
        %v1976 = vsub.f32 %v1532, %v1975
        %v1977 = vand.u32 %v1976, 4294901760
        %v1978 = vsub.f32 %v1976, %v1977
        %v1979 = vand.u32 %v1978, 4294901760
        %1980 = vmatpush2.msra.mxu0 %v1979
        %v1981 = vand.u32 %v1531, 4294901760
        %v1982 = vsub.f32 %v1531, %v1981
        %v1983 = vand.u32 %v1982, 4294901760
        %v1984 = vsub.f32 %v1982, %v1983
        %v1985 = vand.u32 %v1984, 4294901760
        %1986 = vmatprep.subr.mxu0 %v1985
        %v1987 = vand.u32 %v1530, 4294901760
        %v1988 = vsub.f32 %v1530, %v1987
        %v1989 = vand.u32 %v1988, 4294901760
        %v1990 = vsub.f32 %v1988, %v1989
        %v1991 = vand.u32 %v1990, 4294901760
        %1992 = vmatpush2.msra.mxu0 %v1991
        %v1993 = vand.u32 %v1529, 4294901760
        %v1994 = vsub.f32 %v1529, %v1993
        %v1995 = vand.u32 %v1994, 4294901760
        %v1996 = vsub.f32 %v1994, %v1995
        %v1997 = vand.u32 %v1996, 4294901760
        %1998 = vmatprep.subr.mxu0 %v1997
        %v1999 = vand.u32 %v1528, 4294901760
        %v2000 = vsub.f32 %v1528, %v1999
        %v2001 = vand.u32 %v2000, 4294901760
        %v2002 = vsub.f32 %v2000, %v2001
        %v2003 = vand.u32 %v2002, 4294901760
        %2004 = vmatpush2.msra.mxu0 %v2003
        %v2005 = vand.u32 %v1527, 4294901760
        %v2006 = vsub.f32 %v1527, %v2005
        %v2007 = vand.u32 %v2006, 4294901760
        %v2008 = vsub.f32 %v2006, %v2007
        %v2009 = vand.u32 %v2008, 4294901760
        %2010 = vmatprep.subr.mxu0 %v2009
        %v2011 = vand.u32 %v1526, 4294901760
        %v2012 = vsub.f32 %v1526, %v2011
        %v2013 = vand.u32 %v2012, 4294901760
        %v2014 = vsub.f32 %v2012, %v2013
        %v2015 = vand.u32 %v2014, 4294901760
        %2016 = vmatpush2.msra.mxu0 %v2015
        %v2017 = vand.u32 %v1525, 4294901760
        %v2018 = vsub.f32 %v1525, %v2017
        %v2019 = vand.u32 %v2018, 4294901760
        %v2020 = vsub.f32 %v2018, %v2019
        %v2021 = vand.u32 %v2020, 4294901760
        %2022 = vmatprep.subr.mxu0 %v2021
        %v2023 = vand.u32 %v1524, 4294901760
        %v2024 = vsub.f32 %v1524, %v2023
        %v2025 = vand.u32 %v2024, 4294901760
        %v2026 = vsub.f32 %v2024, %v2025
        %v2027 = vand.u32 %v2026, 4294901760
        %2028 = vmatpush2.msra.mxu0 %v2027
        %v2029 = vand.u32 %v1523, 4294901760
        %v2030 = vsub.f32 %v1523, %v2029
        %v2031 = vand.u32 %v2030, 4294901760
        %v2032 = vsub.f32 %v2030, %v2031
        %v2033 = vand.u32 %v2032, 4294901760
        %2034 = vmatprep.subr.mxu0 %v2033
        %v2035 = vand.u32 %v1522, 4294901760
        %v2036 = vsub.f32 %v1522, %v2035
        %v2037 = vand.u32 %v2036, 4294901760
        %v2038 = vsub.f32 %v2036, %v2037
        %v2039 = vand.u32 %v2038, 4294901760
        %2040 = vmatpush2.msra.mxu0 %v2039
        %v2041 = vand.u32 %v1521, 4294901760
        %v2042 = vsub.f32 %v1521, %v2041
        %v2043 = vand.u32 %v2042, 4294901760
        %v2044 = vsub.f32 %v2042, %v2043
        %v2045 = vand.u32 %v2044, 4294901760
        %2046 = vmatprep.subr.mxu0 %v2045
        %v2047 = vand.u32 %v1520, 4294901760
        %v2048 = vsub.f32 %v1520, %v2047
        %v2049 = vand.u32 %v2048, 4294901760
        %v2050 = vsub.f32 %v2048, %v2049
        %v2051 = vand.u32 %v2050, 4294901760
        %2052 = vmatpush2.msra.mxu0 %v2051
        %v2053 = vand.u32 %v1519, 4294901760
        %v2054 = vsub.f32 %v1519, %v2053
        %v2055 = vand.u32 %v2054, 4294901760
        %v2056 = vsub.f32 %v2054, %v2055
        %v2057 = vand.u32 %v2056, 4294901760
        %2058 = vmatprep.subr.mxu0 %v2057
        %v2059 = vand.u32 %v1518, 4294901760
        %v2060 = vsub.f32 %v1518, %v2059
        %v2061 = vand.u32 %v2060, 4294901760
        %v2062 = vsub.f32 %v2060, %v2061
        %v2063 = vand.u32 %v2062, 4294901760
        %2064 = vmatpush2.msra.mxu0 %v2063
        %v2065 = vand.u32 %v1517, 4294901760
        %v2066 = vsub.f32 %v1517, %v2065
        %v2067 = vand.u32 %v2066, 4294901760
        %v2068 = vsub.f32 %v2066, %v2067
        %v2069 = vand.u32 %v2068, 4294901760
        %2070 = vmatprep.subr.mxu0 %v2069
        %v2071 = vand.u32 %v1516, 4294901760
        %v2072 = vsub.f32 %v1516, %v2071
        %v2073 = vand.u32 %v2072, 4294901760
        %v2074 = vsub.f32 %v2072, %v2073
        %v2075 = vand.u32 %v2074, 4294901760
        %2076 = vmatpush2.msra.mxu0 %v2075
        %v2077 = vand.u32 %v1419, 4294901760
        %2078 = vmatprep.mubr.f32.mxu0 %v2077
        %v2079 = vand.u32 %v1410, 4294901760
        %2080 = vmatmul.mubr.f32.gmra.mxu0 %v2079
        %v2081 = vpop.f32.mrf.mxu0
        %v2082 = vadd.f32 %v1689, %v2081
        %v2083 = vpop.f32.mrf.mxu0
        %v2084 = vadd.f32 %v1691, %v2083
        %2085 = vdwg.mxu0
        %v2086 = vand.u32 %v1515, 4294901760
        %v2087 = vsub.f32 %v1515, %v2086
        %2088 = vmatprep.subr.mxu0 %v2087
        %v2089 = vand.u32 %v1514, 4294901760
        %v2090 = vsub.f32 %v1514, %v2089
        %2091 = vmatpush1.msra.mxu0 %v2090
        %v2092 = vand.u32 %v1513, 4294901760
        %v2093 = vsub.f32 %v1513, %v2092
        %2094 = vmatprep.subr.mxu0 %v2093
        %v2095 = vand.u32 %v1512, 4294901760
        %v2096 = vsub.f32 %v1512, %v2095
        %2097 = vmatpush1.msra.mxu0 %v2096
        %v2098 = vand.u32 %v1511, 4294901760
        %v2099 = vsub.f32 %v1511, %v2098
        %2100 = vmatprep.subr.mxu0 %v2099
        %v2101 = vand.u32 %v1510, 4294901760
        %v2102 = vsub.f32 %v1510, %v2101
        %2103 = vmatpush1.msra.mxu0 %v2102
        %v2104 = vand.u32 %v1509, 4294901760
        %v2105 = vsub.f32 %v1509, %v2104
        %2106 = vmatprep.subr.mxu0 %v2105
        %v2107 = vand.u32 %v1508, 4294901760
        %v2108 = vsub.f32 %v1508, %v2107
        %2109 = vmatpush1.msra.mxu0 %v2108
        %v2110 = vand.u32 %v1507, 4294901760
        %v2111 = vsub.f32 %v1507, %v2110
        %2112 = vmatprep.subr.mxu0 %v2111
        %v2113 = vand.u32 %v1506, 4294901760
        %v2114 = vsub.f32 %v1506, %v2113
        %2115 = vmatpush1.msra.mxu0 %v2114
        %v2116 = vand.u32 %v1505, 4294901760
        %v2117 = vsub.f32 %v1505, %v2116
        %2118 = vmatprep.subr.mxu0 %v2117
        %v2119 = vand.u32 %v1504, 4294901760
        %v2120 = vsub.f32 %v1504, %v2119
        %2121 = vmatpush1.msra.mxu0 %v2120
        %v2122 = vand.u32 %v1503, 4294901760
        %v2123 = vsub.f32 %v1503, %v2122
        %2124 = vmatprep.subr.mxu0 %v2123
        %v2125 = vand.u32 %v1502, 4294901760
        %v2126 = vsub.f32 %v1502, %v2125
        %2127 = vmatpush1.msra.mxu0 %v2126
        %v2128 = vand.u32 %v1501, 4294901760
        %v2129 = vsub.f32 %v1501, %v2128
        %2130 = vmatprep.subr.mxu0 %v2129
        %v2131 = vand.u32 %v1500, 4294901760
        %v2132 = vsub.f32 %v1500, %v2131
        %2133 = vmatpush1.msra.mxu0 %v2132
        %v2134 = vand.u32 %v1499, 4294901760
        %v2135 = vsub.f32 %v1499, %v2134
        %2136 = vmatprep.subr.mxu0 %v2135
        %v2137 = vand.u32 %v1498, 4294901760
        %v2138 = vsub.f32 %v1498, %v2137
        %2139 = vmatpush1.msra.mxu0 %v2138
        %v2140 = vand.u32 %v1497, 4294901760
        %v2141 = vsub.f32 %v1497, %v2140
        %2142 = vmatprep.subr.mxu0 %v2141
        %v2143 = vand.u32 %v1496, 4294901760
        %v2144 = vsub.f32 %v1496, %v2143
        %2145 = vmatpush1.msra.mxu0 %v2144
        %v2146 = vand.u32 %v1495, 4294901760
        %v2147 = vsub.f32 %v1495, %v2146
        %2148 = vmatprep.subr.mxu0 %v2147
        %v2149 = vand.u32 %v1494, 4294901760
        %v2150 = vsub.f32 %v1494, %v2149
        %2151 = vmatpush1.msra.mxu0 %v2150
        %v2152 = vand.u32 %v1493, 4294901760
        %v2153 = vsub.f32 %v1493, %v2152
        %2154 = vmatprep.subr.mxu0 %v2153
        %v2155 = vand.u32 %v1492, 4294901760
        %v2156 = vsub.f32 %v1492, %v2155
        %2157 = vmatpush1.msra.mxu0 %v2156
        %v2158 = vand.u32 %v1491, 4294901760
        %v2159 = vsub.f32 %v1491, %v2158
        %2160 = vmatprep.subr.mxu0 %v2159
        %v2161 = vand.u32 %v1490, 4294901760
        %v2162 = vsub.f32 %v1490, %v2161
        %2163 = vmatpush1.msra.mxu0 %v2162
        %v2164 = vand.u32 %v1489, 4294901760
        %v2165 = vsub.f32 %v1489, %v2164
        %2166 = vmatprep.subr.mxu0 %v2165
        %v2167 = vand.u32 %v1488, 4294901760
        %v2168 = vsub.f32 %v1488, %v2167
        %2169 = vmatpush1.msra.mxu0 %v2168
        %v2170 = vand.u32 %v1487, 4294901760
        %v2171 = vsub.f32 %v1487, %v2170
        %2172 = vmatprep.subr.mxu0 %v2171
        %v2173 = vand.u32 %v1486, 4294901760
        %v2174 = vsub.f32 %v1486, %v2173
        %2175 = vmatpush1.msra.mxu0 %v2174
        %v2176 = vand.u32 %v1485, 4294901760
        %v2177 = vsub.f32 %v1485, %v2176
        %2178 = vmatprep.subr.mxu0 %v2177
        %v2179 = vand.u32 %v1484, 4294901760
        %v2180 = vsub.f32 %v1484, %v2179
        %2181 = vmatpush1.msra.mxu0 %v2180
        %v2182 = vand.u32 %v1547, 4294901760
        %v2183 = vsub.f32 %v1547, %v2182
        %2184 = vmatprep.subr.mxu0 %v2183
        %v2185 = vand.u32 %v1546, 4294901760
        %v2186 = vsub.f32 %v1546, %v2185
        %2187 = vmatpush2.msra.mxu0 %v2186
        %v2188 = vand.u32 %v1545, 4294901760
        %v2189 = vsub.f32 %v1545, %v2188
        %2190 = vmatprep.subr.mxu0 %v2189
        %v2191 = vand.u32 %v1544, 4294901760
        %v2192 = vsub.f32 %v1544, %v2191
        %2193 = vmatpush2.msra.mxu0 %v2192
        %v2194 = vand.u32 %v1543, 4294901760
        %v2195 = vsub.f32 %v1543, %v2194
        %2196 = vmatprep.subr.mxu0 %v2195
        %v2197 = vand.u32 %v1542, 4294901760
        %v2198 = vsub.f32 %v1542, %v2197
        %2199 = vmatpush2.msra.mxu0 %v2198
        %v2200 = vand.u32 %v1541, 4294901760
        %v2201 = vsub.f32 %v1541, %v2200
        %2202 = vmatprep.subr.mxu0 %v2201
        %v2203 = vand.u32 %v1540, 4294901760
        %v2204 = vsub.f32 %v1540, %v2203
        %2205 = vmatpush2.msra.mxu0 %v2204
        %v2206 = vand.u32 %v1539, 4294901760
        %v2207 = vsub.f32 %v1539, %v2206
        %2208 = vmatprep.subr.mxu0 %v2207
        %v2209 = vand.u32 %v1538, 4294901760
        %v2210 = vsub.f32 %v1538, %v2209
        %2211 = vmatpush2.msra.mxu0 %v2210
        %v2212 = vand.u32 %v1537, 4294901760
        %v2213 = vsub.f32 %v1537, %v2212
        %2214 = vmatprep.subr.mxu0 %v2213
        %v2215 = vand.u32 %v1536, 4294901760
        %v2216 = vsub.f32 %v1536, %v2215
        %2217 = vmatpush2.msra.mxu0 %v2216
        %v2218 = vand.u32 %v1535, 4294901760
        %v2219 = vsub.f32 %v1535, %v2218
        %2220 = vmatprep.subr.mxu0 %v2219
        %v2221 = vand.u32 %v1534, 4294901760
        %v2222 = vsub.f32 %v1534, %v2221
        %2223 = vmatpush2.msra.mxu0 %v2222
        %v2224 = vand.u32 %v1533, 4294901760
        %v2225 = vsub.f32 %v1533, %v2224
        %2226 = vmatprep.subr.mxu0 %v2225
        %v2227 = vand.u32 %v1532, 4294901760
        %v2228 = vsub.f32 %v1532, %v2227
        %2229 = vmatpush2.msra.mxu0 %v2228
        %v2230 = vand.u32 %v1531, 4294901760
        %v2231 = vsub.f32 %v1531, %v2230
        %2232 = vmatprep.subr.mxu0 %v2231
        %v2233 = vand.u32 %v1530, 4294901760
        %v2234 = vsub.f32 %v1530, %v2233
        %2235 = vmatpush2.msra.mxu0 %v2234
        %v2236 = vand.u32 %v1529, 4294901760
        %v2237 = vsub.f32 %v1529, %v2236
        %2238 = vmatprep.subr.mxu0 %v2237
        %v2239 = vand.u32 %v1528, 4294901760
        %v2240 = vsub.f32 %v1528, %v2239
        %2241 = vmatpush2.msra.mxu0 %v2240
        %v2242 = vand.u32 %v1527, 4294901760
        %v2243 = vsub.f32 %v1527, %v2242
        %2244 = vmatprep.subr.mxu0 %v2243
        %v2245 = vand.u32 %v1526, 4294901760
        %v2246 = vsub.f32 %v1526, %v2245
        %2247 = vmatpush2.msra.mxu0 %v2246
        %v2248 = vand.u32 %v1525, 4294901760
        %v2249 = vsub.f32 %v1525, %v2248
        %2250 = vmatprep.subr.mxu0 %v2249
        %v2251 = vand.u32 %v1524, 4294901760
        %v2252 = vsub.f32 %v1524, %v2251
        %2253 = vmatpush2.msra.mxu0 %v2252
        %v2254 = vand.u32 %v1523, 4294901760
        %v2255 = vsub.f32 %v1523, %v2254
        %2256 = vmatprep.subr.mxu0 %v2255
        %v2257 = vand.u32 %v1522, 4294901760
        %v2258 = vsub.f32 %v1522, %v2257
        %2259 = vmatpush2.msra.mxu0 %v2258
        %v2260 = vand.u32 %v1521, 4294901760
        %v2261 = vsub.f32 %v1521, %v2260
        %2262 = vmatprep.subr.mxu0 %v2261
        %v2263 = vand.u32 %v1520, 4294901760
        %v2264 = vsub.f32 %v1520, %v2263
        %2265 = vmatpush2.msra.mxu0 %v2264
        %v2266 = vand.u32 %v1519, 4294901760
        %v2267 = vsub.f32 %v1519, %v2266
        %2268 = vmatprep.subr.mxu0 %v2267
        %v2269 = vand.u32 %v1518, 4294901760
        %v2270 = vsub.f32 %v1518, %v2269
        %2271 = vmatpush2.msra.mxu0 %v2270
        %v2272 = vand.u32 %v1517, 4294901760
        %v2273 = vsub.f32 %v1517, %v2272
        %2274 = vmatprep.subr.mxu0 %v2273
        %v2275 = vand.u32 %v1516, 4294901760
        %v2276 = vsub.f32 %v1516, %v2275
        %2277 = vmatpush2.msra.mxu0 %v2276
        %v2278 = vand.u32 %v1419, 4294901760
        %v2279 = vsub.f32 %v1419, %v2278
        %2280 = vmatprep.mubr.f32.mxu0 %v2279
        %v2281 = vand.u32 %v1410, 4294901760
        %v2282 = vsub.f32 %v1410, %v2281
        %2283 = vmatmul.mubr.f32.gmra.mxu0 %v2282
        %v2284 = vpop.f32.mrf.mxu0
        %v2285 = vadd.f32 %v2082, %v2284
        %v2286 = vpop.f32.mrf.mxu0
        %v2287 = vadd.f32 %v2084, %v2286
        %2288 = vdwg.mxu0
        %v2289 = vand.u32 %v1515, 4294901760
        %2290 = vmatprep.subr.mxu0 %v2289
        %v2291 = vand.u32 %v1514, 4294901760
        %2292 = vmatpush1.msra.mxu0 %v2291
        %v2293 = vand.u32 %v1513, 4294901760
        %2294 = vmatprep.subr.mxu0 %v2293
        %v2295 = vand.u32 %v1512, 4294901760
        %2296 = vmatpush1.msra.mxu0 %v2295
        %v2297 = vand.u32 %v1511, 4294901760
        %2298 = vmatprep.subr.mxu0 %v2297
        %v2299 = vand.u32 %v1510, 4294901760
        %2300 = vmatpush1.msra.mxu0 %v2299
        %v2301 = vand.u32 %v1509, 4294901760
        %2302 = vmatprep.subr.mxu0 %v2301
        %v2303 = vand.u32 %v1508, 4294901760
        %2304 = vmatpush1.msra.mxu0 %v2303
        %v2305 = vand.u32 %v1507, 4294901760
        %2306 = vmatprep.subr.mxu0 %v2305
        %v2307 = vand.u32 %v1506, 4294901760
        %2308 = vmatpush1.msra.mxu0 %v2307
        %v2309 = vand.u32 %v1505, 4294901760
        %2310 = vmatprep.subr.mxu0 %v2309
        %v2311 = vand.u32 %v1504, 4294901760
        %2312 = vmatpush1.msra.mxu0 %v2311
        %v2313 = vand.u32 %v1503, 4294901760
        %2314 = vmatprep.subr.mxu0 %v2313
        %v2315 = vand.u32 %v1502, 4294901760
        %2316 = vmatpush1.msra.mxu0 %v2315
        %v2317 = vand.u32 %v1501, 4294901760
        %2318 = vmatprep.subr.mxu0 %v2317
        %v2319 = vand.u32 %v1500, 4294901760
        %2320 = vmatpush1.msra.mxu0 %v2319
        %v2321 = vand.u32 %v1499, 4294901760
        %2322 = vmatprep.subr.mxu0 %v2321
        %v2323 = vand.u32 %v1498, 4294901760
        %2324 = vmatpush1.msra.mxu0 %v2323
        %v2325 = vand.u32 %v1497, 4294901760
        %2326 = vmatprep.subr.mxu0 %v2325
        %v2327 = vand.u32 %v1496, 4294901760
        %2328 = vmatpush1.msra.mxu0 %v2327
        %v2329 = vand.u32 %v1495, 4294901760
        %2330 = vmatprep.subr.mxu0 %v2329
        %v2331 = vand.u32 %v1494, 4294901760
        %2332 = vmatpush1.msra.mxu0 %v2331
        %v2333 = vand.u32 %v1493, 4294901760
        %2334 = vmatprep.subr.mxu0 %v2333
        %v2335 = vand.u32 %v1492, 4294901760
        %2336 = vmatpush1.msra.mxu0 %v2335
        %v2337 = vand.u32 %v1491, 4294901760
        %2338 = vmatprep.subr.mxu0 %v2337
        %v2339 = vand.u32 %v1490, 4294901760
        %2340 = vmatpush1.msra.mxu0 %v2339
        %v2341 = vand.u32 %v1489, 4294901760
        %2342 = vmatprep.subr.mxu0 %v2341
        %v2343 = vand.u32 %v1488, 4294901760
        %2344 = vmatpush1.msra.mxu0 %v2343
        %v2345 = vand.u32 %v1487, 4294901760
        %2346 = vmatprep.subr.mxu0 %v2345
        %v2347 = vand.u32 %v1486, 4294901760
        %2348 = vmatpush1.msra.mxu0 %v2347
        %v2349 = vand.u32 %v1485, 4294901760
        %2350 = vmatprep.subr.mxu0 %v2349
        %v2351 = vand.u32 %v1484, 4294901760
        %2352 = vmatpush1.msra.mxu0 %v2351
        %v2353 = vand.u32 %v1547, 4294901760
        %2354 = vmatprep.subr.mxu0 %v2353
        %v2355 = vand.u32 %v1546, 4294901760
        %2356 = vmatpush2.msra.mxu0 %v2355
        %v2357 = vand.u32 %v1545, 4294901760
        %2358 = vmatprep.subr.mxu0 %v2357
        %v2359 = vand.u32 %v1544, 4294901760
        %2360 = vmatpush2.msra.mxu0 %v2359
        %v2361 = vand.u32 %v1543, 4294901760
        %2362 = vmatprep.subr.mxu0 %v2361
        %v2363 = vand.u32 %v1542, 4294901760
        %2364 = vmatpush2.msra.mxu0 %v2363
        %v2365 = vand.u32 %v1541, 4294901760
        %2366 = vmatprep.subr.mxu0 %v2365
        %v2367 = vand.u32 %v1540, 4294901760
        %2368 = vmatpush2.msra.mxu0 %v2367
        %v2369 = vand.u32 %v1539, 4294901760
        %2370 = vmatprep.subr.mxu0 %v2369
        %v2371 = vand.u32 %v1538, 4294901760
        %2372 = vmatpush2.msra.mxu0 %v2371
        %v2373 = vand.u32 %v1537, 4294901760
        %2374 = vmatprep.subr.mxu0 %v2373
        %v2375 = vand.u32 %v1536, 4294901760
        %2376 = vmatpush2.msra.mxu0 %v2375
        %v2377 = vand.u32 %v1535, 4294901760
        %2378 = vmatprep.subr.mxu0 %v2377
        %v2379 = vand.u32 %v1534, 4294901760
        %2380 = vmatpush2.msra.mxu0 %v2379
        %v2381 = vand.u32 %v1533, 4294901760
        %2382 = vmatprep.subr.mxu0 %v2381
        %v2383 = vand.u32 %v1532, 4294901760
        %2384 = vmatpush2.msra.mxu0 %v2383
        %v2385 = vand.u32 %v1531, 4294901760
        %2386 = vmatprep.subr.mxu0 %v2385
        %v2387 = vand.u32 %v1530, 4294901760
        %2388 = vmatpush2.msra.mxu0 %v2387
        %v2389 = vand.u32 %v1529, 4294901760
        %2390 = vmatprep.subr.mxu0 %v2389
        %v2391 = vand.u32 %v1528, 4294901760
        %2392 = vmatpush2.msra.mxu0 %v2391
        %v2393 = vand.u32 %v1527, 4294901760
        %2394 = vmatprep.subr.mxu0 %v2393
        %v2395 = vand.u32 %v1526, 4294901760
        %2396 = vmatpush2.msra.mxu0 %v2395
        %v2397 = vand.u32 %v1525, 4294901760
        %2398 = vmatprep.subr.mxu0 %v2397
        %v2399 = vand.u32 %v1524, 4294901760
        %2400 = vmatpush2.msra.mxu0 %v2399
        %v2401 = vand.u32 %v1523, 4294901760
        %2402 = vmatprep.subr.mxu0 %v2401
        %v2403 = vand.u32 %v1522, 4294901760
        %2404 = vmatpush2.msra.mxu0 %v2403
        %v2405 = vand.u32 %v1521, 4294901760
        %2406 = vmatprep.subr.mxu0 %v2405
        %v2407 = vand.u32 %v1520, 4294901760
        %2408 = vmatpush2.msra.mxu0 %v2407
        %v2409 = vand.u32 %v1519, 4294901760
        %2410 = vmatprep.subr.mxu0 %v2409
        %v2411 = vand.u32 %v1518, 4294901760
        %2412 = vmatpush2.msra.mxu0 %v2411
        %v2413 = vand.u32 %v1517, 4294901760
        %2414 = vmatprep.subr.mxu0 %v2413
        %v2415 = vand.u32 %v1516, 4294901760
        %2416 = vmatpush2.msra.mxu0 %v2415
        %v2417 = vand.u32 %v1419, 4294901760
        %v2418 = vsub.f32 %v1419, %v2417
        %v2419 = vand.u32 %v2418, 4294901760
        %2420 = vmatprep.mubr.f32.mxu0 %v2419
        %v2421 = vand.u32 %v1410, 4294901760
        %v2422 = vsub.f32 %v1410, %v2421
        %v2423 = vand.u32 %v2422, 4294901760
        %2424 = vmatmul.mubr.f32.gmra.mxu0 %v2423
        %v2425 = vpop.f32.mrf.mxu0
        %v2426 = vadd.f32 %v2285, %v2425
        %v2427 = vpop.f32.mrf.mxu0
        %v2428 = vadd.f32 %v2287, %v2427
        %2429 = vdwg.mxu0
        %v2430 = vand.u32 %v1515, 4294901760
        %v2431 = vsub.f32 %v1515, %v2430
        %v2432 = vand.u32 %v2431, 4294901760
        %2433 = vmatprep.subr.mxu0 %v2432
        %v2434 = vand.u32 %v1514, 4294901760
        %v2435 = vsub.f32 %v1514, %v2434
        %v2436 = vand.u32 %v2435, 4294901760
        %2437 = vmatpush1.msra.mxu0 %v2436
        %v2438 = vand.u32 %v1513, 4294901760
        %v2439 = vsub.f32 %v1513, %v2438
        %v2440 = vand.u32 %v2439, 4294901760
        %2441 = vmatprep.subr.mxu0 %v2440
        %v2442 = vand.u32 %v1512, 4294901760
        %v2443 = vsub.f32 %v1512, %v2442
        %v2444 = vand.u32 %v2443, 4294901760
        %2445 = vmatpush1.msra.mxu0 %v2444
        %v2446 = vand.u32 %v1511, 4294901760
        %v2447 = vsub.f32 %v1511, %v2446
        %v2448 = vand.u32 %v2447, 4294901760
        %2449 = vmatprep.subr.mxu0 %v2448
        %v2450 = vand.u32 %v1510, 4294901760
        %v2451 = vsub.f32 %v1510, %v2450
        %v2452 = vand.u32 %v2451, 4294901760
        %2453 = vmatpush1.msra.mxu0 %v2452
        %v2454 = vand.u32 %v1509, 4294901760
        %v2455 = vsub.f32 %v1509, %v2454
        %v2456 = vand.u32 %v2455, 4294901760
        %2457 = vmatprep.subr.mxu0 %v2456
        %v2458 = vand.u32 %v1508, 4294901760
        %v2459 = vsub.f32 %v1508, %v2458
        %v2460 = vand.u32 %v2459, 4294901760
        %2461 = vmatpush1.msra.mxu0 %v2460
        %v2462 = vand.u32 %v1507, 4294901760
        %v2463 = vsub.f32 %v1507, %v2462
        %v2464 = vand.u32 %v2463, 4294901760
        %2465 = vmatprep.subr.mxu0 %v2464
        %v2466 = vand.u32 %v1506, 4294901760
        %v2467 = vsub.f32 %v1506, %v2466
        %v2468 = vand.u32 %v2467, 4294901760
        %2469 = vmatpush1.msra.mxu0 %v2468
        %v2470 = vand.u32 %v1505, 4294901760
        %v2471 = vsub.f32 %v1505, %v2470
        %v2472 = vand.u32 %v2471, 4294901760
        %2473 = vmatprep.subr.mxu0 %v2472
        %v2474 = vand.u32 %v1504, 4294901760
        %v2475 = vsub.f32 %v1504, %v2474
        %v2476 = vand.u32 %v2475, 4294901760
        %2477 = vmatpush1.msra.mxu0 %v2476
        %v2478 = vand.u32 %v1503, 4294901760
        %v2479 = vsub.f32 %v1503, %v2478
        %v2480 = vand.u32 %v2479, 4294901760
        %2481 = vmatprep.subr.mxu0 %v2480
        %v2482 = vand.u32 %v1502, 4294901760
        %v2483 = vsub.f32 %v1502, %v2482
        %v2484 = vand.u32 %v2483, 4294901760
        %2485 = vmatpush1.msra.mxu0 %v2484
        %v2486 = vand.u32 %v1501, 4294901760
        %v2487 = vsub.f32 %v1501, %v2486
        %v2488 = vand.u32 %v2487, 4294901760
        %2489 = vmatprep.subr.mxu0 %v2488
        %v2490 = vand.u32 %v1500, 4294901760
        %v2491 = vsub.f32 %v1500, %v2490
        %v2492 = vand.u32 %v2491, 4294901760
        %2493 = vmatpush1.msra.mxu0 %v2492
        %v2494 = vand.u32 %v1499, 4294901760
        %v2495 = vsub.f32 %v1499, %v2494
        %v2496 = vand.u32 %v2495, 4294901760
        %2497 = vmatprep.subr.mxu0 %v2496
        %v2498 = vand.u32 %v1498, 4294901760
        %v2499 = vsub.f32 %v1498, %v2498
        %v2500 = vand.u32 %v2499, 4294901760
        %2501 = vmatpush1.msra.mxu0 %v2500
        %v2502 = vand.u32 %v1497, 4294901760
        %v2503 = vsub.f32 %v1497, %v2502
        %v2504 = vand.u32 %v2503, 4294901760
        %2505 = vmatprep.subr.mxu0 %v2504
        %v2506 = vand.u32 %v1496, 4294901760
        %v2507 = vsub.f32 %v1496, %v2506
        %v2508 = vand.u32 %v2507, 4294901760
        %2509 = vmatpush1.msra.mxu0 %v2508
        %v2510 = vand.u32 %v1495, 4294901760
        %v2511 = vsub.f32 %v1495, %v2510
        %v2512 = vand.u32 %v2511, 4294901760
        %2513 = vmatprep.subr.mxu0 %v2512
        %v2514 = vand.u32 %v1494, 4294901760
        %v2515 = vsub.f32 %v1494, %v2514
        %v2516 = vand.u32 %v2515, 4294901760
        %2517 = vmatpush1.msra.mxu0 %v2516
        %v2518 = vand.u32 %v1493, 4294901760
        %v2519 = vsub.f32 %v1493, %v2518
        %v2520 = vand.u32 %v2519, 4294901760
        %2521 = vmatprep.subr.mxu0 %v2520
        %v2522 = vand.u32 %v1492, 4294901760
        %v2523 = vsub.f32 %v1492, %v2522
        %v2524 = vand.u32 %v2523, 4294901760
        %2525 = vmatpush1.msra.mxu0 %v2524
        %v2526 = vand.u32 %v1491, 4294901760
        %v2527 = vsub.f32 %v1491, %v2526
        %v2528 = vand.u32 %v2527, 4294901760
        %2529 = vmatprep.subr.mxu0 %v2528
        %v2530 = vand.u32 %v1490, 4294901760
        %v2531 = vsub.f32 %v1490, %v2530
        %v2532 = vand.u32 %v2531, 4294901760
        %2533 = vmatpush1.msra.mxu0 %v2532
        %v2534 = vand.u32 %v1489, 4294901760
        %v2535 = vsub.f32 %v1489, %v2534
        %v2536 = vand.u32 %v2535, 4294901760
        %2537 = vmatprep.subr.mxu0 %v2536
        %v2538 = vand.u32 %v1488, 4294901760
        %v2539 = vsub.f32 %v1488, %v2538
        %v2540 = vand.u32 %v2539, 4294901760
        %2541 = vmatpush1.msra.mxu0 %v2540
        %v2542 = vand.u32 %v1487, 4294901760
        %v2543 = vsub.f32 %v1487, %v2542
        %v2544 = vand.u32 %v2543, 4294901760
        %2545 = vmatprep.subr.mxu0 %v2544
        %v2546 = vand.u32 %v1486, 4294901760
        %v2547 = vsub.f32 %v1486, %v2546
        %v2548 = vand.u32 %v2547, 4294901760
        %2549 = vmatpush1.msra.mxu0 %v2548
        %v2550 = vand.u32 %v1485, 4294901760
        %v2551 = vsub.f32 %v1485, %v2550
        %v2552 = vand.u32 %v2551, 4294901760
        %2553 = vmatprep.subr.mxu0 %v2552
        %v2554 = vand.u32 %v1484, 4294901760
        %v2555 = vsub.f32 %v1484, %v2554
        %v2556 = vand.u32 %v2555, 4294901760
        %2557 = vmatpush1.msra.mxu0 %v2556
        %v2558 = vand.u32 %v1547, 4294901760
        %v2559 = vsub.f32 %v1547, %v2558
        %v2560 = vand.u32 %v2559, 4294901760
        %2561 = vmatprep.subr.mxu0 %v2560
        %v2562 = vand.u32 %v1546, 4294901760
        %v2563 = vsub.f32 %v1546, %v2562
        %v2564 = vand.u32 %v2563, 4294901760
        %2565 = vmatpush2.msra.mxu0 %v2564
        %v2566 = vand.u32 %v1545, 4294901760
        %v2567 = vsub.f32 %v1545, %v2566
        %v2568 = vand.u32 %v2567, 4294901760
        %2569 = vmatprep.subr.mxu0 %v2568
        %v2570 = vand.u32 %v1544, 4294901760
        %v2571 = vsub.f32 %v1544, %v2570
        %v2572 = vand.u32 %v2571, 4294901760
        %2573 = vmatpush2.msra.mxu0 %v2572
        %v2574 = vand.u32 %v1543, 4294901760
        %v2575 = vsub.f32 %v1543, %v2574
        %v2576 = vand.u32 %v2575, 4294901760
        %2577 = vmatprep.subr.mxu0 %v2576
        %v2578 = vand.u32 %v1542, 4294901760
        %v2579 = vsub.f32 %v1542, %v2578
        %v2580 = vand.u32 %v2579, 4294901760
        %2581 = vmatpush2.msra.mxu0 %v2580
        %v2582 = vand.u32 %v1541, 4294901760
        %v2583 = vsub.f32 %v1541, %v2582
        %v2584 = vand.u32 %v2583, 4294901760
        %2585 = vmatprep.subr.mxu0 %v2584
        %v2586 = vand.u32 %v1540, 4294901760
        %v2587 = vsub.f32 %v1540, %v2586
        %v2588 = vand.u32 %v2587, 4294901760
        %2589 = vmatpush2.msra.mxu0 %v2588
        %v2590 = vand.u32 %v1539, 4294901760
        %v2591 = vsub.f32 %v1539, %v2590
        %v2592 = vand.u32 %v2591, 4294901760
        %2593 = vmatprep.subr.mxu0 %v2592
        %v2594 = vand.u32 %v1538, 4294901760
        %v2595 = vsub.f32 %v1538, %v2594
        %v2596 = vand.u32 %v2595, 4294901760
        %2597 = vmatpush2.msra.mxu0 %v2596
        %v2598 = vand.u32 %v1537, 4294901760
        %v2599 = vsub.f32 %v1537, %v2598
        %v2600 = vand.u32 %v2599, 4294901760
        %2601 = vmatprep.subr.mxu0 %v2600
        %v2602 = vand.u32 %v1536, 4294901760
        %v2603 = vsub.f32 %v1536, %v2602
        %v2604 = vand.u32 %v2603, 4294901760
        %2605 = vmatpush2.msra.mxu0 %v2604
        %v2606 = vand.u32 %v1535, 4294901760
        %v2607 = vsub.f32 %v1535, %v2606
        %v2608 = vand.u32 %v2607, 4294901760
        %2609 = vmatprep.subr.mxu0 %v2608
        %v2610 = vand.u32 %v1534, 4294901760
        %v2611 = vsub.f32 %v1534, %v2610
        %v2612 = vand.u32 %v2611, 4294901760
        %2613 = vmatpush2.msra.mxu0 %v2612
        %v2614 = vand.u32 %v1533, 4294901760
        %v2615 = vsub.f32 %v1533, %v2614
        %v2616 = vand.u32 %v2615, 4294901760
        %2617 = vmatprep.subr.mxu0 %v2616
        %v2618 = vand.u32 %v1532, 4294901760
        %v2619 = vsub.f32 %v1532, %v2618
        %v2620 = vand.u32 %v2619, 4294901760
        %2621 = vmatpush2.msra.mxu0 %v2620
        %v2622 = vand.u32 %v1531, 4294901760
        %v2623 = vsub.f32 %v1531, %v2622
        %v2624 = vand.u32 %v2623, 4294901760
        %2625 = vmatprep.subr.mxu0 %v2624
        %v2626 = vand.u32 %v1530, 4294901760
        %v2627 = vsub.f32 %v1530, %v2626
        %v2628 = vand.u32 %v2627, 4294901760
        %2629 = vmatpush2.msra.mxu0 %v2628
        %v2630 = vand.u32 %v1529, 4294901760
        %v2631 = vsub.f32 %v1529, %v2630
        %v2632 = vand.u32 %v2631, 4294901760
        %2633 = vmatprep.subr.mxu0 %v2632
        %v2634 = vand.u32 %v1528, 4294901760
        %v2635 = vsub.f32 %v1528, %v2634
        %v2636 = vand.u32 %v2635, 4294901760
        %2637 = vmatpush2.msra.mxu0 %v2636
        %v2638 = vand.u32 %v1527, 4294901760
        %v2639 = vsub.f32 %v1527, %v2638
        %v2640 = vand.u32 %v2639, 4294901760
        %2641 = vmatprep.subr.mxu0 %v2640
        %v2642 = vand.u32 %v1526, 4294901760
        %v2643 = vsub.f32 %v1526, %v2642
        %v2644 = vand.u32 %v2643, 4294901760
        %2645 = vmatpush2.msra.mxu0 %v2644
        %v2646 = vand.u32 %v1525, 4294901760
        %v2647 = vsub.f32 %v1525, %v2646
        %v2648 = vand.u32 %v2647, 4294901760
        %2649 = vmatprep.subr.mxu0 %v2648
        %v2650 = vand.u32 %v1524, 4294901760
        %v2651 = vsub.f32 %v1524, %v2650
        %v2652 = vand.u32 %v2651, 4294901760
        %2653 = vmatpush2.msra.mxu0 %v2652
        %v2654 = vand.u32 %v1523, 4294901760
        %v2655 = vsub.f32 %v1523, %v2654
        %v2656 = vand.u32 %v2655, 4294901760
        %2657 = vmatprep.subr.mxu0 %v2656
        %v2658 = vand.u32 %v1522, 4294901760
        %v2659 = vsub.f32 %v1522, %v2658
        %v2660 = vand.u32 %v2659, 4294901760
        %2661 = vmatpush2.msra.mxu0 %v2660
        %v2662 = vand.u32 %v1521, 4294901760
        %v2663 = vsub.f32 %v1521, %v2662
        %v2664 = vand.u32 %v2663, 4294901760
        %2665 = vmatprep.subr.mxu0 %v2664
        %v2666 = vand.u32 %v1520, 4294901760
        %v2667 = vsub.f32 %v1520, %v2666
        %v2668 = vand.u32 %v2667, 4294901760
        %2669 = vmatpush2.msra.mxu0 %v2668
        %v2670 = vand.u32 %v1519, 4294901760
        %v2671 = vsub.f32 %v1519, %v2670
        %v2672 = vand.u32 %v2671, 4294901760
        %2673 = vmatprep.subr.mxu0 %v2672
        %v2674 = vand.u32 %v1518, 4294901760
        %v2675 = vsub.f32 %v1518, %v2674
        %v2676 = vand.u32 %v2675, 4294901760
        %2677 = vmatpush2.msra.mxu0 %v2676
        %v2678 = vand.u32 %v1517, 4294901760
        %v2679 = vsub.f32 %v1517, %v2678
        %v2680 = vand.u32 %v2679, 4294901760
        %2681 = vmatprep.subr.mxu0 %v2680
        %v2682 = vand.u32 %v1516, 4294901760
        %v2683 = vsub.f32 %v1516, %v2682
        %v2684 = vand.u32 %v2683, 4294901760
        %2685 = vmatpush2.msra.mxu0 %v2684
        %v2686 = vand.u32 %v1419, 4294901760
        %2687 = vmatprep.mubr.f32.mxu0 %v2686
        %v2688 = vand.u32 %v1410, 4294901760
        %2689 = vmatmul.mubr.f32.gmra.mxu0 %v2688
        %v2690 = vpop.f32.mrf.mxu0
        %v2691 = vadd.f32 %v2426, %v2690
        %v2692 = vpop.f32.mrf.mxu0
        %v2693 = vadd.f32 %v2428, %v2692
        %2694 = vdwg.mxu0
        %v2695 = vand.u32 %v1515, 4294901760
        %2696 = vmatprep.subr.mxu0 %v2695
        %v2697 = vand.u32 %v1514, 4294901760
        %2698 = vmatpush1.msra.mxu0 %v2697
        %v2699 = vand.u32 %v1513, 4294901760
        %2700 = vmatprep.subr.mxu0 %v2699
        %v2701 = vand.u32 %v1512, 4294901760
        %2702 = vmatpush1.msra.mxu0 %v2701
        %v2703 = vand.u32 %v1511, 4294901760
        %2704 = vmatprep.subr.mxu0 %v2703
        %v2705 = vand.u32 %v1510, 4294901760
        %2706 = vmatpush1.msra.mxu0 %v2705
        %v2707 = vand.u32 %v1509, 4294901760
        %2708 = vmatprep.subr.mxu0 %v2707
        %v2709 = vand.u32 %v1508, 4294901760
        %2710 = vmatpush1.msra.mxu0 %v2709
        %v2711 = vand.u32 %v1507, 4294901760
        %2712 = vmatprep.subr.mxu0 %v2711
        %v2713 = vand.u32 %v1506, 4294901760
        %2714 = vmatpush1.msra.mxu0 %v2713
        %v2715 = vand.u32 %v1505, 4294901760
        %2716 = vmatprep.subr.mxu0 %v2715
        %v2717 = vand.u32 %v1504, 4294901760
        %2718 = vmatpush1.msra.mxu0 %v2717
        %v2719 = vand.u32 %v1503, 4294901760
        %2720 = vmatprep.subr.mxu0 %v2719
        %v2721 = vand.u32 %v1502, 4294901760
        %2722 = vmatpush1.msra.mxu0 %v2721
        %v2723 = vand.u32 %v1501, 4294901760
        %2724 = vmatprep.subr.mxu0 %v2723
        %v2725 = vand.u32 %v1500, 4294901760
        %2726 = vmatpush1.msra.mxu0 %v2725
        %v2727 = vand.u32 %v1499, 4294901760
        %2728 = vmatprep.subr.mxu0 %v2727
        %v2729 = vand.u32 %v1498, 4294901760
        %2730 = vmatpush1.msra.mxu0 %v2729
        %v2731 = vand.u32 %v1497, 4294901760
        %2732 = vmatprep.subr.mxu0 %v2731
        %v2733 = vand.u32 %v1496, 4294901760
        %2734 = vmatpush1.msra.mxu0 %v2733
        %v2735 = vand.u32 %v1495, 4294901760
        %2736 = vmatprep.subr.mxu0 %v2735
        %v2737 = vand.u32 %v1494, 4294901760
        %2738 = vmatpush1.msra.mxu0 %v2737
        %v2739 = vand.u32 %v1493, 4294901760
        %2740 = vmatprep.subr.mxu0 %v2739
        %v2741 = vand.u32 %v1492, 4294901760
        %2742 = vmatpush1.msra.mxu0 %v2741
        %v2743 = vand.u32 %v1491, 4294901760
        %2744 = vmatprep.subr.mxu0 %v2743
        %v2745 = vand.u32 %v1490, 4294901760
        %2746 = vmatpush1.msra.mxu0 %v2745
        %v2747 = vand.u32 %v1489, 4294901760
        %2748 = vmatprep.subr.mxu0 %v2747
        %v2749 = vand.u32 %v1488, 4294901760
        %2750 = vmatpush1.msra.mxu0 %v2749
        %v2751 = vand.u32 %v1487, 4294901760
        %2752 = vmatprep.subr.mxu0 %v2751
        %v2753 = vand.u32 %v1486, 4294901760
        %2754 = vmatpush1.msra.mxu0 %v2753
        %v2755 = vand.u32 %v1485, 4294901760
        %2756 = vmatprep.subr.mxu0 %v2755
        %v2757 = vand.u32 %v1484, 4294901760
        %2758 = vmatpush1.msra.mxu0 %v2757
        %v2759 = vand.u32 %v1547, 4294901760
        %2760 = vmatprep.subr.mxu0 %v2759
        %v2761 = vand.u32 %v1546, 4294901760
        %2762 = vmatpush2.msra.mxu0 %v2761
        %v2763 = vand.u32 %v1545, 4294901760
        %2764 = vmatprep.subr.mxu0 %v2763
        %v2765 = vand.u32 %v1544, 4294901760
        %2766 = vmatpush2.msra.mxu0 %v2765
        %v2767 = vand.u32 %v1543, 4294901760
        %2768 = vmatprep.subr.mxu0 %v2767
        %v2769 = vand.u32 %v1542, 4294901760
        %2770 = vmatpush2.msra.mxu0 %v2769
        %v2771 = vand.u32 %v1541, 4294901760
        %2772 = vmatprep.subr.mxu0 %v2771
        %v2773 = vand.u32 %v1540, 4294901760
        %2774 = vmatpush2.msra.mxu0 %v2773
        %v2775 = vand.u32 %v1539, 4294901760
        %2776 = vmatprep.subr.mxu0 %v2775
        %v2777 = vand.u32 %v1538, 4294901760
        %2778 = vmatpush2.msra.mxu0 %v2777
        %v2779 = vand.u32 %v1537, 4294901760
        %2780 = vmatprep.subr.mxu0 %v2779
        %v2781 = vand.u32 %v1536, 4294901760
        %2782 = vmatpush2.msra.mxu0 %v2781
        %v2783 = vand.u32 %v1535, 4294901760
        %2784 = vmatprep.subr.mxu0 %v2783
        %v2785 = vand.u32 %v1534, 4294901760
        %2786 = vmatpush2.msra.mxu0 %v2785
        %v2787 = vand.u32 %v1533, 4294901760
        %2788 = vmatprep.subr.mxu0 %v2787
        %v2789 = vand.u32 %v1532, 4294901760
        %2790 = vmatpush2.msra.mxu0 %v2789
        %v2791 = vand.u32 %v1531, 4294901760
        %2792 = vmatprep.subr.mxu0 %v2791
        %v2793 = vand.u32 %v1530, 4294901760
        %2794 = vmatpush2.msra.mxu0 %v2793
        %v2795 = vand.u32 %v1529, 4294901760
        %2796 = vmatprep.subr.mxu0 %v2795
        %v2797 = vand.u32 %v1528, 4294901760
        %2798 = vmatpush2.msra.mxu0 %v2797
        %v2799 = vand.u32 %v1527, 4294901760
        %2800 = vmatprep.subr.mxu0 %v2799
        %v2801 = vand.u32 %v1526, 4294901760
        %2802 = vmatpush2.msra.mxu0 %v2801
        %v2803 = vand.u32 %v1525, 4294901760
        %2804 = vmatprep.subr.mxu0 %v2803
        %v2805 = vand.u32 %v1524, 4294901760
        %2806 = vmatpush2.msra.mxu0 %v2805
        %v2807 = vand.u32 %v1523, 4294901760
        %2808 = vmatprep.subr.mxu0 %v2807
        %v2809 = vand.u32 %v1522, 4294901760
        %2810 = vmatpush2.msra.mxu0 %v2809
        %v2811 = vand.u32 %v1521, 4294901760
        %2812 = vmatprep.subr.mxu0 %v2811
        %v2813 = vand.u32 %v1520, 4294901760
        %2814 = vmatpush2.msra.mxu0 %v2813
        %v2815 = vand.u32 %v1519, 4294901760
        %2816 = vmatprep.subr.mxu0 %v2815
        %v2817 = vand.u32 %v1518, 4294901760
        %2818 = vmatpush2.msra.mxu0 %v2817
        %v2819 = vand.u32 %v1517, 4294901760
        %2820 = vmatprep.subr.mxu0 %v2819
        %v2821 = vand.u32 %v1516, 4294901760
        %2822 = vmatpush2.msra.mxu0 %v2821
        %v2823 = vand.u32 %v1419, 4294901760
        %2824 = vmatprep.mubr.f32.mxu0 %v2823
        %v2825 = vand.u32 %v1410, 4294901760
        %2826 = vmatmul.mubr.f32.gmra.mxu0 %v2825
        %v2827 = vpop.f32.mrf.mxu0
        %v2828 = vadd.f32 %v2691, %v2827
        %v2829 = vpop.f32.mrf.mxu0
        %v2830 = vadd.f32 %v2693, %v2829
        %2831 = vdwg.mxu0
        %v2832 = vand.u32 %v1451, 4294901760
        %2833 = vmatprep.subr.mxu0 %v2832
        %v2834 = vand.u32 %v1450, 4294901760
        %2835 = vmatpush1.msra.mxu0 %v2834
        %v2836 = vand.u32 %v1449, 4294901760
        %2837 = vmatprep.subr.mxu0 %v2836
        %v2838 = vand.u32 %v1448, 4294901760
        %2839 = vmatpush1.msra.mxu0 %v2838
        %v2840 = vand.u32 %v1447, 4294901760
        %2841 = vmatprep.subr.mxu0 %v2840
        %v2842 = vand.u32 %v1446, 4294901760
        %2843 = vmatpush1.msra.mxu0 %v2842
        %v2844 = vand.u32 %v1445, 4294901760
        %2845 = vmatprep.subr.mxu0 %v2844
        %v2846 = vand.u32 %v1444, 4294901760
        %2847 = vmatpush1.msra.mxu0 %v2846
        %v2848 = vand.u32 %v1443, 4294901760
        %2849 = vmatprep.subr.mxu0 %v2848
        %v2850 = vand.u32 %v1442, 4294901760
        %2851 = vmatpush1.msra.mxu0 %v2850
        %v2852 = vand.u32 %v1441, 4294901760
        %2853 = vmatprep.subr.mxu0 %v2852
        %v2854 = vand.u32 %v1440, 4294901760
        %2855 = vmatpush1.msra.mxu0 %v2854
        %v2856 = vand.u32 %v1439, 4294901760
        %2857 = vmatprep.subr.mxu0 %v2856
        %v2858 = vand.u32 %v1438, 4294901760
        %2859 = vmatpush1.msra.mxu0 %v2858
        %v2860 = vand.u32 %v1437, 4294901760
        %2861 = vmatprep.subr.mxu0 %v2860
        %v2862 = vand.u32 %v1436, 4294901760
        %2863 = vmatpush1.msra.mxu0 %v2862
        %v2864 = vand.u32 %v1435, 4294901760
        %2865 = vmatprep.subr.mxu0 %v2864
        %v2866 = vand.u32 %v1434, 4294901760
        %2867 = vmatpush1.msra.mxu0 %v2866
        %v2868 = vand.u32 %v1433, 4294901760
        %2869 = vmatprep.subr.mxu0 %v2868
        %v2870 = vand.u32 %v1432, 4294901760
        %2871 = vmatpush1.msra.mxu0 %v2870
        %v2872 = vand.u32 %v1431, 4294901760
        %2873 = vmatprep.subr.mxu0 %v2872
        %v2874 = vand.u32 %v1430, 4294901760
        %2875 = vmatpush1.msra.mxu0 %v2874
        %v2876 = vand.u32 %v1429, 4294901760
        %2877 = vmatprep.subr.mxu0 %v2876
        %v2878 = vand.u32 %v1428, 4294901760
        %2879 = vmatpush1.msra.mxu0 %v2878
        %v2880 = vand.u32 %v1427, 4294901760
        %2881 = vmatprep.subr.mxu0 %v2880
        %v2882 = vand.u32 %v1426, 4294901760
        %2883 = vmatpush1.msra.mxu0 %v2882
        %v2884 = vand.u32 %v1425, 4294901760
        %2885 = vmatprep.subr.mxu0 %v2884
        %v2886 = vand.u32 %v1424, 4294901760
        %2887 = vmatpush1.msra.mxu0 %v2886
        %v2888 = vand.u32 %v1423, 4294901760
        %2889 = vmatprep.subr.mxu0 %v2888
        %v2890 = vand.u32 %v1422, 4294901760
        %2891 = vmatpush1.msra.mxu0 %v2890
        %v2892 = vand.u32 %v1421, 4294901760
        %2893 = vmatprep.subr.mxu0 %v2892
        %v2894 = vand.u32 %v1420, 4294901760
        %2895 = vmatpush1.msra.mxu0 %v2894
        %v2896 = vand.u32 %v1483, 4294901760
        %2897 = vmatprep.subr.mxu0 %v2896
        %v2898 = vand.u32 %v1482, 4294901760
        %2899 = vmatpush2.msra.mxu0 %v2898
        %v2900 = vand.u32 %v1481, 4294901760
        %2901 = vmatprep.subr.mxu0 %v2900
        %v2902 = vand.u32 %v1480, 4294901760
        %2903 = vmatpush2.msra.mxu0 %v2902
        %v2904 = vand.u32 %v1479, 4294901760
        %2905 = vmatprep.subr.mxu0 %v2904
        %v2906 = vand.u32 %v1478, 4294901760
        %2907 = vmatpush2.msra.mxu0 %v2906
        %v2908 = vand.u32 %v1477, 4294901760
        %2909 = vmatprep.subr.mxu0 %v2908
        %v2910 = vand.u32 %v1476, 4294901760
        %2911 = vmatpush2.msra.mxu0 %v2910
        %v2912 = vand.u32 %v1475, 4294901760
        %2913 = vmatprep.subr.mxu0 %v2912
        %v2914 = vand.u32 %v1474, 4294901760
        %2915 = vmatpush2.msra.mxu0 %v2914
        %v2916 = vand.u32 %v1473, 4294901760
        %2917 = vmatprep.subr.mxu0 %v2916
        %v2918 = vand.u32 %v1472, 4294901760
        %2919 = vmatpush2.msra.mxu0 %v2918
        %v2920 = vand.u32 %v1471, 4294901760
        %2921 = vmatprep.subr.mxu0 %v2920
        %v2922 = vand.u32 %v1470, 4294901760
        %2923 = vmatpush2.msra.mxu0 %v2922
        %v2924 = vand.u32 %v1469, 4294901760
        %2925 = vmatprep.subr.mxu0 %v2924
        %v2926 = vand.u32 %v1468, 4294901760
        %2927 = vmatpush2.msra.mxu0 %v2926
        %v2928 = vand.u32 %v1467, 4294901760
        %2929 = vmatprep.subr.mxu0 %v2928
        %v2930 = vand.u32 %v1466, 4294901760
        %2931 = vmatpush2.msra.mxu0 %v2930
        %v2932 = vand.u32 %v1465, 4294901760
        %2933 = vmatprep.subr.mxu0 %v2932
        %v2934 = vand.u32 %v1464, 4294901760
        %2935 = vmatpush2.msra.mxu0 %v2934
        %v2936 = vand.u32 %v1463, 4294901760
        %2937 = vmatprep.subr.mxu0 %v2936
        %v2938 = vand.u32 %v1462, 4294901760
        %2939 = vmatpush2.msra.mxu0 %v2938
        %v2940 = vand.u32 %v1461, 4294901760
        %2941 = vmatprep.subr.mxu0 %v2940
        %v2942 = vand.u32 %v1460, 4294901760
        %2943 = vmatpush2.msra.mxu0 %v2942
        %v2944 = vand.u32 %v1459, 4294901760
        %2945 = vmatprep.subr.mxu0 %v2944
        %v2946 = vand.u32 %v1458, 4294901760
        %2947 = vmatpush2.msra.mxu0 %v2946
        %v2948 = vand.u32 %v1457, 4294901760
        %2949 = vmatprep.subr.mxu0 %v2948
        %v2950 = vand.u32 %v1456, 4294901760
        %2951 = vmatpush2.msra.mxu0 %v2950
        %v2952 = vand.u32 %v1455, 4294901760
        %2953 = vmatprep.subr.mxu0 %v2952
        %v2954 = vand.u32 %v1454, 4294901760
        %2955 = vmatpush2.msra.mxu0 %v2954
        %v2956 = vand.u32 %v1453, 4294901760
        %2957 = vmatprep.subr.mxu0 %v2956
        %v2958 = vand.u32 %v1452, 4294901760
        %2959 = vmatpush2.msra.mxu0 %v2958
        %v2960 = vand.u32 %v1401, 4294901760
        %v2961 = vsub.f32 %v1401, %v2960
        %v2962 = vand.u32 %v2961, 4294901760
        %v2963 = vsub.f32 %v2961, %v2962
        %v2964 = vand.u32 %v2963, 4294901760
        %2965 = vmatprep.mubr.f32.mxu0 %v2964
        %v2966 = vand.u32 %v1400, 4294901760
        %v2967 = vsub.f32 %v1400, %v2966
        %v2968 = vand.u32 %v2967, 4294901760
        %v2969 = vsub.f32 %v2967, %v2968
        %v2970 = vand.u32 %v2969, 4294901760
        %2971 = vmatmul.mubr.f32.gmra.mxu0 %v2970
        %v2972 = vpop.f32.mrf.mxu0
        %v2973 = vadd.f32 %v2828, %v2972
        %v2974 = vpop.f32.mrf.mxu0
        %v2975 = vadd.f32 %v2830, %v2974
        %2976 = vdwg.mxu0
        %v2977 = vand.u32 %v1451, 4294901760
        %v2978 = vsub.f32 %v1451, %v2977
        %v2979 = vand.u32 %v2978, 4294901760
        %v2980 = vsub.f32 %v2978, %v2979
        %v2981 = vand.u32 %v2980, 4294901760
        %2982 = vmatprep.subr.mxu0 %v2981
        %v2983 = vand.u32 %v1450, 4294901760
        %v2984 = vsub.f32 %v1450, %v2983
        %v2985 = vand.u32 %v2984, 4294901760
        %v2986 = vsub.f32 %v2984, %v2985
        %v2987 = vand.u32 %v2986, 4294901760
        %2988 = vmatpush1.msra.mxu0 %v2987
        %v2989 = vand.u32 %v1449, 4294901760
        %v2990 = vsub.f32 %v1449, %v2989
        %v2991 = vand.u32 %v2990, 4294901760
        %v2992 = vsub.f32 %v2990, %v2991
        %v2993 = vand.u32 %v2992, 4294901760
        %2994 = vmatprep.subr.mxu0 %v2993
        %v2995 = vand.u32 %v1448, 4294901760
        %v2996 = vsub.f32 %v1448, %v2995
        %v2997 = vand.u32 %v2996, 4294901760
        %v2998 = vsub.f32 %v2996, %v2997
        %v2999 = vand.u32 %v2998, 4294901760
        %3000 = vmatpush1.msra.mxu0 %v2999
        %v3001 = vand.u32 %v1447, 4294901760
        %v3002 = vsub.f32 %v1447, %v3001
        %v3003 = vand.u32 %v3002, 4294901760
        %v3004 = vsub.f32 %v3002, %v3003
        %v3005 = vand.u32 %v3004, 4294901760
        %3006 = vmatprep.subr.mxu0 %v3005
        %v3007 = vand.u32 %v1446, 4294901760
        %v3008 = vsub.f32 %v1446, %v3007
        %v3009 = vand.u32 %v3008, 4294901760
        %v3010 = vsub.f32 %v3008, %v3009
        %v3011 = vand.u32 %v3010, 4294901760
        %3012 = vmatpush1.msra.mxu0 %v3011
        %v3013 = vand.u32 %v1445, 4294901760
        %v3014 = vsub.f32 %v1445, %v3013
        %v3015 = vand.u32 %v3014, 4294901760
        %v3016 = vsub.f32 %v3014, %v3015
        %v3017 = vand.u32 %v3016, 4294901760
        %3018 = vmatprep.subr.mxu0 %v3017
        %v3019 = vand.u32 %v1444, 4294901760
        %v3020 = vsub.f32 %v1444, %v3019
        %v3021 = vand.u32 %v3020, 4294901760
        %v3022 = vsub.f32 %v3020, %v3021
        %v3023 = vand.u32 %v3022, 4294901760
        %3024 = vmatpush1.msra.mxu0 %v3023
        %v3025 = vand.u32 %v1443, 4294901760
        %v3026 = vsub.f32 %v1443, %v3025
        %v3027 = vand.u32 %v3026, 4294901760
        %v3028 = vsub.f32 %v3026, %v3027
        %v3029 = vand.u32 %v3028, 4294901760
        %3030 = vmatprep.subr.mxu0 %v3029
        %v3031 = vand.u32 %v1442, 4294901760
        %v3032 = vsub.f32 %v1442, %v3031
        %v3033 = vand.u32 %v3032, 4294901760
        %v3034 = vsub.f32 %v3032, %v3033
        %v3035 = vand.u32 %v3034, 4294901760
        %3036 = vmatpush1.msra.mxu0 %v3035
        %v3037 = vand.u32 %v1441, 4294901760
        %v3038 = vsub.f32 %v1441, %v3037
        %v3039 = vand.u32 %v3038, 4294901760
        %v3040 = vsub.f32 %v3038, %v3039
        %v3041 = vand.u32 %v3040, 4294901760
        %3042 = vmatprep.subr.mxu0 %v3041
        %v3043 = vand.u32 %v1440, 4294901760
        %v3044 = vsub.f32 %v1440, %v3043
        %v3045 = vand.u32 %v3044, 4294901760
        %v3046 = vsub.f32 %v3044, %v3045
        %v3047 = vand.u32 %v3046, 4294901760
        %3048 = vmatpush1.msra.mxu0 %v3047
        %v3049 = vand.u32 %v1439, 4294901760
        %v3050 = vsub.f32 %v1439, %v3049
        %v3051 = vand.u32 %v3050, 4294901760
        %v3052 = vsub.f32 %v3050, %v3051
        %v3053 = vand.u32 %v3052, 4294901760
        %3054 = vmatprep.subr.mxu0 %v3053
        %v3055 = vand.u32 %v1438, 4294901760
        %v3056 = vsub.f32 %v1438, %v3055
        %v3057 = vand.u32 %v3056, 4294901760
        %v3058 = vsub.f32 %v3056, %v3057
        %v3059 = vand.u32 %v3058, 4294901760
        %3060 = vmatpush1.msra.mxu0 %v3059
        %v3061 = vand.u32 %v1437, 4294901760
        %v3062 = vsub.f32 %v1437, %v3061
        %v3063 = vand.u32 %v3062, 4294901760
        %v3064 = vsub.f32 %v3062, %v3063
        %v3065 = vand.u32 %v3064, 4294901760
        %3066 = vmatprep.subr.mxu0 %v3065
        %v3067 = vand.u32 %v1436, 4294901760
        %v3068 = vsub.f32 %v1436, %v3067
        %v3069 = vand.u32 %v3068, 4294901760
        %v3070 = vsub.f32 %v3068, %v3069
        %v3071 = vand.u32 %v3070, 4294901760
        %3072 = vmatpush1.msra.mxu0 %v3071
        %v3073 = vand.u32 %v1435, 4294901760
        %v3074 = vsub.f32 %v1435, %v3073
        %v3075 = vand.u32 %v3074, 4294901760
        %v3076 = vsub.f32 %v3074, %v3075
        %v3077 = vand.u32 %v3076, 4294901760
        %3078 = vmatprep.subr.mxu0 %v3077
        %v3079 = vand.u32 %v1434, 4294901760
        %v3080 = vsub.f32 %v1434, %v3079
        %v3081 = vand.u32 %v3080, 4294901760
        %v3082 = vsub.f32 %v3080, %v3081
        %v3083 = vand.u32 %v3082, 4294901760
        %3084 = vmatpush1.msra.mxu0 %v3083
        %v3085 = vand.u32 %v1433, 4294901760
        %v3086 = vsub.f32 %v1433, %v3085
        %v3087 = vand.u32 %v3086, 4294901760
        %v3088 = vsub.f32 %v3086, %v3087
        %v3089 = vand.u32 %v3088, 4294901760
        %3090 = vmatprep.subr.mxu0 %v3089
        %v3091 = vand.u32 %v1432, 4294901760
        %v3092 = vsub.f32 %v1432, %v3091
        %v3093 = vand.u32 %v3092, 4294901760
        %v3094 = vsub.f32 %v3092, %v3093
        %v3095 = vand.u32 %v3094, 4294901760
        %3096 = vmatpush1.msra.mxu0 %v3095
        %v3097 = vand.u32 %v1431, 4294901760
        %v3098 = vsub.f32 %v1431, %v3097
        %v3099 = vand.u32 %v3098, 4294901760
        %v3100 = vsub.f32 %v3098, %v3099
        %v3101 = vand.u32 %v3100, 4294901760
        %3102 = vmatprep.subr.mxu0 %v3101
        %v3103 = vand.u32 %v1430, 4294901760
        %v3104 = vsub.f32 %v1430, %v3103
        %v3105 = vand.u32 %v3104, 4294901760
        %v3106 = vsub.f32 %v3104, %v3105
        %v3107 = vand.u32 %v3106, 4294901760
        %3108 = vmatpush1.msra.mxu0 %v3107
        %v3109 = vand.u32 %v1429, 4294901760
        %v3110 = vsub.f32 %v1429, %v3109
        %v3111 = vand.u32 %v3110, 4294901760
        %v3112 = vsub.f32 %v3110, %v3111
        %v3113 = vand.u32 %v3112, 4294901760
        %3114 = vmatprep.subr.mxu0 %v3113
        %v3115 = vand.u32 %v1428, 4294901760
        %v3116 = vsub.f32 %v1428, %v3115
        %v3117 = vand.u32 %v3116, 4294901760
        %v3118 = vsub.f32 %v3116, %v3117
        %v3119 = vand.u32 %v3118, 4294901760
        %3120 = vmatpush1.msra.mxu0 %v3119
        %v3121 = vand.u32 %v1427, 4294901760
        %v3122 = vsub.f32 %v1427, %v3121
        %v3123 = vand.u32 %v3122, 4294901760
        %v3124 = vsub.f32 %v3122, %v3123
        %v3125 = vand.u32 %v3124, 4294901760
        %3126 = vmatprep.subr.mxu0 %v3125
        %v3127 = vand.u32 %v1426, 4294901760
        %v3128 = vsub.f32 %v1426, %v3127
        %v3129 = vand.u32 %v3128, 4294901760
        %v3130 = vsub.f32 %v3128, %v3129
        %v3131 = vand.u32 %v3130, 4294901760
        %3132 = vmatpush1.msra.mxu0 %v3131
        %v3133 = vand.u32 %v1425, 4294901760
        %v3134 = vsub.f32 %v1425, %v3133
        %v3135 = vand.u32 %v3134, 4294901760
        %v3136 = vsub.f32 %v3134, %v3135
        %v3137 = vand.u32 %v3136, 4294901760
        %3138 = vmatprep.subr.mxu0 %v3137
        %v3139 = vand.u32 %v1424, 4294901760
        %v3140 = vsub.f32 %v1424, %v3139
        %v3141 = vand.u32 %v3140, 4294901760
        %v3142 = vsub.f32 %v3140, %v3141
        %v3143 = vand.u32 %v3142, 4294901760
        %3144 = vmatpush1.msra.mxu0 %v3143
        %v3145 = vand.u32 %v1423, 4294901760
        %v3146 = vsub.f32 %v1423, %v3145
        %v3147 = vand.u32 %v3146, 4294901760
        %v3148 = vsub.f32 %v3146, %v3147
        %v3149 = vand.u32 %v3148, 4294901760
        %3150 = vmatprep.subr.mxu0 %v3149
        %v3151 = vand.u32 %v1422, 4294901760
        %v3152 = vsub.f32 %v1422, %v3151
        %v3153 = vand.u32 %v3152, 4294901760
        %v3154 = vsub.f32 %v3152, %v3153
        %v3155 = vand.u32 %v3154, 4294901760
        %3156 = vmatpush1.msra.mxu0 %v3155
        %v3157 = vand.u32 %v1421, 4294901760
        %v3158 = vsub.f32 %v1421, %v3157
        %v3159 = vand.u32 %v3158, 4294901760
        %v3160 = vsub.f32 %v3158, %v3159
        %v3161 = vand.u32 %v3160, 4294901760
        %3162 = vmatprep.subr.mxu0 %v3161
        %v3163 = vand.u32 %v1420, 4294901760
        %v3164 = vsub.f32 %v1420, %v3163
        %v3165 = vand.u32 %v3164, 4294901760
        %v3166 = vsub.f32 %v3164, %v3165
        %v3167 = vand.u32 %v3166, 4294901760
        %3168 = vmatpush1.msra.mxu0 %v3167
        %v3169 = vand.u32 %v1483, 4294901760
        %v3170 = vsub.f32 %v1483, %v3169
        %v3171 = vand.u32 %v3170, 4294901760
        %v3172 = vsub.f32 %v3170, %v3171
        %v3173 = vand.u32 %v3172, 4294901760
        %3174 = vmatprep.subr.mxu0 %v3173
        %v3175 = vand.u32 %v1482, 4294901760
        %v3176 = vsub.f32 %v1482, %v3175
        %v3177 = vand.u32 %v3176, 4294901760
        %v3178 = vsub.f32 %v3176, %v3177
        %v3179 = vand.u32 %v3178, 4294901760
        %3180 = vmatpush2.msra.mxu0 %v3179
        %v3181 = vand.u32 %v1481, 4294901760
        %v3182 = vsub.f32 %v1481, %v3181
        %v3183 = vand.u32 %v3182, 4294901760
        %v3184 = vsub.f32 %v3182, %v3183
        %v3185 = vand.u32 %v3184, 4294901760
        %3186 = vmatprep.subr.mxu0 %v3185
        %v3187 = vand.u32 %v1480, 4294901760
        %v3188 = vsub.f32 %v1480, %v3187
        %v3189 = vand.u32 %v3188, 4294901760
        %v3190 = vsub.f32 %v3188, %v3189
        %v3191 = vand.u32 %v3190, 4294901760
        %3192 = vmatpush2.msra.mxu0 %v3191
        %v3193 = vand.u32 %v1479, 4294901760
        %v3194 = vsub.f32 %v1479, %v3193
        %v3195 = vand.u32 %v3194, 4294901760
        %v3196 = vsub.f32 %v3194, %v3195
        %v3197 = vand.u32 %v3196, 4294901760
        %3198 = vmatprep.subr.mxu0 %v3197
        %v3199 = vand.u32 %v1478, 4294901760
        %v3200 = vsub.f32 %v1478, %v3199
        %v3201 = vand.u32 %v3200, 4294901760
        %v3202 = vsub.f32 %v3200, %v3201
        %v3203 = vand.u32 %v3202, 4294901760
        %3204 = vmatpush2.msra.mxu0 %v3203
        %v3205 = vand.u32 %v1477, 4294901760
        %v3206 = vsub.f32 %v1477, %v3205
        %v3207 = vand.u32 %v3206, 4294901760
        %v3208 = vsub.f32 %v3206, %v3207
        %v3209 = vand.u32 %v3208, 4294901760
        %3210 = vmatprep.subr.mxu0 %v3209
        %v3211 = vand.u32 %v1476, 4294901760
        %v3212 = vsub.f32 %v1476, %v3211
        %v3213 = vand.u32 %v3212, 4294901760
        %v3214 = vsub.f32 %v3212, %v3213
        %v3215 = vand.u32 %v3214, 4294901760
        %3216 = vmatpush2.msra.mxu0 %v3215
        %v3217 = vand.u32 %v1475, 4294901760
        %v3218 = vsub.f32 %v1475, %v3217
        %v3219 = vand.u32 %v3218, 4294901760
        %v3220 = vsub.f32 %v3218, %v3219
        %v3221 = vand.u32 %v3220, 4294901760
        %3222 = vmatprep.subr.mxu0 %v3221
        %v3223 = vand.u32 %v1474, 4294901760
        %v3224 = vsub.f32 %v1474, %v3223
        %v3225 = vand.u32 %v3224, 4294901760
        %v3226 = vsub.f32 %v3224, %v3225
        %v3227 = vand.u32 %v3226, 4294901760
        %3228 = vmatpush2.msra.mxu0 %v3227
        %v3229 = vand.u32 %v1473, 4294901760
        %v3230 = vsub.f32 %v1473, %v3229
        %v3231 = vand.u32 %v3230, 4294901760
        %v3232 = vsub.f32 %v3230, %v3231
        %v3233 = vand.u32 %v3232, 4294901760
        %3234 = vmatprep.subr.mxu0 %v3233
        %v3235 = vand.u32 %v1472, 4294901760
        %v3236 = vsub.f32 %v1472, %v3235
        %v3237 = vand.u32 %v3236, 4294901760
        %v3238 = vsub.f32 %v3236, %v3237
        %v3239 = vand.u32 %v3238, 4294901760
        %3240 = vmatpush2.msra.mxu0 %v3239
        %v3241 = vand.u32 %v1471, 4294901760
        %v3242 = vsub.f32 %v1471, %v3241
        %v3243 = vand.u32 %v3242, 4294901760
        %v3244 = vsub.f32 %v3242, %v3243
        %v3245 = vand.u32 %v3244, 4294901760
        %3246 = vmatprep.subr.mxu0 %v3245
        %v3247 = vand.u32 %v1470, 4294901760
        %v3248 = vsub.f32 %v1470, %v3247
        %v3249 = vand.u32 %v3248, 4294901760
        %v3250 = vsub.f32 %v3248, %v3249
        %v3251 = vand.u32 %v3250, 4294901760
        %3252 = vmatpush2.msra.mxu0 %v3251
        %v3253 = vand.u32 %v1469, 4294901760
        %v3254 = vsub.f32 %v1469, %v3253
        %v3255 = vand.u32 %v3254, 4294901760
        %v3256 = vsub.f32 %v3254, %v3255
        %v3257 = vand.u32 %v3256, 4294901760
        %3258 = vmatprep.subr.mxu0 %v3257
        %v3259 = vand.u32 %v1468, 4294901760
        %v3260 = vsub.f32 %v1468, %v3259
        %v3261 = vand.u32 %v3260, 4294901760
        %v3262 = vsub.f32 %v3260, %v3261
        %v3263 = vand.u32 %v3262, 4294901760
        %3264 = vmatpush2.msra.mxu0 %v3263
        %v3265 = vand.u32 %v1467, 4294901760
        %v3266 = vsub.f32 %v1467, %v3265
        %v3267 = vand.u32 %v3266, 4294901760
        %v3268 = vsub.f32 %v3266, %v3267
        %v3269 = vand.u32 %v3268, 4294901760
        %3270 = vmatprep.subr.mxu0 %v3269
        %v3271 = vand.u32 %v1466, 4294901760
        %v3272 = vsub.f32 %v1466, %v3271
        %v3273 = vand.u32 %v3272, 4294901760
        %v3274 = vsub.f32 %v3272, %v3273
        %v3275 = vand.u32 %v3274, 4294901760
        %3276 = vmatpush2.msra.mxu0 %v3275
        %v3277 = vand.u32 %v1465, 4294901760
        %v3278 = vsub.f32 %v1465, %v3277
        %v3279 = vand.u32 %v3278, 4294901760
        %v3280 = vsub.f32 %v3278, %v3279
        %v3281 = vand.u32 %v3280, 4294901760
        %3282 = vmatprep.subr.mxu0 %v3281
        %v3283 = vand.u32 %v1464, 4294901760
        %v3284 = vsub.f32 %v1464, %v3283
        %v3285 = vand.u32 %v3284, 4294901760
        %v3286 = vsub.f32 %v3284, %v3285
        %v3287 = vand.u32 %v3286, 4294901760
        %3288 = vmatpush2.msra.mxu0 %v3287
        %v3289 = vand.u32 %v1463, 4294901760
        %v3290 = vsub.f32 %v1463, %v3289
        %v3291 = vand.u32 %v3290, 4294901760
        %v3292 = vsub.f32 %v3290, %v3291
        %v3293 = vand.u32 %v3292, 4294901760
        %3294 = vmatprep.subr.mxu0 %v3293
        %v3295 = vand.u32 %v1462, 4294901760
        %v3296 = vsub.f32 %v1462, %v3295
        %v3297 = vand.u32 %v3296, 4294901760
        %v3298 = vsub.f32 %v3296, %v3297
        %v3299 = vand.u32 %v3298, 4294901760
        %3300 = vmatpush2.msra.mxu0 %v3299
        %v3301 = vand.u32 %v1461, 4294901760
        %v3302 = vsub.f32 %v1461, %v3301
        %v3303 = vand.u32 %v3302, 4294901760
        %v3304 = vsub.f32 %v3302, %v3303
        %v3305 = vand.u32 %v3304, 4294901760
        %3306 = vmatprep.subr.mxu0 %v3305
        %v3307 = vand.u32 %v1460, 4294901760
        %v3308 = vsub.f32 %v1460, %v3307
        %v3309 = vand.u32 %v3308, 4294901760
        %v3310 = vsub.f32 %v3308, %v3309
        %v3311 = vand.u32 %v3310, 4294901760
        %3312 = vmatpush2.msra.mxu0 %v3311
        %v3313 = vand.u32 %v1459, 4294901760
        %v3314 = vsub.f32 %v1459, %v3313
        %v3315 = vand.u32 %v3314, 4294901760
        %v3316 = vsub.f32 %v3314, %v3315
        %v3317 = vand.u32 %v3316, 4294901760
        %3318 = vmatprep.subr.mxu0 %v3317
        %v3319 = vand.u32 %v1458, 4294901760
        %v3320 = vsub.f32 %v1458, %v3319
        %v3321 = vand.u32 %v3320, 4294901760
        %v3322 = vsub.f32 %v3320, %v3321
        %v3323 = vand.u32 %v3322, 4294901760
        %3324 = vmatpush2.msra.mxu0 %v3323
        %v3325 = vand.u32 %v1457, 4294901760
        %v3326 = vsub.f32 %v1457, %v3325
        %v3327 = vand.u32 %v3326, 4294901760
        %v3328 = vsub.f32 %v3326, %v3327
        %v3329 = vand.u32 %v3328, 4294901760
        %3330 = vmatprep.subr.mxu0 %v3329
        %v3331 = vand.u32 %v1456, 4294901760
        %v3332 = vsub.f32 %v1456, %v3331
        %v3333 = vand.u32 %v3332, 4294901760
        %v3334 = vsub.f32 %v3332, %v3333
        %v3335 = vand.u32 %v3334, 4294901760
        %3336 = vmatpush2.msra.mxu0 %v3335
        %v3337 = vand.u32 %v1455, 4294901760
        %v3338 = vsub.f32 %v1455, %v3337
        %v3339 = vand.u32 %v3338, 4294901760
        %v3340 = vsub.f32 %v3338, %v3339
        %v3341 = vand.u32 %v3340, 4294901760
        %3342 = vmatprep.subr.mxu0 %v3341
        %v3343 = vand.u32 %v1454, 4294901760
        %v3344 = vsub.f32 %v1454, %v3343
        %v3345 = vand.u32 %v3344, 4294901760
        %v3346 = vsub.f32 %v3344, %v3345
        %v3347 = vand.u32 %v3346, 4294901760
        %3348 = vmatpush2.msra.mxu0 %v3347
        %v3349 = vand.u32 %v1453, 4294901760
        %v3350 = vsub.f32 %v1453, %v3349
        %v3351 = vand.u32 %v3350, 4294901760
        %v3352 = vsub.f32 %v3350, %v3351
        %v3353 = vand.u32 %v3352, 4294901760
        %3354 = vmatprep.subr.mxu0 %v3353
        %v3355 = vand.u32 %v1452, 4294901760
        %v3356 = vsub.f32 %v1452, %v3355
        %v3357 = vand.u32 %v3356, 4294901760
        %v3358 = vsub.f32 %v3356, %v3357
        %v3359 = vand.u32 %v3358, 4294901760
        %3360 = vmatpush2.msra.mxu0 %v3359
        %v3361 = vand.u32 %v1401, 4294901760
        %3362 = vmatprep.mubr.f32.mxu0 %v3361
        %v3363 = vand.u32 %v1400, 4294901760
        %3364 = vmatmul.mubr.f32.gmra.mxu0 %v3363
        %v3365 = vpop.f32.mrf.mxu0
        %v3366 = vadd.f32 %v2973, %v3365
        %v3367 = vpop.f32.mrf.mxu0
        %v3368 = vadd.f32 %v2975, %v3367
        %3369 = vdwg.mxu0
        %v3370 = vand.u32 %v1451, 4294901760
        %v3371 = vsub.f32 %v1451, %v3370
        %3372 = vmatprep.subr.mxu0 %v3371
        %v3373 = vand.u32 %v1450, 4294901760
        %v3374 = vsub.f32 %v1450, %v3373
        %3375 = vmatpush1.msra.mxu0 %v3374
        %v3376 = vand.u32 %v1449, 4294901760
        %v3377 = vsub.f32 %v1449, %v3376
        %3378 = vmatprep.subr.mxu0 %v3377
        %v3379 = vand.u32 %v1448, 4294901760
        %v3380 = vsub.f32 %v1448, %v3379
        %3381 = vmatpush1.msra.mxu0 %v3380
        %v3382 = vand.u32 %v1447, 4294901760
        %v3383 = vsub.f32 %v1447, %v3382
        %3384 = vmatprep.subr.mxu0 %v3383
        %v3385 = vand.u32 %v1446, 4294901760
        %v3386 = vsub.f32 %v1446, %v3385
        %3387 = vmatpush1.msra.mxu0 %v3386
        %v3388 = vand.u32 %v1445, 4294901760
        %v3389 = vsub.f32 %v1445, %v3388
        %3390 = vmatprep.subr.mxu0 %v3389
        %v3391 = vand.u32 %v1444, 4294901760
        %v3392 = vsub.f32 %v1444, %v3391
        %3393 = vmatpush1.msra.mxu0 %v3392
        %v3394 = vand.u32 %v1443, 4294901760
        %v3395 = vsub.f32 %v1443, %v3394
        %3396 = vmatprep.subr.mxu0 %v3395
        %v3397 = vand.u32 %v1442, 4294901760
        %v3398 = vsub.f32 %v1442, %v3397
        %3399 = vmatpush1.msra.mxu0 %v3398
        %v3400 = vand.u32 %v1441, 4294901760
        %v3401 = vsub.f32 %v1441, %v3400
        %3402 = vmatprep.subr.mxu0 %v3401
        %v3403 = vand.u32 %v1440, 4294901760
        %v3404 = vsub.f32 %v1440, %v3403
        %3405 = vmatpush1.msra.mxu0 %v3404
        %v3406 = vand.u32 %v1439, 4294901760
        %v3407 = vsub.f32 %v1439, %v3406
        %3408 = vmatprep.subr.mxu0 %v3407
        %v3409 = vand.u32 %v1438, 4294901760
        %v3410 = vsub.f32 %v1438, %v3409
        %3411 = vmatpush1.msra.mxu0 %v3410
        %v3412 = vand.u32 %v1437, 4294901760
        %v3413 = vsub.f32 %v1437, %v3412
        %3414 = vmatprep.subr.mxu0 %v3413
        %v3415 = vand.u32 %v1436, 4294901760
        %v3416 = vsub.f32 %v1436, %v3415
        %3417 = vmatpush1.msra.mxu0 %v3416
        %v3418 = vand.u32 %v1435, 4294901760
        %v3419 = vsub.f32 %v1435, %v3418
        %3420 = vmatprep.subr.mxu0 %v3419
        %v3421 = vand.u32 %v1434, 4294901760
        %v3422 = vsub.f32 %v1434, %v3421
        %3423 = vmatpush1.msra.mxu0 %v3422
        %v3424 = vand.u32 %v1433, 4294901760
        %v3425 = vsub.f32 %v1433, %v3424
        %3426 = vmatprep.subr.mxu0 %v3425
        %v3427 = vand.u32 %v1432, 4294901760
        %v3428 = vsub.f32 %v1432, %v3427
        %3429 = vmatpush1.msra.mxu0 %v3428
        %v3430 = vand.u32 %v1431, 4294901760
        %v3431 = vsub.f32 %v1431, %v3430
        %3432 = vmatprep.subr.mxu0 %v3431
        %v3433 = vand.u32 %v1430, 4294901760
        %v3434 = vsub.f32 %v1430, %v3433
        %3435 = vmatpush1.msra.mxu0 %v3434
        %v3436 = vand.u32 %v1429, 4294901760
        %v3437 = vsub.f32 %v1429, %v3436
        %3438 = vmatprep.subr.mxu0 %v3437
        %v3439 = vand.u32 %v1428, 4294901760
        %v3440 = vsub.f32 %v1428, %v3439
        %3441 = vmatpush1.msra.mxu0 %v3440
        %v3442 = vand.u32 %v1427, 4294901760
        %v3443 = vsub.f32 %v1427, %v3442
        %3444 = vmatprep.subr.mxu0 %v3443
        %v3445 = vand.u32 %v1426, 4294901760
        %v3446 = vsub.f32 %v1426, %v3445
        %3447 = vmatpush1.msra.mxu0 %v3446
        %v3448 = vand.u32 %v1425, 4294901760
        %v3449 = vsub.f32 %v1425, %v3448
        %3450 = vmatprep.subr.mxu0 %v3449
        %v3451 = vand.u32 %v1424, 4294901760
        %v3452 = vsub.f32 %v1424, %v3451
        %3453 = vmatpush1.msra.mxu0 %v3452
        %v3454 = vand.u32 %v1423, 4294901760
        %v3455 = vsub.f32 %v1423, %v3454
        %3456 = vmatprep.subr.mxu0 %v3455
        %v3457 = vand.u32 %v1422, 4294901760
        %v3458 = vsub.f32 %v1422, %v3457
        %3459 = vmatpush1.msra.mxu0 %v3458
        %v3460 = vand.u32 %v1421, 4294901760
        %v3461 = vsub.f32 %v1421, %v3460
        %3462 = vmatprep.subr.mxu0 %v3461
        %v3463 = vand.u32 %v1420, 4294901760
        %v3464 = vsub.f32 %v1420, %v3463
        %3465 = vmatpush1.msra.mxu0 %v3464
        %v3466 = vand.u32 %v1483, 4294901760
        %v3467 = vsub.f32 %v1483, %v3466
        %3468 = vmatprep.subr.mxu0 %v3467
        %v3469 = vand.u32 %v1482, 4294901760
        %v3470 = vsub.f32 %v1482, %v3469
        %3471 = vmatpush2.msra.mxu0 %v3470
        %v3472 = vand.u32 %v1481, 4294901760
        %v3473 = vsub.f32 %v1481, %v3472
        %3474 = vmatprep.subr.mxu0 %v3473
        %v3475 = vand.u32 %v1480, 4294901760
        %v3476 = vsub.f32 %v1480, %v3475
        %3477 = vmatpush2.msra.mxu0 %v3476
        %v3478 = vand.u32 %v1479, 4294901760
        %v3479 = vsub.f32 %v1479, %v3478
        %3480 = vmatprep.subr.mxu0 %v3479
        %v3481 = vand.u32 %v1478, 4294901760
        %v3482 = vsub.f32 %v1478, %v3481
        %3483 = vmatpush2.msra.mxu0 %v3482
        %v3484 = vand.u32 %v1477, 4294901760
        %v3485 = vsub.f32 %v1477, %v3484
        %3486 = vmatprep.subr.mxu0 %v3485
        %v3487 = vand.u32 %v1476, 4294901760
        %v3488 = vsub.f32 %v1476, %v3487
        %3489 = vmatpush2.msra.mxu0 %v3488
        %v3490 = vand.u32 %v1475, 4294901760
        %v3491 = vsub.f32 %v1475, %v3490
        %3492 = vmatprep.subr.mxu0 %v3491
        %v3493 = vand.u32 %v1474, 4294901760
        %v3494 = vsub.f32 %v1474, %v3493
        %3495 = vmatpush2.msra.mxu0 %v3494
        %v3496 = vand.u32 %v1473, 4294901760
        %v3497 = vsub.f32 %v1473, %v3496
        %3498 = vmatprep.subr.mxu0 %v3497
        %v3499 = vand.u32 %v1472, 4294901760
        %v3500 = vsub.f32 %v1472, %v3499
        %3501 = vmatpush2.msra.mxu0 %v3500
        %v3502 = vand.u32 %v1471, 4294901760
        %v3503 = vsub.f32 %v1471, %v3502
        %3504 = vmatprep.subr.mxu0 %v3503
        %v3505 = vand.u32 %v1470, 4294901760
        %v3506 = vsub.f32 %v1470, %v3505
        %3507 = vmatpush2.msra.mxu0 %v3506
        %v3508 = vand.u32 %v1469, 4294901760
        %v3509 = vsub.f32 %v1469, %v3508
        %3510 = vmatprep.subr.mxu0 %v3509
        %v3511 = vand.u32 %v1468, 4294901760
        %v3512 = vsub.f32 %v1468, %v3511
        %3513 = vmatpush2.msra.mxu0 %v3512
        %v3514 = vand.u32 %v1467, 4294901760
        %v3515 = vsub.f32 %v1467, %v3514
        %3516 = vmatprep.subr.mxu0 %v3515
        %v3517 = vand.u32 %v1466, 4294901760
        %v3518 = vsub.f32 %v1466, %v3517
        %3519 = vmatpush2.msra.mxu0 %v3518
        %v3520 = vand.u32 %v1465, 4294901760
        %v3521 = vsub.f32 %v1465, %v3520
        %3522 = vmatprep.subr.mxu0 %v3521
        %v3523 = vand.u32 %v1464, 4294901760
        %v3524 = vsub.f32 %v1464, %v3523
        %3525 = vmatpush2.msra.mxu0 %v3524
        %v3526 = vand.u32 %v1463, 4294901760
        %v3527 = vsub.f32 %v1463, %v3526
        %3528 = vmatprep.subr.mxu0 %v3527
        %v3529 = vand.u32 %v1462, 4294901760
        %v3530 = vsub.f32 %v1462, %v3529
        %3531 = vmatpush2.msra.mxu0 %v3530
        %v3532 = vand.u32 %v1461, 4294901760
        %v3533 = vsub.f32 %v1461, %v3532
        %3534 = vmatprep.subr.mxu0 %v3533
        %v3535 = vand.u32 %v1460, 4294901760
        %v3536 = vsub.f32 %v1460, %v3535
        %3537 = vmatpush2.msra.mxu0 %v3536
        %v3538 = vand.u32 %v1459, 4294901760
        %v3539 = vsub.f32 %v1459, %v3538
        %3540 = vmatprep.subr.mxu0 %v3539
        %v3541 = vand.u32 %v1458, 4294901760
        %v3542 = vsub.f32 %v1458, %v3541
        %3543 = vmatpush2.msra.mxu0 %v3542
        %v3544 = vand.u32 %v1457, 4294901760
        %v3545 = vsub.f32 %v1457, %v3544
        %3546 = vmatprep.subr.mxu0 %v3545
        %v3547 = vand.u32 %v1456, 4294901760
        %v3548 = vsub.f32 %v1456, %v3547
        %3549 = vmatpush2.msra.mxu0 %v3548
        %v3550 = vand.u32 %v1455, 4294901760
        %v3551 = vsub.f32 %v1455, %v3550
        %3552 = vmatprep.subr.mxu0 %v3551
        %v3553 = vand.u32 %v1454, 4294901760
        %v3554 = vsub.f32 %v1454, %v3553
        %3555 = vmatpush2.msra.mxu0 %v3554
        %v3556 = vand.u32 %v1453, 4294901760
        %v3557 = vsub.f32 %v1453, %v3556
        %3558 = vmatprep.subr.mxu0 %v3557
        %v3559 = vand.u32 %v1452, 4294901760
        %v3560 = vsub.f32 %v1452, %v3559
        %3561 = vmatpush2.msra.mxu0 %v3560
        %v3562 = vand.u32 %v1401, 4294901760
        %v3563 = vsub.f32 %v1401, %v3562
        %3564 = vmatprep.mubr.f32.mxu0 %v3563
        %v3565 = vand.u32 %v1400, 4294901760
        %v3566 = vsub.f32 %v1400, %v3565
        %3567 = vmatmul.mubr.f32.gmra.mxu0 %v3566
        %v3568 = vpop.f32.mrf.mxu0
        %v3569 = vadd.f32 %v3366, %v3568
        %v3570 = vpop.f32.mrf.mxu0
        %v3571 = vadd.f32 %v3368, %v3570
        %3572 = vdwg.mxu0
        %v3573 = vand.u32 %v1451, 4294901760
        %3574 = vmatprep.subr.mxu0 %v3573
        %v3575 = vand.u32 %v1450, 4294901760
        %3576 = vmatpush1.msra.mxu0 %v3575
        %v3577 = vand.u32 %v1449, 4294901760
        %3578 = vmatprep.subr.mxu0 %v3577
        %v3579 = vand.u32 %v1448, 4294901760
        %3580 = vmatpush1.msra.mxu0 %v3579
        %v3581 = vand.u32 %v1447, 4294901760
        %3582 = vmatprep.subr.mxu0 %v3581
        %v3583 = vand.u32 %v1446, 4294901760
        %3584 = vmatpush1.msra.mxu0 %v3583
        %v3585 = vand.u32 %v1445, 4294901760
        %3586 = vmatprep.subr.mxu0 %v3585
        %v3587 = vand.u32 %v1444, 4294901760
        %3588 = vmatpush1.msra.mxu0 %v3587
        %v3589 = vand.u32 %v1443, 4294901760
        %3590 = vmatprep.subr.mxu0 %v3589
        %v3591 = vand.u32 %v1442, 4294901760
        %3592 = vmatpush1.msra.mxu0 %v3591
        %v3593 = vand.u32 %v1441, 4294901760
        %3594 = vmatprep.subr.mxu0 %v3593
        %v3595 = vand.u32 %v1440, 4294901760
        %3596 = vmatpush1.msra.mxu0 %v3595
        %v3597 = vand.u32 %v1439, 4294901760
        %3598 = vmatprep.subr.mxu0 %v3597
        %v3599 = vand.u32 %v1438, 4294901760
        %3600 = vmatpush1.msra.mxu0 %v3599
        %v3601 = vand.u32 %v1437, 4294901760
        %3602 = vmatprep.subr.mxu0 %v3601
        %v3603 = vand.u32 %v1436, 4294901760
        %3604 = vmatpush1.msra.mxu0 %v3603
        %v3605 = vand.u32 %v1435, 4294901760
        %3606 = vmatprep.subr.mxu0 %v3605
        %v3607 = vand.u32 %v1434, 4294901760
        %3608 = vmatpush1.msra.mxu0 %v3607
        %v3609 = vand.u32 %v1433, 4294901760
        %3610 = vmatprep.subr.mxu0 %v3609
        %v3611 = vand.u32 %v1432, 4294901760
        %3612 = vmatpush1.msra.mxu0 %v3611
        %v3613 = vand.u32 %v1431, 4294901760
        %3614 = vmatprep.subr.mxu0 %v3613
        %v3615 = vand.u32 %v1430, 4294901760
        %3616 = vmatpush1.msra.mxu0 %v3615
        %v3617 = vand.u32 %v1429, 4294901760
        %3618 = vmatprep.subr.mxu0 %v3617
        %v3619 = vand.u32 %v1428, 4294901760
        %3620 = vmatpush1.msra.mxu0 %v3619
        %v3621 = vand.u32 %v1427, 4294901760
        %3622 = vmatprep.subr.mxu0 %v3621
        %v3623 = vand.u32 %v1426, 4294901760
        %3624 = vmatpush1.msra.mxu0 %v3623
        %v3625 = vand.u32 %v1425, 4294901760
        %3626 = vmatprep.subr.mxu0 %v3625
        %v3627 = vand.u32 %v1424, 4294901760
        %3628 = vmatpush1.msra.mxu0 %v3627
        %v3629 = vand.u32 %v1423, 4294901760
        %3630 = vmatprep.subr.mxu0 %v3629
        %v3631 = vand.u32 %v1422, 4294901760
        %3632 = vmatpush1.msra.mxu0 %v3631
        %v3633 = vand.u32 %v1421, 4294901760
        %3634 = vmatprep.subr.mxu0 %v3633
        %v3635 = vand.u32 %v1420, 4294901760
        %3636 = vmatpush1.msra.mxu0 %v3635
        %v3637 = vand.u32 %v1483, 4294901760
        %3638 = vmatprep.subr.mxu0 %v3637
        %v3639 = vand.u32 %v1482, 4294901760
        %3640 = vmatpush2.msra.mxu0 %v3639
        %v3641 = vand.u32 %v1481, 4294901760
        %3642 = vmatprep.subr.mxu0 %v3641
        %v3643 = vand.u32 %v1480, 4294901760
        %3644 = vmatpush2.msra.mxu0 %v3643
        %v3645 = vand.u32 %v1479, 4294901760
        %3646 = vmatprep.subr.mxu0 %v3645
        %v3647 = vand.u32 %v1478, 4294901760
        %3648 = vmatpush2.msra.mxu0 %v3647
        %v3649 = vand.u32 %v1477, 4294901760
        %3650 = vmatprep.subr.mxu0 %v3649
        %v3651 = vand.u32 %v1476, 4294901760
        %3652 = vmatpush2.msra.mxu0 %v3651
        %v3653 = vand.u32 %v1475, 4294901760
        %3654 = vmatprep.subr.mxu0 %v3653
        %v3655 = vand.u32 %v1474, 4294901760
        %3656 = vmatpush2.msra.mxu0 %v3655
        %v3657 = vand.u32 %v1473, 4294901760
        %3658 = vmatprep.subr.mxu0 %v3657
        %v3659 = vand.u32 %v1472, 4294901760
        %3660 = vmatpush2.msra.mxu0 %v3659
        %v3661 = vand.u32 %v1471, 4294901760
        %3662 = vmatprep.subr.mxu0 %v3661
        %v3663 = vand.u32 %v1470, 4294901760
        %3664 = vmatpush2.msra.mxu0 %v3663
        %v3665 = vand.u32 %v1469, 4294901760
        %3666 = vmatprep.subr.mxu0 %v3665
        %v3667 = vand.u32 %v1468, 4294901760
        %3668 = vmatpush2.msra.mxu0 %v3667
        %v3669 = vand.u32 %v1467, 4294901760
        %3670 = vmatprep.subr.mxu0 %v3669
        %v3671 = vand.u32 %v1466, 4294901760
        %3672 = vmatpush2.msra.mxu0 %v3671
        %v3673 = vand.u32 %v1465, 4294901760
        %3674 = vmatprep.subr.mxu0 %v3673
        %v3675 = vand.u32 %v1464, 4294901760
        %3676 = vmatpush2.msra.mxu0 %v3675
        %v3677 = vand.u32 %v1463, 4294901760
        %3678 = vmatprep.subr.mxu0 %v3677
        %v3679 = vand.u32 %v1462, 4294901760
        %3680 = vmatpush2.msra.mxu0 %v3679
        %v3681 = vand.u32 %v1461, 4294901760
        %3682 = vmatprep.subr.mxu0 %v3681
        %v3683 = vand.u32 %v1460, 4294901760
        %3684 = vmatpush2.msra.mxu0 %v3683
        %v3685 = vand.u32 %v1459, 4294901760
        %3686 = vmatprep.subr.mxu0 %v3685
        %v3687 = vand.u32 %v1458, 4294901760
        %3688 = vmatpush2.msra.mxu0 %v3687
        %v3689 = vand.u32 %v1457, 4294901760
        %3690 = vmatprep.subr.mxu0 %v3689
        %v3691 = vand.u32 %v1456, 4294901760
        %3692 = vmatpush2.msra.mxu0 %v3691
        %v3693 = vand.u32 %v1455, 4294901760
        %3694 = vmatprep.subr.mxu0 %v3693
        %v3695 = vand.u32 %v1454, 4294901760
        %3696 = vmatpush2.msra.mxu0 %v3695
        %v3697 = vand.u32 %v1453, 4294901760
        %3698 = vmatprep.subr.mxu0 %v3697
        %v3699 = vand.u32 %v1452, 4294901760
        %3700 = vmatpush2.msra.mxu0 %v3699
        %v3701 = vand.u32 %v1401, 4294901760
        %v3702 = vsub.f32 %v1401, %v3701
        %v3703 = vand.u32 %v3702, 4294901760
        %3704 = vmatprep.mubr.f32.mxu0 %v3703
        %v3705 = vand.u32 %v1400, 4294901760
        %v3706 = vsub.f32 %v1400, %v3705
        %v3707 = vand.u32 %v3706, 4294901760
        %3708 = vmatmul.mubr.f32.gmra.mxu0 %v3707
        %v3709 = vpop.f32.mrf.mxu0
        %v3710 = vadd.f32 %v3569, %v3709
        %v3711 = vpop.f32.mrf.mxu0
        %v3712 = vadd.f32 %v3571, %v3711
        %3713 = vdwg.mxu0
        %v3714 = vand.u32 %v1451, 4294901760
        %v3715 = vsub.f32 %v1451, %v3714
        %v3716 = vand.u32 %v3715, 4294901760
        %3717 = vmatprep.subr.mxu0 %v3716
        %v3718 = vand.u32 %v1450, 4294901760
        %v3719 = vsub.f32 %v1450, %v3718
        %v3720 = vand.u32 %v3719, 4294901760
        %3721 = vmatpush1.msra.mxu0 %v3720
        %v3722 = vand.u32 %v1449, 4294901760
        %v3723 = vsub.f32 %v1449, %v3722
        %v3724 = vand.u32 %v3723, 4294901760
        %3725 = vmatprep.subr.mxu0 %v3724
        %v3726 = vand.u32 %v1448, 4294901760
        %v3727 = vsub.f32 %v1448, %v3726
        %v3728 = vand.u32 %v3727, 4294901760
        %3729 = vmatpush1.msra.mxu0 %v3728
        %v3730 = vand.u32 %v1447, 4294901760
        %v3731 = vsub.f32 %v1447, %v3730
        %v3732 = vand.u32 %v3731, 4294901760
        %3733 = vmatprep.subr.mxu0 %v3732
        %v3734 = vand.u32 %v1446, 4294901760
        %v3735 = vsub.f32 %v1446, %v3734
        %v3736 = vand.u32 %v3735, 4294901760
        %3737 = vmatpush1.msra.mxu0 %v3736
        %v3738 = vand.u32 %v1445, 4294901760
        %v3739 = vsub.f32 %v1445, %v3738
        %v3740 = vand.u32 %v3739, 4294901760
        %3741 = vmatprep.subr.mxu0 %v3740
        %v3742 = vand.u32 %v1444, 4294901760
        %v3743 = vsub.f32 %v1444, %v3742
        %v3744 = vand.u32 %v3743, 4294901760
        %3745 = vmatpush1.msra.mxu0 %v3744
        %v3746 = vand.u32 %v1443, 4294901760
        %v3747 = vsub.f32 %v1443, %v3746
        %v3748 = vand.u32 %v3747, 4294901760
        %3749 = vmatprep.subr.mxu0 %v3748
        %v3750 = vand.u32 %v1442, 4294901760
        %v3751 = vsub.f32 %v1442, %v3750
        %v3752 = vand.u32 %v3751, 4294901760
        %3753 = vmatpush1.msra.mxu0 %v3752
        %v3754 = vand.u32 %v1441, 4294901760
        %v3755 = vsub.f32 %v1441, %v3754
        %v3756 = vand.u32 %v3755, 4294901760
        %3757 = vmatprep.subr.mxu0 %v3756
        %v3758 = vand.u32 %v1440, 4294901760
        %v3759 = vsub.f32 %v1440, %v3758
        %v3760 = vand.u32 %v3759, 4294901760
        %3761 = vmatpush1.msra.mxu0 %v3760
        %v3762 = vand.u32 %v1439, 4294901760
        %v3763 = vsub.f32 %v1439, %v3762
        %v3764 = vand.u32 %v3763, 4294901760
        %3765 = vmatprep.subr.mxu0 %v3764
        %v3766 = vand.u32 %v1438, 4294901760
        %v3767 = vsub.f32 %v1438, %v3766
        %v3768 = vand.u32 %v3767, 4294901760
        %3769 = vmatpush1.msra.mxu0 %v3768
        %v3770 = vand.u32 %v1437, 4294901760
        %v3771 = vsub.f32 %v1437, %v3770
        %v3772 = vand.u32 %v3771, 4294901760
        %3773 = vmatprep.subr.mxu0 %v3772
        %v3774 = vand.u32 %v1436, 4294901760
        %v3775 = vsub.f32 %v1436, %v3774
        %v3776 = vand.u32 %v3775, 4294901760
        %3777 = vmatpush1.msra.mxu0 %v3776
        %v3778 = vand.u32 %v1435, 4294901760
        %v3779 = vsub.f32 %v1435, %v3778
        %v3780 = vand.u32 %v3779, 4294901760
        %3781 = vmatprep.subr.mxu0 %v3780
        %v3782 = vand.u32 %v1434, 4294901760
        %v3783 = vsub.f32 %v1434, %v3782
        %v3784 = vand.u32 %v3783, 4294901760
        %3785 = vmatpush1.msra.mxu0 %v3784
        %v3786 = vand.u32 %v1433, 4294901760
        %v3787 = vsub.f32 %v1433, %v3786
        %v3788 = vand.u32 %v3787, 4294901760
        %3789 = vmatprep.subr.mxu0 %v3788
        %v3790 = vand.u32 %v1432, 4294901760
        %v3791 = vsub.f32 %v1432, %v3790
        %v3792 = vand.u32 %v3791, 4294901760
        %3793 = vmatpush1.msra.mxu0 %v3792
        %v3794 = vand.u32 %v1431, 4294901760
        %v3795 = vsub.f32 %v1431, %v3794
        %v3796 = vand.u32 %v3795, 4294901760
        %3797 = vmatprep.subr.mxu0 %v3796
        %v3798 = vand.u32 %v1430, 4294901760
        %v3799 = vsub.f32 %v1430, %v3798
        %v3800 = vand.u32 %v3799, 4294901760
        %3801 = vmatpush1.msra.mxu0 %v3800
        %v3802 = vand.u32 %v1429, 4294901760
        %v3803 = vsub.f32 %v1429, %v3802
        %v3804 = vand.u32 %v3803, 4294901760
        %3805 = vmatprep.subr.mxu0 %v3804
        %v3806 = vand.u32 %v1428, 4294901760
        %v3807 = vsub.f32 %v1428, %v3806
        %v3808 = vand.u32 %v3807, 4294901760
        %3809 = vmatpush1.msra.mxu0 %v3808
        %v3810 = vand.u32 %v1427, 4294901760
        %v3811 = vsub.f32 %v1427, %v3810
        %v3812 = vand.u32 %v3811, 4294901760
        %3813 = vmatprep.subr.mxu0 %v3812
        %v3814 = vand.u32 %v1426, 4294901760
        %v3815 = vsub.f32 %v1426, %v3814
        %v3816 = vand.u32 %v3815, 4294901760
        %3817 = vmatpush1.msra.mxu0 %v3816
        %v3818 = vand.u32 %v1425, 4294901760
        %v3819 = vsub.f32 %v1425, %v3818
        %v3820 = vand.u32 %v3819, 4294901760
        %3821 = vmatprep.subr.mxu0 %v3820
        %v3822 = vand.u32 %v1424, 4294901760
        %v3823 = vsub.f32 %v1424, %v3822
        %v3824 = vand.u32 %v3823, 4294901760
        %3825 = vmatpush1.msra.mxu0 %v3824
        %v3826 = vand.u32 %v1423, 4294901760
        %v3827 = vsub.f32 %v1423, %v3826
        %v3828 = vand.u32 %v3827, 4294901760
        %3829 = vmatprep.subr.mxu0 %v3828
        %v3830 = vand.u32 %v1422, 4294901760
        %v3831 = vsub.f32 %v1422, %v3830
        %v3832 = vand.u32 %v3831, 4294901760
        %3833 = vmatpush1.msra.mxu0 %v3832
        %v3834 = vand.u32 %v1421, 4294901760
        %v3835 = vsub.f32 %v1421, %v3834
        %v3836 = vand.u32 %v3835, 4294901760
        %3837 = vmatprep.subr.mxu0 %v3836
        %v3838 = vand.u32 %v1420, 4294901760
        %v3839 = vsub.f32 %v1420, %v3838
        %v3840 = vand.u32 %v3839, 4294901760
        %3841 = vmatpush1.msra.mxu0 %v3840
        %v3842 = vand.u32 %v1483, 4294901760
        %v3843 = vsub.f32 %v1483, %v3842
        %v3844 = vand.u32 %v3843, 4294901760
        %3845 = vmatprep.subr.mxu0 %v3844
        %v3846 = vand.u32 %v1482, 4294901760
        %v3847 = vsub.f32 %v1482, %v3846
        %v3848 = vand.u32 %v3847, 4294901760
        %3849 = vmatpush2.msra.mxu0 %v3848
        %v3850 = vand.u32 %v1481, 4294901760
        %v3851 = vsub.f32 %v1481, %v3850
        %v3852 = vand.u32 %v3851, 4294901760
        %3853 = vmatprep.subr.mxu0 %v3852
        %v3854 = vand.u32 %v1480, 4294901760
        %v3855 = vsub.f32 %v1480, %v3854
        %v3856 = vand.u32 %v3855, 4294901760
        %3857 = vmatpush2.msra.mxu0 %v3856
        %v3858 = vand.u32 %v1479, 4294901760
        %v3859 = vsub.f32 %v1479, %v3858
        %v3860 = vand.u32 %v3859, 4294901760
        %3861 = vmatprep.subr.mxu0 %v3860
        %v3862 = vand.u32 %v1478, 4294901760
        %v3863 = vsub.f32 %v1478, %v3862
        %v3864 = vand.u32 %v3863, 4294901760
        %3865 = vmatpush2.msra.mxu0 %v3864
        %v3866 = vand.u32 %v1477, 4294901760
        %v3867 = vsub.f32 %v1477, %v3866
        %v3868 = vand.u32 %v3867, 4294901760
        %3869 = vmatprep.subr.mxu0 %v3868
        %v3870 = vand.u32 %v1476, 4294901760
        %v3871 = vsub.f32 %v1476, %v3870
        %v3872 = vand.u32 %v3871, 4294901760
        %3873 = vmatpush2.msra.mxu0 %v3872
        %v3874 = vand.u32 %v1475, 4294901760
        %v3875 = vsub.f32 %v1475, %v3874
        %v3876 = vand.u32 %v3875, 4294901760
        %3877 = vmatprep.subr.mxu0 %v3876
        %v3878 = vand.u32 %v1474, 4294901760
        %v3879 = vsub.f32 %v1474, %v3878
        %v3880 = vand.u32 %v3879, 4294901760
        %3881 = vmatpush2.msra.mxu0 %v3880
        %v3882 = vand.u32 %v1473, 4294901760
        %v3883 = vsub.f32 %v1473, %v3882
        %v3884 = vand.u32 %v3883, 4294901760
        %3885 = vmatprep.subr.mxu0 %v3884
        %v3886 = vand.u32 %v1472, 4294901760
        %v3887 = vsub.f32 %v1472, %v3886
        %v3888 = vand.u32 %v3887, 4294901760
        %3889 = vmatpush2.msra.mxu0 %v3888
        %v3890 = vand.u32 %v1471, 4294901760
        %v3891 = vsub.f32 %v1471, %v3890
        %v3892 = vand.u32 %v3891, 4294901760
        %3893 = vmatprep.subr.mxu0 %v3892
        %v3894 = vand.u32 %v1470, 4294901760
        %v3895 = vsub.f32 %v1470, %v3894
        %v3896 = vand.u32 %v3895, 4294901760
        %3897 = vmatpush2.msra.mxu0 %v3896
        %v3898 = vand.u32 %v1469, 4294901760
        %v3899 = vsub.f32 %v1469, %v3898
        %v3900 = vand.u32 %v3899, 4294901760
        %3901 = vmatprep.subr.mxu0 %v3900
        %v3902 = vand.u32 %v1468, 4294901760
        %v3903 = vsub.f32 %v1468, %v3902
        %v3904 = vand.u32 %v3903, 4294901760
        %3905 = vmatpush2.msra.mxu0 %v3904
        %v3906 = vand.u32 %v1467, 4294901760
        %v3907 = vsub.f32 %v1467, %v3906
        %v3908 = vand.u32 %v3907, 4294901760
        %3909 = vmatprep.subr.mxu0 %v3908
        %v3910 = vand.u32 %v1466, 4294901760
        %v3911 = vsub.f32 %v1466, %v3910
        %v3912 = vand.u32 %v3911, 4294901760
        %3913 = vmatpush2.msra.mxu0 %v3912
        %v3914 = vand.u32 %v1465, 4294901760
        %v3915 = vsub.f32 %v1465, %v3914
        %v3916 = vand.u32 %v3915, 4294901760
        %3917 = vmatprep.subr.mxu0 %v3916
        %v3918 = vand.u32 %v1464, 4294901760
        %v3919 = vsub.f32 %v1464, %v3918
        %v3920 = vand.u32 %v3919, 4294901760
        %3921 = vmatpush2.msra.mxu0 %v3920
        %v3922 = vand.u32 %v1463, 4294901760
        %v3923 = vsub.f32 %v1463, %v3922
        %v3924 = vand.u32 %v3923, 4294901760
        %3925 = vmatprep.subr.mxu0 %v3924
        %v3926 = vand.u32 %v1462, 4294901760
        %v3927 = vsub.f32 %v1462, %v3926
        %v3928 = vand.u32 %v3927, 4294901760
        %3929 = vmatpush2.msra.mxu0 %v3928
        %v3930 = vand.u32 %v1461, 4294901760
        %v3931 = vsub.f32 %v1461, %v3930
        %v3932 = vand.u32 %v3931, 4294901760
        %3933 = vmatprep.subr.mxu0 %v3932
        %v3934 = vand.u32 %v1460, 4294901760
        %v3935 = vsub.f32 %v1460, %v3934
        %v3936 = vand.u32 %v3935, 4294901760
        %3937 = vmatpush2.msra.mxu0 %v3936
        %v3938 = vand.u32 %v1459, 4294901760
        %v3939 = vsub.f32 %v1459, %v3938
        %v3940 = vand.u32 %v3939, 4294901760
        %3941 = vmatprep.subr.mxu0 %v3940
        %v3942 = vand.u32 %v1458, 4294901760
        %v3943 = vsub.f32 %v1458, %v3942
        %v3944 = vand.u32 %v3943, 4294901760
        %3945 = vmatpush2.msra.mxu0 %v3944
        %v3946 = vand.u32 %v1457, 4294901760
        %v3947 = vsub.f32 %v1457, %v3946
        %v3948 = vand.u32 %v3947, 4294901760
        %3949 = vmatprep.subr.mxu0 %v3948
        %v3950 = vand.u32 %v1456, 4294901760
        %v3951 = vsub.f32 %v1456, %v3950
        %v3952 = vand.u32 %v3951, 4294901760
        %3953 = vmatpush2.msra.mxu0 %v3952
        %v3954 = vand.u32 %v1455, 4294901760
        %v3955 = vsub.f32 %v1455, %v3954
        %v3956 = vand.u32 %v3955, 4294901760
        %3957 = vmatprep.subr.mxu0 %v3956
        %v3958 = vand.u32 %v1454, 4294901760
        %v3959 = vsub.f32 %v1454, %v3958
        %v3960 = vand.u32 %v3959, 4294901760
        %3961 = vmatpush2.msra.mxu0 %v3960
        %v3962 = vand.u32 %v1453, 4294901760
        %v3963 = vsub.f32 %v1453, %v3962
        %v3964 = vand.u32 %v3963, 4294901760
        %3965 = vmatprep.subr.mxu0 %v3964
        %v3966 = vand.u32 %v1452, 4294901760
        %v3967 = vsub.f32 %v1452, %v3966
        %v3968 = vand.u32 %v3967, 4294901760
        %3969 = vmatpush2.msra.mxu0 %v3968
        %v3970 = vand.u32 %v1401, 4294901760
        %3971 = vmatprep.mubr.f32.mxu0 %v3970
        %v3972 = vand.u32 %v1400, 4294901760
        %3973 = vmatmul.mubr.f32.gmra.mxu0 %v3972
        %v3974 = vpop.f32.mrf.mxu0
        %v3975 = vadd.f32 %v3710, %v3974
        %v3976 = vpop.f32.mrf.mxu0
        %v3977 = vadd.f32 %v3712, %v3976
        %3978 = vdwg.mxu0
        %v3979 = vand.u32 %v1451, 4294901760
        %3980 = vmatprep.subr.mxu0 %v3979
        %v3981 = vand.u32 %v1450, 4294901760
        %3982 = vmatpush1.msra.mxu0 %v3981
        %v3983 = vand.u32 %v1449, 4294901760
        %3984 = vmatprep.subr.mxu0 %v3983
        %v3985 = vand.u32 %v1448, 4294901760
        %3986 = vmatpush1.msra.mxu0 %v3985
        %v3987 = vand.u32 %v1447, 4294901760
        %3988 = vmatprep.subr.mxu0 %v3987
        %v3989 = vand.u32 %v1446, 4294901760
        %3990 = vmatpush1.msra.mxu0 %v3989
        %v3991 = vand.u32 %v1445, 4294901760
        %3992 = vmatprep.subr.mxu0 %v3991
        %v3993 = vand.u32 %v1444, 4294901760
        %3994 = vmatpush1.msra.mxu0 %v3993
        %v3995 = vand.u32 %v1443, 4294901760
        %3996 = vmatprep.subr.mxu0 %v3995
        %v3997 = vand.u32 %v1442, 4294901760
        %3998 = vmatpush1.msra.mxu0 %v3997
        %v3999 = vand.u32 %v1441, 4294901760
        %4000 = vmatprep.subr.mxu0 %v3999
        %v4001 = vand.u32 %v1440, 4294901760
        %4002 = vmatpush1.msra.mxu0 %v4001
        %v4003 = vand.u32 %v1439, 4294901760
        %4004 = vmatprep.subr.mxu0 %v4003
        %v4005 = vand.u32 %v1438, 4294901760
        %4006 = vmatpush1.msra.mxu0 %v4005
        %v4007 = vand.u32 %v1437, 4294901760
        %4008 = vmatprep.subr.mxu0 %v4007
        %v4009 = vand.u32 %v1436, 4294901760
        %4010 = vmatpush1.msra.mxu0 %v4009
        %v4011 = vand.u32 %v1435, 4294901760
        %4012 = vmatprep.subr.mxu0 %v4011
        %v4013 = vand.u32 %v1434, 4294901760
        %4014 = vmatpush1.msra.mxu0 %v4013
        %v4015 = vand.u32 %v1433, 4294901760
        %4016 = vmatprep.subr.mxu0 %v4015
        %v4017 = vand.u32 %v1432, 4294901760
        %4018 = vmatpush1.msra.mxu0 %v4017
        %v4019 = vand.u32 %v1431, 4294901760
        %4020 = vmatprep.subr.mxu0 %v4019
        %v4021 = vand.u32 %v1430, 4294901760
        %4022 = vmatpush1.msra.mxu0 %v4021
        %v4023 = vand.u32 %v1429, 4294901760
        %4024 = vmatprep.subr.mxu0 %v4023
        %v4025 = vand.u32 %v1428, 4294901760
        %4026 = vmatpush1.msra.mxu0 %v4025
        %v4027 = vand.u32 %v1427, 4294901760
        %4028 = vmatprep.subr.mxu0 %v4027
        %v4029 = vand.u32 %v1426, 4294901760
        %4030 = vmatpush1.msra.mxu0 %v4029
        %v4031 = vand.u32 %v1425, 4294901760
        %4032 = vmatprep.subr.mxu0 %v4031
        %v4033 = vand.u32 %v1424, 4294901760
        %4034 = vmatpush1.msra.mxu0 %v4033
        %v4035 = vand.u32 %v1423, 4294901760
        %4036 = vmatprep.subr.mxu0 %v4035
        %v4037 = vand.u32 %v1422, 4294901760
        %4038 = vmatpush1.msra.mxu0 %v4037
        %v4039 = vand.u32 %v1421, 4294901760
        %4040 = vmatprep.subr.mxu0 %v4039
        %v4041 = vand.u32 %v1420, 4294901760
        %4042 = vmatpush1.msra.mxu0 %v4041
        %v4043 = vand.u32 %v1483, 4294901760
        %4044 = vmatprep.subr.mxu0 %v4043
        %v4045 = vand.u32 %v1482, 4294901760
        %4046 = vmatpush2.msra.mxu0 %v4045
        %v4047 = vand.u32 %v1481, 4294901760
        %4048 = vmatprep.subr.mxu0 %v4047
        %v4049 = vand.u32 %v1480, 4294901760
        %4050 = vmatpush2.msra.mxu0 %v4049
        %v4051 = vand.u32 %v1479, 4294901760
        %4052 = vmatprep.subr.mxu0 %v4051
        %v4053 = vand.u32 %v1478, 4294901760
        %4054 = vmatpush2.msra.mxu0 %v4053
        %v4055 = vand.u32 %v1477, 4294901760
        %4056 = vmatprep.subr.mxu0 %v4055
        %v4057 = vand.u32 %v1476, 4294901760
        %4058 = vmatpush2.msra.mxu0 %v4057
        %v4059 = vand.u32 %v1475, 4294901760
        %4060 = vmatprep.subr.mxu0 %v4059
        %v4061 = vand.u32 %v1474, 4294901760
        %4062 = vmatpush2.msra.mxu0 %v4061
        %v4063 = vand.u32 %v1473, 4294901760
        %4064 = vmatprep.subr.mxu0 %v4063
        %v4065 = vand.u32 %v1472, 4294901760
        %4066 = vmatpush2.msra.mxu0 %v4065
        %v4067 = vand.u32 %v1471, 4294901760
        %4068 = vmatprep.subr.mxu0 %v4067
        %v4069 = vand.u32 %v1470, 4294901760
        %4070 = vmatpush2.msra.mxu0 %v4069
        %v4071 = vand.u32 %v1469, 4294901760
        %4072 = vmatprep.subr.mxu0 %v4071
        %v4073 = vand.u32 %v1468, 4294901760
        %4074 = vmatpush2.msra.mxu0 %v4073
        %v4075 = vand.u32 %v1467, 4294901760
        %4076 = vmatprep.subr.mxu0 %v4075
        %v4077 = vand.u32 %v1466, 4294901760
        %4078 = vmatpush2.msra.mxu0 %v4077
        %v4079 = vand.u32 %v1465, 4294901760
        %4080 = vmatprep.subr.mxu0 %v4079
        %v4081 = vand.u32 %v1464, 4294901760
        %4082 = vmatpush2.msra.mxu0 %v4081
        %v4083 = vand.u32 %v1463, 4294901760
        %4084 = vmatprep.subr.mxu0 %v4083
        %v4085 = vand.u32 %v1462, 4294901760
        %4086 = vmatpush2.msra.mxu0 %v4085
        %v4087 = vand.u32 %v1461, 4294901760
        %4088 = vmatprep.subr.mxu0 %v4087
        %v4089 = vand.u32 %v1460, 4294901760
        %4090 = vmatpush2.msra.mxu0 %v4089
        %v4091 = vand.u32 %v1459, 4294901760
        %4092 = vmatprep.subr.mxu0 %v4091
        %v4093 = vand.u32 %v1458, 4294901760
        %4094 = vmatpush2.msra.mxu0 %v4093
        %v4095 = vand.u32 %v1457, 4294901760
        %4096 = vmatprep.subr.mxu0 %v4095
        %v4097 = vand.u32 %v1456, 4294901760
        %4098 = vmatpush2.msra.mxu0 %v4097
        %v4099 = vand.u32 %v1455, 4294901760
        %4100 = vmatprep.subr.mxu0 %v4099
        %v4101 = vand.u32 %v1454, 4294901760
        %4102 = vmatpush2.msra.mxu0 %v4101
        %v4103 = vand.u32 %v1453, 4294901760
        %4104 = vmatprep.subr.mxu0 %v4103
        %v4105 = vand.u32 %v1452, 4294901760
        %4106 = vmatpush2.msra.mxu0 %v4105
        %v4107 = vand.u32 %v1401, 4294901760
        %4108 = vmatprep.mubr.f32.mxu0 %v4107
        %v4109 = vand.u32 %v1400, 4294901760
        %4110 = vmatmul.mubr.f32.gmra.mxu0 %v4109
        %v4111 = vpop.f32.mrf.mxu0
        %v4112 = vadd.f32 %v3975, %v4111
        %v4113 = vpop.f32.mrf.mxu0
        %v4114 = vadd.f32 %v3977, %v4113
        %4115 = vdwg.mxu0
        %s4116 = sld [smem:[#allocation2]]
        %v4117 = vstv %s4116
        %v4118 = vadd.f32 %v4112, %v4117
        %v4119 = vadd.f32 %v4114, %v4117
        %v4120 = vxor.u32 %v4118, 2147483648
        %v4121 = vxor.u32 %v4119, 2147483648
        %v4122 = vmul.f32 %v4120, 1.442695
        %v4123 = vpow.pop %v4122
        %v4124 = vmul.f32 %v4121, 1.442695
        %v4125 = vpow.pop %v4124
        %v4126 = vadd.f32 %v4123, 1.0
        %v4127 = vadd.f32 %v4125, 1.0
        %v4128 = vrcp.pop %v4126
        %v4129 = vmul.f32 1.0, %v4128
        %v4130 = vrcp.pop %v4127
        %v4131 = vmul.f32 1.0, %v4130
        %v4132 = vlaneseq
        %v4133 = vshrl.u32 %v4132, 7
        %v4134 = vsub.s32 0, %v4133
        %v4135 = vrot.slane %v4129, %v4134
        %v4136 = vlaneseq
        %v4137 = vshrl.u32 %v4136, 7
        %v4138 = vsub.s32 0, %v4137
        %v4139 = vrot.slane %v4131, %v4138
        %v4140 = vmul.f32 %v1373, %v4135
        %v4141 = vmul.f32 %v1374, %v4139
        %v4142 = vmul.f32 %v1375, %v4135
        %v4143 = vmul.f32 %v1376, %v4139
        %v4144 = vmul.f32 %v1377, %v4135
        %v4145 = vmul.f32 %v1378, %v4139
        %v4146 = vmul.f32 %v1379, %v4135
        %v4147 = vmul.f32 %v1380, %v4139
        %4148 = vst [vmem:[%s299] sm:$0xff] %v4140
        %4149 = vst [vmem:[%s299 + $0x8] sm:$0xff] %v4141
        %4150 = vst [vmem:[%s299 + $0x10] sm:$0xff] %v4142
        %4151 = vst [vmem:[%s299 + $0x18] sm:$0xff] %v4143
        %4152 = vst [vmem:[%s299 + $0x20] sm:$0xff] %v4144
        %4153 = vst [vmem:[%s299 + $0x28] sm:$0xff] %v4145
        %4154 = vst [vmem:[%s299 + $0x30] sm:$0xff] %v4146
        %4155 = vst [vmem:[%s299 + $0x38] sm:$0xff] %v4147
        %s4156 = sand.u32 %s164, 1
        %s4157 = scalar_lea.sflag [#allocation5], %s4156
        %s4158 = sand.u32 %s164, 1
        %s4159 = smul.addr %s4158, 64
        %s4160 = scalar_lea.vmem [#allocation9], %s4159
        // Predicated region
        $region57: #{tpu_custom_call.1} parent=43 // pred_check
          %p4161 = pneg %p174
        $region58: #{tpu_custom_call.1} parent=43 // pred_check_branch
          %4163 = sbr.rel (%p4161) target = $region60
        $region59: #{tpu_custom_call.1} parent=43 // pred_region
          %s4165 = ssub.s32 1024, 1024
          %4166 = vsyncadd %s4157, %s4165
          %s4167 = smul.addr %s25, 8
          %s4168 = smul.addr %s4167, 128
          %s4169 = scalar_lea.hbm %s6, %s4168
          %s4170 = sshll.u32 %s4160, 4
          %s4171 = int_to_ptr.vmem [resolvable:$true] %s4170
          %4176 = dma.vmem_to_hbm [thread:$0]  %s4171, 1024, %s4169, %s4157, 256, 256, 16
        $region60: #{tpu_custom_call.1} parent=43 // pred_fallthru
          _
      $region44: #{tpu_custom_call.1} parent=5 // pred_fallthru
        _
      %p4177 = scmp.le.s32.totalorder 2, %s20
      // Predicated region
      $region61: #{tpu_custom_call.1} parent=5 // pred_check
        %p4178 = pneg %p4177
      $region62: #{tpu_custom_call.1} parent=5 // pred_check_branch
        %4180 = sbr.rel (%p4178) target = $region64
      $region63: #{tpu_custom_call.1} parent=5 // pred_region
        %s4181 = ssub.s32 %s20, 2
        // Predicated region
        $region65: #{tpu_custom_call.1} parent=63 // pred_check
          %p4182 = pneg %p180
        $region66: #{tpu_custom_call.1} parent=63 // pred_check_branch
          %4184 = sbr.rel (%p4182) target = $region68
        $region67: #{tpu_custom_call.1} parent=63 // pred_region
          %s4185 = sand.u32 %s165, 1
          %s4186 = scalar_lea.sflag [#allocation5], %s4185
          %s4187 = sand.u32 %s165, 1
          %s4188 = smul.addr %s4187, 64
          %s4189 = scalar_lea.vmem [#allocation9], %s4188
          %4190 = dma.done %s4186, 1024
        $region68: #{tpu_custom_call.1} parent=63 // pred_fallthru
          _
      $region64: #{tpu_custom_call.1} parent=5 // pred_fallthru
        _
    $region6: #{tpu_custom_call.1} parent=1 // loop_footer
      %s24 = sadd.s32 1, %s20
    $region7: #{tpu_custom_call.1} parent=1 // loop_footer_branch
      %19 = sbr.rel target = $region3
    $region8: #{tpu_custom_call.1} parent=1 // loop_exit
      _
    %4191 = vsyncpa [#allocation4], 1
    %s4192 = scalar_lea.sflag [#allocation4], 1
    %4193 = vsyncpa %s4192, 1
    %4194 = vsyncpa [#allocation7], 1
    %4195 = vsyncpa [#allocation5], 1
    %s4196 = scalar_lea.sflag [#allocation5], 1
    %4197 = vsyncpa %s4196, 1

</llo_original>
